<compile_context>
chip_gen: v7x
topology: tpu7x:2x2x1
jax: 0.10.0
libtpu: 0.0.40
codegen_flags: <defaults>
</compile_context>

<pallas_src>
import functools

import jax
import jax.numpy as jnp
from jax.experimental import pallas as pl
from jax.experimental.pallas import tpu as pltpu

# ----------------------------- constants ------------------------------------
VOCAB_SIZE = 64
MAX_SEQ_LEN = 16
EMBED_DIM = 32
NUM_HEADS = 4
HEAD_DIM = EMBED_DIM // NUM_HEADS
FF_DIM = 4 * EMBED_DIM
NUM_TRANSFORMER_BLOCKS = 2
STD = 0.02
DROPOUT_PROB = 0.1  # identity at inference time (eval mode)
LN_EPS = 1e-5
LANE = 128          # TPU lane width; used for the lane-dense output slab


# ----------------------------- math helpers ----------------------------------
def _layer_norm(x, gamma, beta):
    """LayerNorm over last dim. x: (..., D); gamma/beta: (1, D)."""
    mu = jnp.mean(x, axis=-1, keepdims=True)
    var = jnp.mean((x - mu) * (x - mu), axis=-1, keepdims=True)
    return (x - mu) * jax.lax.rsqrt(var + LN_EPS) * gamma + beta


def _gelu(x):
    # tanh approximation of GELU (same as the previous version).
    c = 0.7978845608028654  # sqrt(2/pi)
    return 0.5 * x * (1.0 + jnp.tanh(c * (x + 0.044715 * x * x * x)))


# ----------------------------- fused Pallas kernel ----------------------------
# Packed-vector row layout (one (8, 128) f32 table per block):
#   row 0: ln1_gamma[:D]   row 1: ln1_beta[:D]
#   row 2: [b_q | b_k | b_v][:3D]
#   row 3: b_o[:D]
#   row 4: ln2_gamma[:D]   row 5: ln2_beta[:D]
#   row 6: b1[:FF_DIM]     row 7: b2[:D]
# Entry NUM_TRANSFORMER_BLOCKS of the vecs array holds the final LayerNorm
# gamma (row 0) / beta (row 1).
def _fused_transformer_kernel(x_ref, wqkv_ref, wo_ref, w1_ref, w2_ref,
                              vecs_ref, o_ref, *, batch, seq):
    B, S = batch, seq
    BS = B * S
    D, H, Dh, FF = EMBED_DIM, NUM_HEADS, HEAD_DIM, FF_DIM
    scale = 1.0 / (Dh ** 0.5)

    # Causal mask, shared across layers and (head, batch) pairs.
    q_idx = jax.lax.broadcasted_iota(jnp.int32, (S, S), 0)
    k_idx = jax.lax.broadcasted_iota(jnp.int32, (S, S), 1)
    causal = (k_idx <= q_idx)[None]                     # (1, S, S)

    x = x_ref[...]                                      # (BS, D) f32, stays in vregs/VMEM

    for layer in range(NUM_TRANSFORMER_BLOCKS):         # static unroll over layers
        vecs = vecs_ref[layer]                          # (8, 128) f32
        ln1_g, ln1_b = vecs[0:1, :D], vecs[1:2, :D]
        b_qkv = vecs[2:3, :3 * D]
        bo = vecs[3:4, :D]
        ln2_g, ln2_b = vecs[4:5, :D], vecs[5:6, :D]
        b1 = vecs[6:7, :FF]
        b2 = vecs[7:8, :D]

        # ---- causal multi-head self-attention -------------------------------
        h = _layer_norm(x, ln1_g, ln1_b)                # f32
        qkv = jnp.dot(h.astype(jnp.bfloat16), wqkv_ref[layer],
                      preferred_element_type=jnp.float32) + b_qkv   # (BS, 3D) f32

        # Gather heads into a single (H*B, S, Dh) batch for batched einsums.
        qs, ks, vs = [], [], []
        for hh in range(H):
            lo = hh * Dh
            qs.append(qkv[:, 0 * D + lo:0 * D + lo + Dh].reshape(B, S, Dh))
            ks.append(qkv[:, 1 * D + lo:1 * D + lo + Dh].reshape(B, S, Dh))
            vs.append(qkv[:, 2 * D + lo:2 * D + lo + Dh].reshape(B, S, Dh))
        q_hb = jnp.concatenate(qs, axis=0).astype(jnp.bfloat16)     # (H*B, S, Dh)
        k_hb = jnp.concatenate(ks, axis=0).astype(jnp.bfloat16)
        v_hb = jnp.concatenate(vs, axis=0).astype(jnp.bfloat16)

        scores = jnp.einsum('bqd,bkd->bqk', q_hb, k_hb,
                            preferred_element_type=jnp.float32) * scale
        scores = jnp.where(causal, scores, -1e30)
        scores = scores - jnp.max(scores, axis=-1, keepdims=True)
        p = jnp.exp(scores)
        p = p * pl.reciprocal(jnp.sum(p, axis=-1, keepdims=True), approx=True)
        ctx = jnp.einsum('bqk,bkd->bqd', p.astype(jnp.bfloat16), v_hb,
                         preferred_element_type=jnp.float32)        # (H*B, S, Dh)

        # Merge heads by accumulating per-head row blocks of W_o
        # (avoids the lane-axis concatenate).
        ctx_b = ctx.astype(jnp.bfloat16)
        wo_l = wo_ref[layer]                                        # (D, D) bf16
        attn = jnp.zeros((BS, D), jnp.float32)
        for hh in range(H):
            ctx_h = ctx_b[hh * B:(hh + 1) * B].reshape(BS, Dh)      # (BS, Dh)
            attn = attn + jnp.dot(ctx_h, wo_l[hh * Dh:(hh + 1) * Dh, :],
                                  preferred_element_type=jnp.float32)
        x = x + attn + bo                                           # residual 1

        # ---- MLP --------------------------------------------------------------
        h2 = _layer_norm(x, ln2_g, ln2_b)
        ff = jnp.dot(h2.astype(jnp.bfloat16), w1_ref[layer],
                     preferred_element_type=jnp.float32) + b1
        ff = _gelu(ff)
        ff = jnp.dot(ff.astype(jnp.bfloat16), w2_ref[layer],
                     preferred_element_type=jnp.float32) + b2
        x = x + ff                                                  # residual 2

    # ---- final LayerNorm + lane-dense store ---------------------------------
    lnf = vecs_ref[NUM_TRANSFORMER_BLOCKS]
    y = _layer_norm(x, lnf[0:1, :D], lnf[1:2, :D])                  # (BS, D)
    pad = jnp.zeros((BS, LANE - D), jnp.float32)
    o_ref[...] = jnp.concatenate([y, pad], axis=-1)                 # (BS, 128), full vst


# ----------------------------- wrapper -----------------------------------------
def _cost_estimate(batch, seq):
    BS = batch * seq
    D, H, Dh, FF, NB = EMBED_DIM, NUM_HEADS, HEAD_DIM, FF_DIM, NUM_TRANSFORMER_BLOCKS
    per_block = (2 * BS * D * 3 * D                       # fused QKV matmul
                 + 2 * 2 * (H * batch) * seq * seq * Dh   # scores + ctx
                 + 2 * BS * D * D                         # W_o
                 + 2 * BS * D * FF + 2 * BS * FF * D)     # MLP
    flops = NB * per_block
    transcendentals = NB * ((H * batch) * seq * seq + BS * FF)      # exp + tanh
    bytes_accessed = (BS * D * 4 + BS * LANE * 4
                      + NB * (D * 3 * D + D * D + D * FF + FF * D) * 2   # bf16 weights
                      + (NB + 1) * 8 * LANE * 4)
    return pl.CostEstimate(flops=flops, transcendentals=transcendentals,
                           bytes_accessed=bytes_accessed)


def run_fused_transformer(x_flat, wqkv, wo, w1, w2, vecs, *, batch, seq):
    """x_flat: (B*S, D) f32. Returns (B*S, D) f32."""
    kernel = functools.partial(_fused_transformer_kernel, batch=batch, seq=seq)
    vmem = pl.BlockSpec(memory_space=pltpu.MemorySpace.VMEM)
    out = pl.pallas_call(
        kernel,
        out_shape=jax.ShapeDtypeStruct((batch * seq, LANE), jnp.float32),
        in_specs=[vmem] * 6,
        out_specs=vmem,
        cost_estimate=_cost_estimate(batch, seq),
    )(x_flat, wqkv, wo, w1, w2, vecs)
    return out[:, :EMBED_DIM]


@jax.jit
def transformer_forward(inputs, token_emb, pos_emb, wqkv, wo, w1, w2, vecs):
    B, S = inputs.shape
    # glue: embedding gathers + position add (dropout is identity in eval mode)
    tok = jnp.take(token_emb, inputs, axis=0)               # (B, S, D)
    pos = pos_emb[:S][None, :, :]                           # (1, S, D)
    x = (tok + pos).reshape(B * S, EMBED_DIM)
    y = run_fused_transformer(x, wqkv, wo, w1, w2, vecs, batch=B, seq=S)
    return y.reshape(B, S, EMBED_DIM)


# ----------------------------- parameter init / packing -------------------------
def init_params(key):
    keys = iter(jax.random.split(key, 8 + NUM_TRANSFORMER_BLOCKS * 8))

    def normal(shape):
        return jax.random.normal(next(keys), shape, dtype=jnp.float32) * STD

    params = {
        "token_emb": normal((VOCAB_SIZE, EMBED_DIM)),
        "pos_emb": normal((MAX_SEQ_LEN, EMBED_DIM)),
        "ln_f_g": jnp.ones((1, EMBED_DIM), jnp.float32),
        "ln_f_b": jnp.zeros((1, EMBED_DIM), jnp.float32),
        "blocks": [],
    }
    for _ in range(NUM_TRANSFORMER_BLOCKS):
        blk = (
            jnp.ones((1, EMBED_DIM), jnp.float32),    # 0  ln1_g
            jnp.zeros((1, EMBED_DIM), jnp.float32),   # 1  ln1_b
            normal((EMBED_DIM, EMBED_DIM)),           # 2  wq
            jnp.zeros((1, EMBED_DIM), jnp.float32),   # 3  bq
            normal((EMBED_DIM, EMBED_DIM)),           # 4  wk
            jnp.zeros((1, EMBED_DIM), jnp.float32),   # 5  bk
            normal((EMBED_DIM, EMBED_DIM)),           # 6  wv
            jnp.zeros((1, EMBED_DIM), jnp.float32),   # 7  bv
            normal((EMBED_DIM, EMBED_DIM)),           # 8  wo
            jnp.zeros((1, EMBED_DIM), jnp.float32),   # 9  bo
            jnp.ones((1, EMBED_DIM), jnp.float32),    # 10 ln2_g
            jnp.zeros((1, EMBED_DIM), jnp.float32),   # 11 ln2_b
            normal((EMBED_DIM, FF_DIM)),              # 12 w1
            jnp.zeros((1, FF_DIM), jnp.float32),      # 13 b1
            normal((FF_DIM, EMBED_DIM)),              # 14 w2
            jnp.zeros((1, EMBED_DIM), jnp.float32),   # 15 b2
        )
        params["blocks"].append(blk)
    return params


def pack_params(params):
    """Pack per-block weights into 5 arrays (bf16 matrices + f32 vec table)."""
    NB, D, FF = NUM_TRANSFORMER_BLOCKS, EMBED_DIM, FF_DIM
    assert 3 * D <= LANE and FF <= LANE

    blocks = params["blocks"]
    wqkv = jnp.stack([jnp.concatenate([b[2], b[4], b[6]], axis=1) for b in blocks]
                     ).astype(jnp.bfloat16)                        # (NB, D, 3D)
    wo = jnp.stack([b[8] for b in blocks]).astype(jnp.bfloat16)    # (NB, D, D)
    w1 = jnp.stack([b[12] for b in blocks]).astype(jnp.bfloat16)   # (NB, D, FF)
    w2 = jnp.stack([b[14] for b in blocks]).astype(jnp.bfloat16)   # (NB, FF, D)

    vecs = jnp.zeros((NB + 1, 8, LANE), jnp.float32)
    for i, b in enumerate(blocks):
        rows = [
            (0, b[0]), (1, b[1]),                                   # ln1 gamma/beta
            (2, jnp.concatenate([b[3], b[5], b[7]], axis=1)),       # b_qkv
            (3, b[9]),                                              # b_o
            (4, b[10]), (5, b[11]),                                 # ln2 gamma/beta
            (6, b[13]), (7, b[15]),                                 # b1, b2
        ]
        for r, v in rows:
            vecs = vecs.at[i, r, :v.shape[1]].set(v[0])
    vecs = vecs.at[NB, 0, :D].set(params["ln_f_g"][0])
    vecs = vecs.at[NB, 1, :D].set(params["ln_f_b"][0])
    return wqkv, wo, w1, w2, vecs


# ----------------------------- pure-JAX reference --------------------------------
def transformer_reference(inputs, params):
    B, S = inputs.shape
    H, Dh = NUM_HEADS, HEAD_DIM
    x = jnp.take(params["token_emb"], inputs, axis=0) + params["pos_emb"][:S][None]
    q_idx = jax.lax.broadcasted_iota(jnp.int32, (S, S), 0)
    k_idx = jax.lax.broadcasted_iota(jnp.int32, (S, S), 1)
    causal = (k_idx <= q_idx)[None, None]
    for blk in params["blocks"]:
        (ln1_g, ln1_b, wq, bq, wk, bk, wv, bv, wo, bo,
         ln2_g, ln2_b, w1, b1, w2, b2) = blk
        h = _layer_norm(x, ln1_g, ln1_b)
        q = (h @ wq + bq).reshape(B, S, H, Dh).transpose(0, 2, 1, 3)
        k = (h @ wk + bk).reshape(B, S, H, Dh).transpose(0, 2, 1, 3)
        v = (h @ wv + bv).reshape(B, S, H, Dh).transpose(0, 2, 1, 3)
        scores = jnp.einsum('bhqd,bhkd->bhqk', q, k) / (Dh ** 0.5)
        scores = jnp.where(causal, scores, -1e30)
        p = jax.nn.softmax(scores, axis=-1)
        ctx = jnp.einsum('bhqk,bhkd->bhqd', p, v).transpose(0, 2, 1, 3)
        ctx = ctx.reshape(B, S, EMBED_DIM)
        x = x + ctx @ wo + bo
        h2 = _layer_norm(x, ln2_g, ln2_b)
        x = x + _gelu(h2 @ w1 + b1) @ w2 + b2
    return _layer_norm(x, params["ln_f_g"], params["ln_f_b"])


# ----------------------------- main ---------------------------------------------
if __name__ == "__main__":
    key = jax.random.PRNGKey(0)
    pkey, ikey = jax.random.split(key)

    params = init_params(pkey)
    wqkv, wo, w1, w2, vecs = pack_params(params)

    B, S = 2, 8
    inputs = jax.random.randint(ikey, (B, S), 0, VOCAB_SIZE, dtype=jnp.int32)

    out = transformer_forward(inputs, params["token_emb"], params["pos_emb"],
                              wqkv, wo, w1, w2, vecs)
    out = jax.block_until_ready(out)

    assert out.shape == (B, S, EMBED_DIM), out.shape
    assert bool(jnp.all(jnp.isfinite(out)))

    # Loose check vs. an f32 pure-JAX reference (kernel uses bf16 MXU operands).
    ref = transformer_reference(inputs, params)
    err = float(jnp.max(jnp.abs(out - ref)))
    assert err < 0.2, f"max abs err vs reference: {err}"

    print("KERNEL_OK")
</pallas_src>

<mosaic_0001>
module attributes {stable_mosaic.version = 11 : i64} {
  func.func @_fused_transformer_kernel(%arg0: memref<16x32xf32, #tpu.memory_space<vmem>>, %arg1: memref<2x32x96xbf16, #tpu.memory_space<vmem>>, %arg2: memref<2x32x32xbf16, #tpu.memory_space<vmem>>, %arg3: memref<2x32x128xbf16, #tpu.memory_space<vmem>>, %arg4: memref<2x128x32xbf16, #tpu.memory_space<vmem>>, %arg5: memref<3x8x128xf32, #tpu.memory_space<vmem>>, %arg6: memref<16x128xf32, #tpu.memory_space<vmem>>) attributes {dimension_semantics = [], scalar_prefetch = 0 : i64, scratch_operands = 0 : i64, tpu.core_type = #tpu.core_type<tc>} {
    %0 = tpu.iota {dimensions = array<i32: 0>} : vector<8x8xi32>
    %1 = tpu.iota {dimensions = array<i32: 1>} : vector<8x8xi32>
    %2 = arith.cmpi sle, %1, %0 : vector<8x8xi32>
    %3 = vector.shape_cast %2 : vector<8x8xi1> to vector<1x8x8xi1>
    %c0 = arith.constant 0 : index
    %c0_0 = arith.constant 0 : index
    %4 = vector.load %arg0[%c0, %c0_0] : memref<16x32xf32, #tpu.memory_space<vmem>>, vector<16x32xf32>
    %c0_1 = arith.constant 0 : index
    %c0_2 = arith.constant 0 : index
    %c0_3 = arith.constant 0 : index
    %5 = vector.load %arg5[%c0_1, %c0_2, %c0_3] : memref<3x8x128xf32, #tpu.memory_space<vmem>>, vector<1x8x128xf32>
    %6 = vector.shape_cast %5 : vector<1x8x128xf32> to vector<8x128xf32>
    %7 = vector.extract_strided_slice %6 {offsets = [0, 0], sizes = [1, 32], strides = [1, 1]} : vector<8x128xf32> to vector<1x32xf32>
    %8 = vector.extract_strided_slice %6 {offsets = [1, 0], sizes = [1, 32], strides = [1, 1]} : vector<8x128xf32> to vector<1x32xf32>
    %9 = vector.extract_strided_slice %6 {offsets = [2, 0], sizes = [1, 96], strides = [1, 1]} : vector<8x128xf32> to vector<1x96xf32>
    %10 = vector.extract_strided_slice %6 {offsets = [3, 0], sizes = [1, 32], strides = [1, 1]} : vector<8x128xf32> to vector<1x32xf32>
    %11 = vector.extract_strided_slice %6 {offsets = [4, 0], sizes = [1, 32], strides = [1, 1]} : vector<8x128xf32> to vector<1x32xf32>
    %12 = vector.extract_strided_slice %6 {offsets = [5, 0], sizes = [1, 32], strides = [1, 1]} : vector<8x128xf32> to vector<1x32xf32>
    %13 = vector.extract_strided_slice %6 {offsets = [6, 0], sizes = [1, 128], strides = [1, 1]} : vector<8x128xf32> to vector<1x128xf32>
    %14 = vector.extract_strided_slice %6 {offsets = [7, 0], sizes = [1, 32], strides = [1, 1]} : vector<8x128xf32> to vector<1x32xf32>
    %cst = arith.constant dense<0.000000e+00> : vector<16xf32>
    %15 = vector.multi_reduction <add>, %4, %cst [1] : vector<16x32xf32> to vector<16xf32>
    %16 = vector.shape_cast %15 : vector<16xf32> to vector<16x1xf32>
    %cst_4 = arith.constant 3.200000e+01 : f32
    %17 = vector.broadcast %cst_4 : f32 to vector<16x1xf32>
    %18 = arith.divf %16, %17 : vector<16x1xf32>
    %19 = vector.broadcast %18 : vector<16x1xf32> to vector<16x32xf32>
    %20 = arith.subf %4, %19 : vector<16x32xf32>
    %21 = vector.broadcast %18 : vector<16x1xf32> to vector<16x32xf32>
    %22 = arith.subf %4, %21 : vector<16x32xf32>
    %23 = arith.mulf %20, %22 : vector<16x32xf32>
    %cst_5 = arith.constant dense<0.000000e+00> : vector<16xf32>
    %24 = vector.multi_reduction <add>, %23, %cst_5 [1] : vector<16x32xf32> to vector<16xf32>
    %25 = vector.shape_cast %24 : vector<16xf32> to vector<16x1xf32>
    %cst_6 = arith.constant 3.200000e+01 : f32
    %26 = vector.broadcast %cst_6 : f32 to vector<16x1xf32>
    %27 = arith.divf %25, %26 : vector<16x1xf32>
    %28 = vector.broadcast %18 : vector<16x1xf32> to vector<16x32xf32>
    %29 = arith.subf %4, %28 : vector<16x32xf32>
    %cst_7 = arith.constant 9.99999974E-6 : f32
    %30 = vector.broadcast %cst_7 : f32 to vector<16x1xf32>
    %31 = arith.addf %27, %30 : vector<16x1xf32>
    %32 = math.rsqrt %31 : vector<16x1xf32>
    %33 = vector.broadcast %32 : vector<16x1xf32> to vector<16x32xf32>
    %34 = arith.mulf %29, %33 : vector<16x32xf32>
    %35 = vector.broadcast %7 : vector<1x32xf32> to vector<16x32xf32>
    %36 = arith.mulf %34, %35 : vector<16x32xf32>
    %37 = vector.broadcast %8 : vector<1x32xf32> to vector<16x32xf32>
    %38 = arith.addf %36, %37 : vector<16x32xf32>
    %39 = arith.truncf %38 : vector<16x32xf32> to vector<16x32xbf16>
    %c0_8 = arith.constant 0 : index
    %c0_9 = arith.constant 0 : index
    %c0_10 = arith.constant 0 : index
    %40 = vector.load %arg1[%c0_8, %c0_9, %c0_10] : memref<2x32x96xbf16, #tpu.memory_space<vmem>>, vector<1x32x96xbf16>
    %41 = vector.shape_cast %40 : vector<1x32x96xbf16> to vector<32x96xbf16>
    %cst_11 = arith.constant dense<0.000000e+00> : vector<16x96xf32>
    %42 = tpu.matmul %39, %41, %cst_11 {dimension_numbers = #tpu.dot_dimension_numbers<[1], [0], [0], [1], [0, 0, 1, 1], [], []>} : vector<16x32xbf16>, vector<32x96xbf16>, vector<16x96xf32> -> vector<16x96xf32>
    %43 = vector.broadcast %9 : vector<1x96xf32> to vector<16x96xf32>
    %44 = arith.addf %42, %43 : vector<16x96xf32>
    %45 = vector.extract_strided_slice %44 {offsets = [0, 0], sizes = [16, 8], strides = [1, 1]} : vector<16x96xf32> to vector<16x8xf32>
    %46 = vector.shape_cast %45 : vector<16x8xf32> to vector<2x8x8xf32>
    %47 = vector.extract_strided_slice %44 {offsets = [0, 32], sizes = [16, 8], strides = [1, 1]} : vector<16x96xf32> to vector<16x8xf32>
    %48 = vector.shape_cast %47 : vector<16x8xf32> to vector<2x8x8xf32>
    %49 = vector.extract_strided_slice %44 {offsets = [0, 64], sizes = [16, 8], strides = [1, 1]} : vector<16x96xf32> to vector<16x8xf32>
    %50 = vector.shape_cast %49 : vector<16x8xf32> to vector<2x8x8xf32>
    %51 = vector.extract_strided_slice %44 {offsets = [0, 8], sizes = [16, 8], strides = [1, 1]} : vector<16x96xf32> to vector<16x8xf32>
    %52 = vector.shape_cast %51 : vector<16x8xf32> to vector<2x8x8xf32>
    %53 = vector.extract_strided_slice %44 {offsets = [0, 40], sizes = [16, 8], strides = [1, 1]} : vector<16x96xf32> to vector<16x8xf32>
    %54 = vector.shape_cast %53 : vector<16x8xf32> to vector<2x8x8xf32>
    %55 = vector.extract_strided_slice %44 {offsets = [0, 72], sizes = [16, 8], strides = [1, 1]} : vector<16x96xf32> to vector<16x8xf32>
    %56 = vector.shape_cast %55 : vector<16x8xf32> to vector<2x8x8xf32>
    %57 = vector.extract_strided_slice %44 {offsets = [0, 16], sizes = [16, 8], strides = [1, 1]} : vector<16x96xf32> to vector<16x8xf32>
    %58 = vector.shape_cast %57 : vector<16x8xf32> to vector<2x8x8xf32>
    %59 = vector.extract_strided_slice %44 {offsets = [0, 48], sizes = [16, 8], strides = [1, 1]} : vector<16x96xf32> to vector<16x8xf32>
    %60 = vector.shape_cast %59 : vector<16x8xf32> to vector<2x8x8xf32>
    %61 = vector.extract_strided_slice %44 {offsets = [0, 80], sizes = [16, 8], strides = [1, 1]} : vector<16x96xf32> to vector<16x8xf32>
    %62 = vector.shape_cast %61 : vector<16x8xf32> to vector<2x8x8xf32>
    %63 = vector.extract_strided_slice %44 {offsets = [0, 24], sizes = [16, 8], strides = [1, 1]} : vector<16x96xf32> to vector<16x8xf32>
    %64 = vector.shape_cast %63 : vector<16x8xf32> to vector<2x8x8xf32>
    %65 = vector.extract_strided_slice %44 {offsets = [0, 56], sizes = [16, 8], strides = [1, 1]} : vector<16x96xf32> to vector<16x8xf32>
    %66 = vector.shape_cast %65 : vector<16x8xf32> to vector<2x8x8xf32>
    %67 = vector.extract_strided_slice %44 {offsets = [0, 88], sizes = [16, 8], strides = [1, 1]} : vector<16x96xf32> to vector<16x8xf32>
    %68 = vector.shape_cast %67 : vector<16x8xf32> to vector<2x8x8xf32>
    %69 = tpu.concatenate %46, %52, %58, %64 in 0 : vector<2x8x8xf32>, vector<2x8x8xf32>, vector<2x8x8xf32>, vector<2x8x8xf32> -> vector<8x8x8xf32>
    %70 = arith.truncf %69 : vector<8x8x8xf32> to vector<8x8x8xbf16>
    %71 = tpu.concatenate %48, %54, %60, %66 in 0 : vector<2x8x8xf32>, vector<2x8x8xf32>, vector<2x8x8xf32>, vector<2x8x8xf32> -> vector<8x8x8xf32>
    %72 = arith.truncf %71 : vector<8x8x8xf32> to vector<8x8x8xbf16>
    %73 = tpu.concatenate %50, %56, %62, %68 in 0 : vector<2x8x8xf32>, vector<2x8x8xf32>, vector<2x8x8xf32>, vector<2x8x8xf32> -> vector<8x8x8xf32>
    %74 = arith.truncf %73 : vector<8x8x8xf32> to vector<8x8x8xbf16>
    "tpu.trace_start"() <{level = 10 : i32, message = "bqd,bkd->bqk"}> : () -> ()
    %cst_12 = arith.constant dense<0.000000e+00> : vector<8x8x8xf32>
    %75 = tpu.matmul %70, %72, %cst_12 {dimension_numbers = #tpu.dot_dimension_numbers<[2], [2], [1], [1], [0, 0, 0, 1, 1, 1], [0], [0]>} : vector<8x8x8xbf16>, vector<8x8x8xbf16>, vector<8x8x8xf32> -> vector<8x8x8xf32>
    "tpu.trace_stop"() : () -> ()
    %cst_13 = arith.constant 0.353553385 : f32
    %76 = vector.broadcast %cst_13 : f32 to vector<8x8x8xf32>
    %77 = arith.mulf %75, %76 : vector<8x8x8xf32>
    %cst_14 = arith.constant -1.000000e+30 : f32
    %78 = vector.shape_cast %3 : vector<1x8x8xi1> to vector<1x8x8xi1>
    %79 = vector.broadcast %78 : vector<1x8x8xi1> to vector<8x8x8xi1>
    %80 = vector.broadcast %cst_14 : f32 to vector<8x8x8xf32>
    %81 = arith.select %79, %77, %80 : vector<8x8x8xi1>, vector<8x8x8xf32>
    %cst_15 = arith.constant dense<0xFF800000> : vector<8x8xf32>
    %82 = vector.multi_reduction <maximumf>, %81, %cst_15 [2] : vector<8x8x8xf32> to vector<8x8xf32>
    %83 = vector.shape_cast %82 : vector<8x8xf32> to vector<8x8x1xf32>
    %84 = vector.broadcast %83 : vector<8x8x1xf32> to vector<8x8x8xf32>
    %85 = arith.subf %81, %84 : vector<8x8x8xf32>
    %86 = math.exp %85 : vector<8x8x8xf32>
    %cst_16 = arith.constant dense<0.000000e+00> : vector<8x8xf32>
    %87 = vector.multi_reduction <add>, %86, %cst_16 [2] : vector<8x8x8xf32> to vector<8x8xf32>
    %88 = vector.shape_cast %87 : vector<8x8xf32> to vector<8x8x1xf32>
    %89 = tpu.reciprocal %88 {approx = true} : vector<8x8x1xf32> -> vector<8x8x1xf32>
    %90 = vector.broadcast %89 : vector<8x8x1xf32> to vector<8x8x8xf32>
    %91 = arith.mulf %86, %90 : vector<8x8x8xf32>
    %92 = arith.truncf %91 : vector<8x8x8xf32> to vector<8x8x8xbf16>
    "tpu.trace_start"() <{level = 10 : i32, message = "bqk,bkd->bqd"}> : () -> ()
    %cst_17 = arith.constant dense<0.000000e+00> : vector<8x8x8xf32>
    %93 = tpu.matmul %92, %74, %cst_17 {dimension_numbers = #tpu.dot_dimension_numbers<[2], [1], [1], [2], [0, 0, 0, 1, 1, 2], [0], [0]>} : vector<8x8x8xbf16>, vector<8x8x8xbf16>, vector<8x8x8xf32> -> vector<8x8x8xf32>
    "tpu.trace_stop"() : () -> ()
    %94 = arith.truncf %93 : vector<8x8x8xf32> to vector<8x8x8xbf16>
    %c0_18 = arith.constant 0 : index
    %c0_19 = arith.constant 0 : index
    %c0_20 = arith.constant 0 : index
    %95 = vector.load %arg2[%c0_18, %c0_19, %c0_20] : memref<2x32x32xbf16, #tpu.memory_space<vmem>>, vector<1x32x32xbf16>
    %96 = vector.shape_cast %95 : vector<1x32x32xbf16> to vector<32x32xbf16>
    %cst_21 = arith.constant 0.000000e+00 : f32
    %97 = vector.broadcast %cst_21 : f32 to vector<16x32xf32>
    %98 = vector.extract_strided_slice %94 {offsets = [0, 0, 0], sizes = [2, 8, 8], strides = [1, 1, 1]} : vector<8x8x8xbf16> to vector<2x8x8xbf16>
    %99 = vector.shape_cast %98 : vector<2x8x8xbf16> to vector<16x8xbf16>
    %100 = vector.extract_strided_slice %96 {offsets = [0, 0], sizes = [8, 32], strides = [1, 1]} : vector<32x32xbf16> to vector<8x32xbf16>
    %cst_22 = arith.constant dense<0.000000e+00> : vector<16x32xf32>
    %101 = tpu.matmul %99, %100, %cst_22 {dimension_numbers = #tpu.dot_dimension_numbers<[1], [0], [0], [1], [0, 0, 1, 1], [], []>} : vector<16x8xbf16>, vector<8x32xbf16>, vector<16x32xf32> -> vector<16x32xf32>
    %102 = arith.addf %97, %101 : vector<16x32xf32>
    %103 = vector.extract_strided_slice %94 {offsets = [2, 0, 0], sizes = [2, 8, 8], strides = [1, 1, 1]} : vector<8x8x8xbf16> to vector<2x8x8xbf16>
    %104 = vector.shape_cast %103 : vector<2x8x8xbf16> to vector<16x8xbf16>
    %105 = vector.extract_strided_slice %96 {offsets = [8, 0], sizes = [8, 32], strides = [1, 1]} : vector<32x32xbf16> to vector<8x32xbf16>
    %cst_23 = arith.constant dense<0.000000e+00> : vector<16x32xf32>
    %106 = tpu.matmul %104, %105, %cst_23 {dimension_numbers = #tpu.dot_dimension_numbers<[1], [0], [0], [1], [0, 0, 1, 1], [], []>} : vector<16x8xbf16>, vector<8x32xbf16>, vector<16x32xf32> -> vector<16x32xf32>
    %107 = arith.addf %102, %106 : vector<16x32xf32>
    %108 = vector.extract_strided_slice %94 {offsets = [4, 0, 0], sizes = [2, 8, 8], strides = [1, 1, 1]} : vector<8x8x8xbf16> to vector<2x8x8xbf16>
    %109 = vector.shape_cast %108 : vector<2x8x8xbf16> to vector<16x8xbf16>
    %110 = vector.extract_strided_slice %96 {offsets = [16, 0], sizes = [8, 32], strides = [1, 1]} : vector<32x32xbf16> to vector<8x32xbf16>
    %cst_24 = arith.constant dense<0.000000e+00> : vector<16x32xf32>
    %111 = tpu.matmul %109, %110, %cst_24 {dimension_numbers = #tpu.dot_dimension_numbers<[1], [0], [0], [1], [0, 0, 1, 1], [], []>} : vector<16x8xbf16>, vector<8x32xbf16>, vector<16x32xf32> -> vector<16x32xf32>
    %112 = arith.addf %107, %111 : vector<16x32xf32>
    %113 = vector.extract_strided_slice %94 {offsets = [6, 0, 0], sizes = [2, 8, 8], strides = [1, 1, 1]} : vector<8x8x8xbf16> to vector<2x8x8xbf16>
    %114 = vector.shape_cast %113 : vector<2x8x8xbf16> to vector<16x8xbf16>
    %115 = vector.extract_strided_slice %96 {offsets = [24, 0], sizes = [8, 32], strides = [1, 1]} : vector<32x32xbf16> to vector<8x32xbf16>
    %cst_25 = arith.constant dense<0.000000e+00> : vector<16x32xf32>
    %116 = tpu.matmul %114, %115, %cst_25 {dimension_numbers = #tpu.dot_dimension_numbers<[1], [0], [0], [1], [0, 0, 1, 1], [], []>} : vector<16x8xbf16>, vector<8x32xbf16>, vector<16x32xf32> -> vector<16x32xf32>
    %117 = arith.addf %112, %116 : vector<16x32xf32>
    %118 = arith.addf %4, %117 : vector<16x32xf32>
    %119 = vector.broadcast %10 : vector<1x32xf32> to vector<16x32xf32>
    %120 = arith.addf %118, %119 : vector<16x32xf32>
    %cst_26 = arith.constant dense<0.000000e+00> : vector<16xf32>
    %121 = vector.multi_reduction <add>, %120, %cst_26 [1] : vector<16x32xf32> to vector<16xf32>
    %122 = vector.shape_cast %121 : vector<16xf32> to vector<16x1xf32>
    %cst_27 = arith.constant 3.200000e+01 : f32
    %123 = vector.broadcast %cst_27 : f32 to vector<16x1xf32>
    %124 = arith.divf %122, %123 : vector<16x1xf32>
    %125 = vector.broadcast %124 : vector<16x1xf32> to vector<16x32xf32>
    %126 = arith.subf %120, %125 : vector<16x32xf32>
    %127 = vector.broadcast %124 : vector<16x1xf32> to vector<16x32xf32>
    %128 = arith.subf %120, %127 : vector<16x32xf32>
    %129 = arith.mulf %126, %128 : vector<16x32xf32>
    %cst_28 = arith.constant dense<0.000000e+00> : vector<16xf32>
    %130 = vector.multi_reduction <add>, %129, %cst_28 [1] : vector<16x32xf32> to vector<16xf32>
    %131 = vector.shape_cast %130 : vector<16xf32> to vector<16x1xf32>
    %cst_29 = arith.constant 3.200000e+01 : f32
    %132 = vector.broadcast %cst_29 : f32 to vector<16x1xf32>
    %133 = arith.divf %131, %132 : vector<16x1xf32>
    %134 = vector.broadcast %124 : vector<16x1xf32> to vector<16x32xf32>
    %135 = arith.subf %120, %134 : vector<16x32xf32>
    %cst_30 = arith.constant 9.99999974E-6 : f32
    %136 = vector.broadcast %cst_30 : f32 to vector<16x1xf32>
    %137 = arith.addf %133, %136 : vector<16x1xf32>
    %138 = math.rsqrt %137 : vector<16x1xf32>
    %139 = vector.broadcast %138 : vector<16x1xf32> to vector<16x32xf32>
    %140 = arith.mulf %135, %139 : vector<16x32xf32>
    %141 = vector.broadcast %11 : vector<1x32xf32> to vector<16x32xf32>
    %142 = arith.mulf %140, %141 : vector<16x32xf32>
    %143 = vector.broadcast %12 : vector<1x32xf32> to vector<16x32xf32>
    %144 = arith.addf %142, %143 : vector<16x32xf32>
    %145 = arith.truncf %144 : vector<16x32xf32> to vector<16x32xbf16>
    %c0_31 = arith.constant 0 : index
    %c0_32 = arith.constant 0 : index
    %c0_33 = arith.constant 0 : index
    %146 = vector.load %arg3[%c0_31, %c0_32, %c0_33] : memref<2x32x128xbf16, #tpu.memory_space<vmem>>, vector<1x32x128xbf16>
    %147 = vector.shape_cast %146 : vector<1x32x128xbf16> to vector<32x128xbf16>
    %cst_34 = arith.constant dense<0.000000e+00> : vector<16x128xf32>
    %148 = tpu.matmul %145, %147, %cst_34 {dimension_numbers = #tpu.dot_dimension_numbers<[1], [0], [0], [1], [0, 0, 1, 1], [], []>} : vector<16x32xbf16>, vector<32x128xbf16>, vector<16x128xf32> -> vector<16x128xf32>
    %149 = vector.broadcast %13 : vector<1x128xf32> to vector<16x128xf32>
    %150 = arith.addf %148, %149 : vector<16x128xf32>
    %cst_35 = arith.constant 5.000000e-01 : f32
    %151 = vector.broadcast %cst_35 : f32 to vector<16x128xf32>
    %152 = arith.mulf %151, %150 : vector<16x128xf32>
    %cst_36 = arith.constant 4.471500e-02 : f32
    %153 = vector.broadcast %cst_36 : f32 to vector<16x128xf32>
    %154 = arith.mulf %153, %150 : vector<16x128xf32>
    %155 = arith.mulf %154, %150 : vector<16x128xf32>
    %156 = arith.mulf %155, %150 : vector<16x128xf32>
    %157 = arith.addf %150, %156 : vector<16x128xf32>
    %cst_37 = arith.constant 0.797884583 : f32
    %158 = vector.broadcast %cst_37 : f32 to vector<16x128xf32>
    %159 = arith.mulf %158, %157 : vector<16x128xf32>
    %160 = math.tanh %159 : vector<16x128xf32>
    %cst_38 = arith.constant 1.000000e+00 : f32
    %161 = vector.broadcast %cst_38 : f32 to vector<16x128xf32>
    %162 = arith.addf %161, %160 : vector<16x128xf32>
    %163 = arith.mulf %152, %162 : vector<16x128xf32>
    %164 = arith.truncf %163 : vector<16x128xf32> to vector<16x128xbf16>
    %c0_39 = arith.constant 0 : index
    %c0_40 = arith.constant 0 : index
    %c0_41 = arith.constant 0 : index
    %165 = vector.load %arg4[%c0_39, %c0_40, %c0_41] : memref<2x128x32xbf16, #tpu.memory_space<vmem>>, vector<1x128x32xbf16>
    %166 = vector.shape_cast %165 : vector<1x128x32xbf16> to vector<128x32xbf16>
    %cst_42 = arith.constant dense<0.000000e+00> : vector<16x32xf32>
    %167 = tpu.matmul %164, %166, %cst_42 {dimension_numbers = #tpu.dot_dimension_numbers<[1], [0], [0], [1], [0, 0, 1, 1], [], []>} : vector<16x128xbf16>, vector<128x32xbf16>, vector<16x32xf32> -> vector<16x32xf32>
    %168 = vector.broadcast %14 : vector<1x32xf32> to vector<16x32xf32>
    %169 = arith.addf %167, %168 : vector<16x32xf32>
    %170 = arith.addf %120, %169 : vector<16x32xf32>
    %c1 = arith.constant 1 : index
    %c0_43 = arith.constant 0 : index
    %c0_44 = arith.constant 0 : index
    %171 = vector.load %arg5[%c1, %c0_43, %c0_44] : memref<3x8x128xf32, #tpu.memory_space<vmem>>, vector<1x8x128xf32>
    %172 = vector.shape_cast %171 : vector<1x8x128xf32> to vector<8x128xf32>
    %173 = vector.extract_strided_slice %172 {offsets = [0, 0], sizes = [1, 32], strides = [1, 1]} : vector<8x128xf32> to vector<1x32xf32>
    %174 = vector.extract_strided_slice %172 {offsets = [1, 0], sizes = [1, 32], strides = [1, 1]} : vector<8x128xf32> to vector<1x32xf32>
    %175 = vector.extract_strided_slice %172 {offsets = [2, 0], sizes = [1, 96], strides = [1, 1]} : vector<8x128xf32> to vector<1x96xf32>
    %176 = vector.extract_strided_slice %172 {offsets = [3, 0], sizes = [1, 32], strides = [1, 1]} : vector<8x128xf32> to vector<1x32xf32>
    %177 = vector.extract_strided_slice %172 {offsets = [4, 0], sizes = [1, 32], strides = [1, 1]} : vector<8x128xf32> to vector<1x32xf32>
    %178 = vector.extract_strided_slice %172 {offsets = [5, 0], sizes = [1, 32], strides = [1, 1]} : vector<8x128xf32> to vector<1x32xf32>
    %179 = vector.extract_strided_slice %172 {offsets = [6, 0], sizes = [1, 128], strides = [1, 1]} : vector<8x128xf32> to vector<1x128xf32>
    %180 = vector.extract_strided_slice %172 {offsets = [7, 0], sizes = [1, 32], strides = [1, 1]} : vector<8x128xf32> to vector<1x32xf32>
    %cst_45 = arith.constant dense<0.000000e+00> : vector<16xf32>
    %181 = vector.multi_reduction <add>, %170, %cst_45 [1] : vector<16x32xf32> to vector<16xf32>
    %182 = vector.shape_cast %181 : vector<16xf32> to vector<16x1xf32>
    %cst_46 = arith.constant 3.200000e+01 : f32
    %183 = vector.broadcast %cst_46 : f32 to vector<16x1xf32>
    %184 = arith.divf %182, %183 : vector<16x1xf32>
    %185 = vector.broadcast %184 : vector<16x1xf32> to vector<16x32xf32>
    %186 = arith.subf %170, %185 : vector<16x32xf32>
    %187 = vector.broadcast %184 : vector<16x1xf32> to vector<16x32xf32>
    %188 = arith.subf %170, %187 : vector<16x32xf32>
    %189 = arith.mulf %186, %188 : vector<16x32xf32>
    %cst_47 = arith.constant dense<0.000000e+00> : vector<16xf32>
    %190 = vector.multi_reduction <add>, %189, %cst_47 [1] : vector<16x32xf32> to vector<16xf32>
    %191 = vector.shape_cast %190 : vector<16xf32> to vector<16x1xf32>
    %cst_48 = arith.constant 3.200000e+01 : f32
    %192 = vector.broadcast %cst_48 : f32 to vector<16x1xf32>
    %193 = arith.divf %191, %192 : vector<16x1xf32>
    %194 = vector.broadcast %184 : vector<16x1xf32> to vector<16x32xf32>
    %195 = arith.subf %170, %194 : vector<16x32xf32>
    %cst_49 = arith.constant 9.99999974E-6 : f32
    %196 = vector.broadcast %cst_49 : f32 to vector<16x1xf32>
    %197 = arith.addf %193, %196 : vector<16x1xf32>
    %198 = math.rsqrt %197 : vector<16x1xf32>
    %199 = vector.broadcast %198 : vector<16x1xf32> to vector<16x32xf32>
    %200 = arith.mulf %195, %199 : vector<16x32xf32>
    %201 = vector.broadcast %173 : vector<1x32xf32> to vector<16x32xf32>
    %202 = arith.mulf %200, %201 : vector<16x32xf32>
    %203 = vector.broadcast %174 : vector<1x32xf32> to vector<16x32xf32>
    %204 = arith.addf %202, %203 : vector<16x32xf32>
    %205 = arith.truncf %204 : vector<16x32xf32> to vector<16x32xbf16>
    %c1_50 = arith.constant 1 : index
    %c0_51 = arith.constant 0 : index
    %c0_52 = arith.constant 0 : index
    %206 = vector.load %arg1[%c1_50, %c0_51, %c0_52] : memref<2x32x96xbf16, #tpu.memory_space<vmem>>, vector<1x32x96xbf16>
    %207 = vector.shape_cast %206 : vector<1x32x96xbf16> to vector<32x96xbf16>
    %cst_53 = arith.constant dense<0.000000e+00> : vector<16x96xf32>
    %208 = tpu.matmul %205, %207, %cst_53 {dimension_numbers = #tpu.dot_dimension_numbers<[1], [0], [0], [1], [0, 0, 1, 1], [], []>} : vector<16x32xbf16>, vector<32x96xbf16>, vector<16x96xf32> -> vector<16x96xf32>
    %209 = vector.broadcast %175 : vector<1x96xf32> to vector<16x96xf32>
    %210 = arith.addf %208, %209 : vector<16x96xf32>
    %211 = vector.extract_strided_slice %210 {offsets = [0, 0], sizes = [16, 8], strides = [1, 1]} : vector<16x96xf32> to vector<16x8xf32>
    %212 = vector.shape_cast %211 : vector<16x8xf32> to vector<2x8x8xf32>
    %213 = vector.extract_strided_slice %210 {offsets = [0, 32], sizes = [16, 8], strides = [1, 1]} : vector<16x96xf32> to vector<16x8xf32>
    %214 = vector.shape_cast %213 : vector<16x8xf32> to vector<2x8x8xf32>
    %215 = vector.extract_strided_slice %210 {offsets = [0, 64], sizes = [16, 8], strides = [1, 1]} : vector<16x96xf32> to vector<16x8xf32>
    %216 = vector.shape_cast %215 : vector<16x8xf32> to vector<2x8x8xf32>
    %217 = vector.extract_strided_slice %210 {offsets = [0, 8], sizes = [16, 8], strides = [1, 1]} : vector<16x96xf32> to vector<16x8xf32>
    %218 = vector.shape_cast %217 : vector<16x8xf32> to vector<2x8x8xf32>
    %219 = vector.extract_strided_slice %210 {offsets = [0, 40], sizes = [16, 8], strides = [1, 1]} : vector<16x96xf32> to vector<16x8xf32>
    %220 = vector.shape_cast %219 : vector<16x8xf32> to vector<2x8x8xf32>
    %221 = vector.extract_strided_slice %210 {offsets = [0, 72], sizes = [16, 8], strides = [1, 1]} : vector<16x96xf32> to vector<16x8xf32>
    %222 = vector.shape_cast %221 : vector<16x8xf32> to vector<2x8x8xf32>
    %223 = vector.extract_strided_slice %210 {offsets = [0, 16], sizes = [16, 8], strides = [1, 1]} : vector<16x96xf32> to vector<16x8xf32>
    %224 = vector.shape_cast %223 : vector<16x8xf32> to vector<2x8x8xf32>
    %225 = vector.extract_strided_slice %210 {offsets = [0, 48], sizes = [16, 8], strides = [1, 1]} : vector<16x96xf32> to vector<16x8xf32>
    %226 = vector.shape_cast %225 : vector<16x8xf32> to vector<2x8x8xf32>
    %227 = vector.extract_strided_slice %210 {offsets = [0, 80], sizes = [16, 8], strides = [1, 1]} : vector<16x96xf32> to vector<16x8xf32>
    %228 = vector.shape_cast %227 : vector<16x8xf32> to vector<2x8x8xf32>
    %229 = vector.extract_strided_slice %210 {offsets = [0, 24], sizes = [16, 8], strides = [1, 1]} : vector<16x96xf32> to vector<16x8xf32>
    %230 = vector.shape_cast %229 : vector<16x8xf32> to vector<2x8x8xf32>
    %231 = vector.extract_strided_slice %210 {offsets = [0, 56], sizes = [16, 8], strides = [1, 1]} : vector<16x96xf32> to vector<16x8xf32>
    %232 = vector.shape_cast %231 : vector<16x8xf32> to vector<2x8x8xf32>
    %233 = vector.extract_strided_slice %210 {offsets = [0, 88], sizes = [16, 8], strides = [1, 1]} : vector<16x96xf32> to vector<16x8xf32>
    %234 = vector.shape_cast %233 : vector<16x8xf32> to vector<2x8x8xf32>
    %235 = tpu.concatenate %212, %218, %224, %230 in 0 : vector<2x8x8xf32>, vector<2x8x8xf32>, vector<2x8x8xf32>, vector<2x8x8xf32> -> vector<8x8x8xf32>
    %236 = arith.truncf %235 : vector<8x8x8xf32> to vector<8x8x8xbf16>
    %237 = tpu.concatenate %214, %220, %226, %232 in 0 : vector<2x8x8xf32>, vector<2x8x8xf32>, vector<2x8x8xf32>, vector<2x8x8xf32> -> vector<8x8x8xf32>
    %238 = arith.truncf %237 : vector<8x8x8xf32> to vector<8x8x8xbf16>
    %239 = tpu.concatenate %216, %222, %228, %234 in 0 : vector<2x8x8xf32>, vector<2x8x8xf32>, vector<2x8x8xf32>, vector<2x8x8xf32> -> vector<8x8x8xf32>
    %240 = arith.truncf %239 : vector<8x8x8xf32> to vector<8x8x8xbf16>
    "tpu.trace_start"() <{level = 10 : i32, message = "bqd,bkd->bqk"}> : () -> ()
    %cst_54 = arith.constant dense<0.000000e+00> : vector<8x8x8xf32>
    %241 = tpu.matmul %236, %238, %cst_54 {dimension_numbers = #tpu.dot_dimension_numbers<[2], [2], [1], [1], [0, 0, 0, 1, 1, 1], [0], [0]>} : vector<8x8x8xbf16>, vector<8x8x8xbf16>, vector<8x8x8xf32> -> vector<8x8x8xf32>
    "tpu.trace_stop"() : () -> ()
    %cst_55 = arith.constant 0.353553385 : f32
    %242 = vector.broadcast %cst_55 : f32 to vector<8x8x8xf32>
    %243 = arith.mulf %241, %242 : vector<8x8x8xf32>
    %cst_56 = arith.constant -1.000000e+30 : f32
    %244 = vector.shape_cast %3 : vector<1x8x8xi1> to vector<1x8x8xi1>
    %245 = vector.broadcast %244 : vector<1x8x8xi1> to vector<8x8x8xi1>
    %246 = vector.broadcast %cst_56 : f32 to vector<8x8x8xf32>
    %247 = arith.select %245, %243, %246 : vector<8x8x8xi1>, vector<8x8x8xf32>
    %cst_57 = arith.constant dense<0xFF800000> : vector<8x8xf32>
    %248 = vector.multi_reduction <maximumf>, %247, %cst_57 [2] : vector<8x8x8xf32> to vector<8x8xf32>
    %249 = vector.shape_cast %248 : vector<8x8xf32> to vector<8x8x1xf32>
    %250 = vector.broadcast %249 : vector<8x8x1xf32> to vector<8x8x8xf32>
    %251 = arith.subf %247, %250 : vector<8x8x8xf32>
    %252 = math.exp %251 : vector<8x8x8xf32>
    %cst_58 = arith.constant dense<0.000000e+00> : vector<8x8xf32>
    %253 = vector.multi_reduction <add>, %252, %cst_58 [2] : vector<8x8x8xf32> to vector<8x8xf32>
    %254 = vector.shape_cast %253 : vector<8x8xf32> to vector<8x8x1xf32>
    %255 = tpu.reciprocal %254 {approx = true} : vector<8x8x1xf32> -> vector<8x8x1xf32>
    %256 = vector.broadcast %255 : vector<8x8x1xf32> to vector<8x8x8xf32>
    %257 = arith.mulf %252, %256 : vector<8x8x8xf32>
    %258 = arith.truncf %257 : vector<8x8x8xf32> to vector<8x8x8xbf16>
    "tpu.trace_start"() <{level = 10 : i32, message = "bqk,bkd->bqd"}> : () -> ()
    %cst_59 = arith.constant dense<0.000000e+00> : vector<8x8x8xf32>
    %259 = tpu.matmul %258, %240, %cst_59 {dimension_numbers = #tpu.dot_dimension_numbers<[2], [1], [1], [2], [0, 0, 0, 1, 1, 2], [0], [0]>} : vector<8x8x8xbf16>, vector<8x8x8xbf16>, vector<8x8x8xf32> -> vector<8x8x8xf32>
    "tpu.trace_stop"() : () -> ()
    %260 = arith.truncf %259 : vector<8x8x8xf32> to vector<8x8x8xbf16>
    %c1_60 = arith.constant 1 : index
    %c0_61 = arith.constant 0 : index
    %c0_62 = arith.constant 0 : index
    %261 = vector.load %arg2[%c1_60, %c0_61, %c0_62] : memref<2x32x32xbf16, #tpu.memory_space<vmem>>, vector<1x32x32xbf16>
    %262 = vector.shape_cast %261 : vector<1x32x32xbf16> to vector<32x32xbf16>
    %cst_63 = arith.constant 0.000000e+00 : f32
    %263 = vector.broadcast %cst_63 : f32 to vector<16x32xf32>
    %264 = vector.extract_strided_slice %260 {offsets = [0, 0, 0], sizes = [2, 8, 8], strides = [1, 1, 1]} : vector<8x8x8xbf16> to vector<2x8x8xbf16>
    %265 = vector.shape_cast %264 : vector<2x8x8xbf16> to vector<16x8xbf16>
    %266 = vector.extract_strided_slice %262 {offsets = [0, 0], sizes = [8, 32], strides = [1, 1]} : vector<32x32xbf16> to vector<8x32xbf16>
    %cst_64 = arith.constant dense<0.000000e+00> : vector<16x32xf32>
    %267 = tpu.matmul %265, %266, %cst_64 {dimension_numbers = #tpu.dot_dimension_numbers<[1], [0], [0], [1], [0, 0, 1, 1], [], []>} : vector<16x8xbf16>, vector<8x32xbf16>, vector<16x32xf32> -> vector<16x32xf32>
    %268 = arith.addf %263, %267 : vector<16x32xf32>
    %269 = vector.extract_strided_slice %260 {offsets = [2, 0, 0], sizes = [2, 8, 8], strides = [1, 1, 1]} : vector<8x8x8xbf16> to vector<2x8x8xbf16>
    %270 = vector.shape_cast %269 : vector<2x8x8xbf16> to vector<16x8xbf16>
    %271 = vector.extract_strided_slice %262 {offsets = [8, 0], sizes = [8, 32], strides = [1, 1]} : vector<32x32xbf16> to vector<8x32xbf16>
    %cst_65 = arith.constant dense<0.000000e+00> : vector<16x32xf32>
    %272 = tpu.matmul %270, %271, %cst_65 {dimension_numbers = #tpu.dot_dimension_numbers<[1], [0], [0], [1], [0, 0, 1, 1], [], []>} : vector<16x8xbf16>, vector<8x32xbf16>, vector<16x32xf32> -> vector<16x32xf32>
    %273 = arith.addf %268, %272 : vector<16x32xf32>
    %274 = vector.extract_strided_slice %260 {offsets = [4, 0, 0], sizes = [2, 8, 8], strides = [1, 1, 1]} : vector<8x8x8xbf16> to vector<2x8x8xbf16>
    %275 = vector.shape_cast %274 : vector<2x8x8xbf16> to vector<16x8xbf16>
    %276 = vector.extract_strided_slice %262 {offsets = [16, 0], sizes = [8, 32], strides = [1, 1]} : vector<32x32xbf16> to vector<8x32xbf16>
    %cst_66 = arith.constant dense<0.000000e+00> : vector<16x32xf32>
    %277 = tpu.matmul %275, %276, %cst_66 {dimension_numbers = #tpu.dot_dimension_numbers<[1], [0], [0], [1], [0, 0, 1, 1], [], []>} : vector<16x8xbf16>, vector<8x32xbf16>, vector<16x32xf32> -> vector<16x32xf32>
    %278 = arith.addf %273, %277 : vector<16x32xf32>
    %279 = vector.extract_strided_slice %260 {offsets = [6, 0, 0], sizes = [2, 8, 8], strides = [1, 1, 1]} : vector<8x8x8xbf16> to vector<2x8x8xbf16>
    %280 = vector.shape_cast %279 : vector<2x8x8xbf16> to vector<16x8xbf16>
    %281 = vector.extract_strided_slice %262 {offsets = [24, 0], sizes = [8, 32], strides = [1, 1]} : vector<32x32xbf16> to vector<8x32xbf16>
    %cst_67 = arith.constant dense<0.000000e+00> : vector<16x32xf32>
    %282 = tpu.matmul %280, %281, %cst_67 {dimension_numbers = #tpu.dot_dimension_numbers<[1], [0], [0], [1], [0, 0, 1, 1], [], []>} : vector<16x8xbf16>, vector<8x32xbf16>, vector<16x32xf32> -> vector<16x32xf32>
    %283 = arith.addf %278, %282 : vector<16x32xf32>
    %284 = arith.addf %170, %283 : vector<16x32xf32>
    %285 = vector.broadcast %176 : vector<1x32xf32> to vector<16x32xf32>
    %286 = arith.addf %284, %285 : vector<16x32xf32>
    %cst_68 = arith.constant dense<0.000000e+00> : vector<16xf32>
    %287 = vector.multi_reduction <add>, %286, %cst_68 [1] : vector<16x32xf32> to vector<16xf32>
    %288 = vector.shape_cast %287 : vector<16xf32> to vector<16x1xf32>
    %cst_69 = arith.constant 3.200000e+01 : f32
    %289 = vector.broadcast %cst_69 : f32 to vector<16x1xf32>
    %290 = arith.divf %288, %289 : vector<16x1xf32>
    %291 = vector.broadcast %290 : vector<16x1xf32> to vector<16x32xf32>
    %292 = arith.subf %286, %291 : vector<16x32xf32>
    %293 = vector.broadcast %290 : vector<16x1xf32> to vector<16x32xf32>
    %294 = arith.subf %286, %293 : vector<16x32xf32>
    %295 = arith.mulf %292, %294 : vector<16x32xf32>
    %cst_70 = arith.constant dense<0.000000e+00> : vector<16xf32>
    %296 = vector.multi_reduction <add>, %295, %cst_70 [1] : vector<16x32xf32> to vector<16xf32>
    %297 = vector.shape_cast %296 : vector<16xf32> to vector<16x1xf32>
    %cst_71 = arith.constant 3.200000e+01 : f32
    %298 = vector.broadcast %cst_71 : f32 to vector<16x1xf32>
    %299 = arith.divf %297, %298 : vector<16x1xf32>
    %300 = vector.broadcast %290 : vector<16x1xf32> to vector<16x32xf32>
    %301 = arith.subf %286, %300 : vector<16x32xf32>
    %cst_72 = arith.constant 9.99999974E-6 : f32
    %302 = vector.broadcast %cst_72 : f32 to vector<16x1xf32>
    %303 = arith.addf %299, %302 : vector<16x1xf32>
    %304 = math.rsqrt %303 : vector<16x1xf32>
    %305 = vector.broadcast %304 : vector<16x1xf32> to vector<16x32xf32>
    %306 = arith.mulf %301, %305 : vector<16x32xf32>
    %307 = vector.broadcast %177 : vector<1x32xf32> to vector<16x32xf32>
    %308 = arith.mulf %306, %307 : vector<16x32xf32>
    %309 = vector.broadcast %178 : vector<1x32xf32> to vector<16x32xf32>
    %310 = arith.addf %308, %309 : vector<16x32xf32>
    %311 = arith.truncf %310 : vector<16x32xf32> to vector<16x32xbf16>
    %c1_73 = arith.constant 1 : index
    %c0_74 = arith.constant 0 : index
    %c0_75 = arith.constant 0 : index
    %312 = vector.load %arg3[%c1_73, %c0_74, %c0_75] : memref<2x32x128xbf16, #tpu.memory_space<vmem>>, vector<1x32x128xbf16>
    %313 = vector.shape_cast %312 : vector<1x32x128xbf16> to vector<32x128xbf16>
    %cst_76 = arith.constant dense<0.000000e+00> : vector<16x128xf32>
    %314 = tpu.matmul %311, %313, %cst_76 {dimension_numbers = #tpu.dot_dimension_numbers<[1], [0], [0], [1], [0, 0, 1, 1], [], []>} : vector<16x32xbf16>, vector<32x128xbf16>, vector<16x128xf32> -> vector<16x128xf32>
    %315 = vector.broadcast %179 : vector<1x128xf32> to vector<16x128xf32>
    %316 = arith.addf %314, %315 : vector<16x128xf32>
    %cst_77 = arith.constant 5.000000e-01 : f32
    %317 = vector.broadcast %cst_77 : f32 to vector<16x128xf32>
    %318 = arith.mulf %317, %316 : vector<16x128xf32>
    %cst_78 = arith.constant 4.471500e-02 : f32
    %319 = vector.broadcast %cst_78 : f32 to vector<16x128xf32>
    %320 = arith.mulf %319, %316 : vector<16x128xf32>
    %321 = arith.mulf %320, %316 : vector<16x128xf32>
    %322 = arith.mulf %321, %316 : vector<16x128xf32>
    %323 = arith.addf %316, %322 : vector<16x128xf32>
    %cst_79 = arith.constant 0.797884583 : f32
    %324 = vector.broadcast %cst_79 : f32 to vector<16x128xf32>
    %325 = arith.mulf %324, %323 : vector<16x128xf32>
    %326 = math.tanh %325 : vector<16x128xf32>
    %cst_80 = arith.constant 1.000000e+00 : f32
    %327 = vector.broadcast %cst_80 : f32 to vector<16x128xf32>
    %328 = arith.addf %327, %326 : vector<16x128xf32>
    %329 = arith.mulf %318, %328 : vector<16x128xf32>
    %330 = arith.truncf %329 : vector<16x128xf32> to vector<16x128xbf16>
    %c1_81 = arith.constant 1 : index
    %c0_82 = arith.constant 0 : index
    %c0_83 = arith.constant 0 : index
    %331 = vector.load %arg4[%c1_81, %c0_82, %c0_83] : memref<2x128x32xbf16, #tpu.memory_space<vmem>>, vector<1x128x32xbf16>
    %332 = vector.shape_cast %331 : vector<1x128x32xbf16> to vector<128x32xbf16>
    %cst_84 = arith.constant dense<0.000000e+00> : vector<16x32xf32>
    %333 = tpu.matmul %330, %332, %cst_84 {dimension_numbers = #tpu.dot_dimension_numbers<[1], [0], [0], [1], [0, 0, 1, 1], [], []>} : vector<16x128xbf16>, vector<128x32xbf16>, vector<16x32xf32> -> vector<16x32xf32>
    %334 = vector.broadcast %180 : vector<1x32xf32> to vector<16x32xf32>
    %335 = arith.addf %333, %334 : vector<16x32xf32>
    %336 = arith.addf %286, %335 : vector<16x32xf32>
    %c2 = arith.constant 2 : index
    %c0_85 = arith.constant 0 : index
    %c0_86 = arith.constant 0 : index
    %337 = vector.load %arg5[%c2, %c0_85, %c0_86] : memref<3x8x128xf32, #tpu.memory_space<vmem>>, vector<1x8x128xf32>
    %338 = vector.shape_cast %337 : vector<1x8x128xf32> to vector<8x128xf32>
    %339 = vector.extract_strided_slice %338 {offsets = [0, 0], sizes = [1, 32], strides = [1, 1]} : vector<8x128xf32> to vector<1x32xf32>
    %340 = vector.extract_strided_slice %338 {offsets = [1, 0], sizes = [1, 32], strides = [1, 1]} : vector<8x128xf32> to vector<1x32xf32>
    %cst_87 = arith.constant dense<0.000000e+00> : vector<16xf32>
    %341 = vector.multi_reduction <add>, %336, %cst_87 [1] : vector<16x32xf32> to vector<16xf32>
    %342 = vector.shape_cast %341 : vector<16xf32> to vector<16x1xf32>
    %cst_88 = arith.constant 3.200000e+01 : f32
    %343 = vector.broadcast %cst_88 : f32 to vector<16x1xf32>
    %344 = arith.divf %342, %343 : vector<16x1xf32>
    %345 = vector.broadcast %344 : vector<16x1xf32> to vector<16x32xf32>
    %346 = arith.subf %336, %345 : vector<16x32xf32>
    %347 = vector.broadcast %344 : vector<16x1xf32> to vector<16x32xf32>
    %348 = arith.subf %336, %347 : vector<16x32xf32>
    %349 = arith.mulf %346, %348 : vector<16x32xf32>
    %cst_89 = arith.constant dense<0.000000e+00> : vector<16xf32>
    %350 = vector.multi_reduction <add>, %349, %cst_89 [1] : vector<16x32xf32> to vector<16xf32>
    %351 = vector.shape_cast %350 : vector<16xf32> to vector<16x1xf32>
    %cst_90 = arith.constant 3.200000e+01 : f32
    %352 = vector.broadcast %cst_90 : f32 to vector<16x1xf32>
    %353 = arith.divf %351, %352 : vector<16x1xf32>
    %354 = vector.broadcast %344 : vector<16x1xf32> to vector<16x32xf32>
    %355 = arith.subf %336, %354 : vector<16x32xf32>
    %cst_91 = arith.constant 9.99999974E-6 : f32
    %356 = vector.broadcast %cst_91 : f32 to vector<16x1xf32>
    %357 = arith.addf %353, %356 : vector<16x1xf32>
    %358 = math.rsqrt %357 : vector<16x1xf32>
    %359 = vector.broadcast %358 : vector<16x1xf32> to vector<16x32xf32>
    %360 = arith.mulf %355, %359 : vector<16x32xf32>
    %361 = vector.broadcast %339 : vector<1x32xf32> to vector<16x32xf32>
    %362 = arith.mulf %360, %361 : vector<16x32xf32>
    %363 = vector.broadcast %340 : vector<1x32xf32> to vector<16x32xf32>
    %364 = arith.addf %362, %363 : vector<16x32xf32>
    %cst_92 = arith.constant 0.000000e+00 : f32
    %365 = vector.broadcast %cst_92 : f32 to vector<16x96xf32>
    %366 = tpu.concatenate %364, %365 in 1 : vector<16x32xf32>, vector<16x96xf32> -> vector<16x128xf32>
    %c0_93 = arith.constant 0 : index
    %c0_94 = arith.constant 0 : index
    %367 = vector.load %arg6[%c0_93, %c0_94] : memref<16x128xf32, #tpu.memory_space<vmem>>, vector<16x128xf32>
    tpu.vector_store %arg6[%c0_93, %c0_94], %366 {strides = array<i32>} : memref<16x128xf32, #tpu.memory_space<vmem>>, vector<16x128xf32>,
    return
  }
}

</mosaic_0001>

<llo_original>
// kernel: transformer_forward.1
$region0: #{transformer_forward.1}
  #allocation0 [shape = 'u32[]', space=smem, size = 0x4, offset = 0x4, fixed_abs, tag = 'smem constant byte address 0x4 - core index']
  #allocation1 [shape = 'u32[144,128]{1,0:T(1,128)}', space=vmem, size = 0x12000, scoped, tag = 'internal scratch']
  %s0 = inlined_call_operand.vmem [shape: f32[16,32], index: 0, kind: input, shape index: {}]
  %s1 = inlined_call_operand.vmem [shape: bf16[2,32,96], index: 1, kind: input, shape index: {}]
  %s2 = inlined_call_operand.vmem [shape: bf16[2,32,32], index: 2, kind: input, shape index: {}]
  %s3 = inlined_call_operand.vmem [shape: bf16[2,32,128], index: 3, kind: input, shape index: {}]
  %s4 = inlined_call_operand.vmem [shape: bf16[2,128,32], index: 4, kind: input, shape index: {}]
  %s5 = inlined_call_operand.vmem [shape: f32[3,8,128], index: 5, kind: input, shape index: {}]
  %s6 = inlined_call_operand.vmem [shape: f32[16,128], index: 6, kind: output, shape index: {}]
  %s7 = sld [smem:[#allocation0]]
  $region34: #{transformer_forward.1} parent=0
    _
  %s9 = ssub.s32 1, %s7
  %s10 = scalar_select 0, %s9, %s7
  // Predicated region
  $region2: #{transformer_forward.1} parent=0 // pred_check
    _
  $region3: #{transformer_forward.1} parent=0 // pred_check_branch
    %12 = sbr.rel (0) target = $region5
  $region4: #{transformer_forward.1} parent=0 // pred_region
    _
  $region5: #{transformer_forward.1} parent=0 // pred_fallthru
    _
  // Predicated region
  $region6: #{transformer_forward.1} parent=0 // pred_check
    _
  $region7: #{transformer_forward.1} parent=0 // pred_check_branch
    %14 = sbr.rel (0) target = $region9
  $region8: #{transformer_forward.1} parent=0 // pred_region
    _
  $region9: #{transformer_forward.1} parent=0 // pred_fallthru
    _
  // Predicated region
  $region10: #{transformer_forward.1} parent=0 // pred_check
    _
  $region11: #{transformer_forward.1} parent=0 // pred_check_branch
    %16 = sbr.rel (0) target = $region13
  $region12: #{transformer_forward.1} parent=0 // pred_region
    _
  $region13: #{transformer_forward.1} parent=0 // pred_fallthru
    _
  // Predicated region
  $region14: #{transformer_forward.1} parent=0 // pred_check
    _
  $region15: #{transformer_forward.1} parent=0 // pred_check_branch
    %18 = sbr.rel (0) target = $region17
  $region16: #{transformer_forward.1} parent=0 // pred_region
    _
  $region17: #{transformer_forward.1} parent=0 // pred_fallthru
    _
  // Predicated region
  $region18: #{transformer_forward.1} parent=0 // pred_check
    _
  $region19: #{transformer_forward.1} parent=0 // pred_check_branch
    %20 = sbr.rel (0) target = $region21
  $region20: #{transformer_forward.1} parent=0 // pred_region
    _
  $region21: #{transformer_forward.1} parent=0 // pred_fallthru
    _
  // Predicated region
  $region22: #{transformer_forward.1} parent=0 // pred_check
    _
  $region23: #{transformer_forward.1} parent=0 // pred_check_branch
    %22 = sbr.rel (0) target = $region25
  $region24: #{transformer_forward.1} parent=0 // pred_region
    _
  $region25: #{transformer_forward.1} parent=0 // pred_fallthru
    _
  %v24 = vlaneseq
  %v25 = vshrl.u32 %v24, 7
  %v26 = vlaneseq
  %v27 = vand.u32 %v26, 127
  %vm28 = vcmp.le.s32.totalorder %v27, %v25
  %v29 = vld [vmem:[%s0] sm:$0xff]
  %v30 = vld [vmem:[%s0 + $0x8] sm:$0xff]
  %v31 = vld [vmem:[%s5] sm:$0xff]
  %vm32 = vcmask 261120
  %v33 = vsel %vm32, %v29, 0.0
  %34 = vadd.xlane.f32.xlu0 %v33
  %v35 = vpop.xlane.xlu0 %34
  %v36 = vsel %vm32, %v30, 0.0
  %37 = vadd.xlane.f32.xlu0 %v36
  %v38 = vpop.xlane.xlu0 %37
  %v39 = vrcp.pop 32.0
  %v40 = vmul.f32 %v35, %v39
  %v41 = vmul.f32 %v38, %v39
  %v42 = vsub.f32 %v29, %v40
  %v43 = vsub.f32 %v30, %v41
  %v44 = vmul.f32 %v42, %v42
  %v45 = vmul.f32 %v43, %v43
  %v46 = vsel %vm32, %v44, 0.0
  %47 = vadd.xlane.f32.xlu0 %v46
  %v48 = vpop.xlane.xlu0 %47
  %v49 = vsel %vm32, %v45, 0.0
  %50 = vadd.xlane.f32.xlu0 %v49
  %v51 = vpop.xlane.xlu0 %50
  %v52 = vmul.f32 %v48, %v39
  %v53 = vmul.f32 %v51, %v39
  %v54 = vadd.f32 %v52, 1e-05
  %v55 = vadd.f32 %v53, 1e-05
  %v56 = vrsqrt.pop %v54
  %v57 = vrsqrt.pop %v55
  %v58 = vmul.f32 %v42, %v56
  %v59 = vmul.f32 %v43, %v57
  %v60 = vlaneseq
  %v61 = vshrl.u32 %v60, 7
  %v62 = vsub.s32 0, %v61
  %v63 = vrot.slane %v31, %v62
  %v64 = vmul.f32 %v58, %v63
  %v65 = vmul.f32 %v59, %v63
  %v66 = vlaneseq
  %v67 = vshrl.u32 %v66, 7
  %v68 = vsub.s32 1, %v67
  %v69 = vrot.slane %v31, %v68
  %v70 = vadd.f32 %v64, %v69
  %v71 = vadd.f32 %v65, %v69
  %v72 = vpack.c.bf16 %v71, %v70
  %v73 = vld [vmem:[%s1] sm:$0xf]
  %v74 = vld [vmem:[%s1 + $0x4] sm:$0xf]
  %v75 = vld [vmem:[%s1 + $0x8] sm:$0xf]
  %v76 = vld [vmem:[%s1 + $0xc] sm:$0xf]
  %v77 = vlaneseq
  %v78 = vshrl.u32 %v77, 7
  %v79 = vsub.s32 2, %v78
  %v80 = vrot.slane %v31, %v79
  %v85 = vunpack.c.l.b16 %v73
  %v86 = vunpack.c.l.b16 %v74
  %v87 = vunpack.c.l.b16 %v75
  %v88 = vunpack.c.l.b16 %v76
  %v89 = vpack.c.b16 %v86, %v85
  %v90 = vpack.c.b16 %v88, %v87
  %v94 = vsel %vm32, %v72, 0
  %96 = vmatprep.subr.bf16.mxu0 0
  %97 = vmatpush1.bf16.msra.mxu0 %v89
  %98 = vmatprep.subr.bf16.mxu0 0
  %99 = vmatpush1.bf16.msra.mxu0 %v90
  %100 = vmatprep.subr.bf16.mxu0 0
  %101 = vmatpush1.bf16.msra.mxu0 0
  %102 = vmatprep.subr.bf16.mxu0 0
  %103 = vmatpush1.bf16.msra.mxu0 0
  %104 = vmatprep.subr.bf16.mxu0 0
  %105 = vmatpush1.bf16.msra.mxu0 0
  %106 = vmatprep.subr.bf16.mxu0 0
  %107 = vmatpush1.bf16.msra.mxu0 0
  %108 = vmatprep.subr.bf16.mxu0 0
  %109 = vmatpush1.bf16.msra.mxu0 0
  %110 = vmatprep.subr.bf16.mxu0 0
  %111 = vmatpush1.bf16.msra.mxu0 0
  %112 = vmatprep.subr.bf16.mxu0 0
  %113 = vmatpush1.bf16.msra.mxu0 0
  %114 = vmatprep.subr.bf16.mxu0 0
  %115 = vmatpush1.bf16.msra.mxu0 0
  %116 = vmatprep.subr.bf16.mxu0 0
  %117 = vmatpush1.bf16.msra.mxu0 0
  %118 = vmatprep.subr.bf16.mxu0 0
  %119 = vmatpush1.bf16.msra.mxu0 0
  %120 = vmatprep.subr.bf16.mxu0 0
  %121 = vmatpush1.bf16.msra.mxu0 0
  %122 = vmatprep.subr.bf16.mxu0 0
  %123 = vmatpush1.bf16.msra.mxu0 0
  %124 = vmatprep.subr.bf16.mxu0 0
  %125 = vmatpush1.bf16.msra.mxu0 0
  %126 = vmatprep.subr.bf16.mxu0 0
  %127 = vmatpush1.bf16.msra.mxu0 0
  %128 = vmatprep.mubr.bf16.mxu0 0
  %129 = vmatmul.mubr.bf16.gmra.mrb[0].mxu0 %v94
  %v130 = vpop.f32.mrb[0].mxu0
  %v131 = vadd.f32 %v80, %v130
  %v132 = vpop.f32.mrb[0].mxu0
  %v133 = vpop.f32.mrb[0].mxu0
  %v134 = vadd.f32 %v80, %v133
  %v135 = vpop.f32.mrb[0].mxu0
  %136 = vdwg.mxu0
  %139 = vrot.lane.b32.xlu0 %v131, 120
  %v140 = vpop.permute.xlu0 %139
  %141 = vrot.lane.b32.xlu0 %v134, 120
  %v142 = vpop.permute.xlu0 %141
  %145 = vrot.lane.b32.xlu0 %v131, 112
  %v146 = vpop.permute.xlu0 %145
  %147 = vrot.lane.b32.xlu0 %v134, 112
  %v148 = vpop.permute.xlu0 %147
  %151 = vrot.lane.b32.xlu0 %v131, 104
  %v152 = vpop.permute.xlu0 %151
  %153 = vrot.lane.b32.xlu0 %v134, 104
  %v154 = vpop.permute.xlu0 %153
  %v157 = vpack.c.bf16 %v131, %v131
  %v158 = vpack.c.bf16 %v134, %v134
  %v159 = vpack.c.bf16 %v140, %v140
  %v160 = vpack.c.bf16 %v142, %v142
  %v161 = vpack.c.bf16 %v146, %v146
  %v162 = vpack.c.bf16 %v148, %v148
  %v163 = vpack.c.bf16 %v152, %v152
  %v164 = vpack.c.bf16 %v154, %v154
  %166 = vrot.lane.b32.xlu0 %v157, 96
  %v167 = vpop.permute.xlu0 %166
  %vm168 = vcmask 64512
  %v170 = vsel %vm168, %v157, 0
  %v173 = vsel %vm168, %v167, 0
  %175 = vmatprep.subr.bf16.mxu0 0
  %176 = vmatpush1.bf16.xpose.msra.mxu0 %v173
  %177 = vmatprep.subr.bf16.mxu0 0
  %178 = vmatpush1.bf16.xpose.msra.mxu0 0
  %179 = vmatprep.subr.bf16.mxu0 0
  %180 = vmatpush1.bf16.xpose.msra.mxu0 0
  %181 = vmatprep.subr.bf16.mxu0 0
  %182 = vmatpush1.bf16.xpose.msra.mxu0 0
  %183 = vmatprep.subr.bf16.mxu0 0
  %184 = vmatpush1.bf16.xpose.msra.mxu0 0
  %185 = vmatprep.subr.bf16.mxu0 0
  %186 = vmatpush1.bf16.xpose.msra.mxu0 0
  %187 = vmatprep.subr.bf16.mxu0 0
  %188 = vmatpush1.bf16.xpose.msra.mxu0 0
  %189 = vmatprep.subr.bf16.mxu0 0
  %190 = vmatpush1.bf16.xpose.msra.mxu0 0
  %191 = vmatprep.subr.bf16.mxu0 0
  %192 = vmatpush1.bf16.xpose.msra.mxu0 0
  %193 = vmatprep.subr.bf16.mxu0 0
  %194 = vmatpush1.bf16.xpose.msra.mxu0 0
  %195 = vmatprep.subr.bf16.mxu0 0
  %196 = vmatpush1.bf16.xpose.msra.mxu0 0
  %197 = vmatprep.subr.bf16.mxu0 0
  %198 = vmatpush1.bf16.xpose.msra.mxu0 0
  %199 = vmatprep.subr.bf16.mxu0 0
  %200 = vmatpush1.bf16.xpose.msra.mxu0 0
  %201 = vmatprep.subr.bf16.mxu0 0
  %202 = vmatpush1.bf16.xpose.msra.mxu0 0
  %203 = vmatprep.subr.bf16.mxu0 0
  %204 = vmatpush1.bf16.xpose.msra.mxu0 0
  %205 = vmatprep.subr.bf16.mxu0 0
  %206 = vmatpush1.bf16.xpose.msra.mxu0 0
  %207 = vmatprep.mubr.bf16.mxu0 0
  %208 = vmatmul.mubr.bf16.gmra.mrb[0].mxu0 %v170
  %v209 = vpop.f32.mrb[0].mxu0
  %v210 = vadd.f32 0.0, %v209
  %v211 = vpop.f32.mrb[0].mxu0
  %v212 = vpop.f32.mrb[0].mxu0
  %v213 = vpop.f32.mrb[0].mxu0
  %214 = vdwg.mxu0
  %216 = vrot.lane.b32.xlu0 %v158, 96
  %v217 = vpop.permute.xlu0 %216
  %v219 = vsel %vm168, %v158, 0
  %v222 = vsel %vm168, %v217, 0
  %224 = vmatprep.subr.bf16.mxu0 0
  %225 = vmatpush1.bf16.xpose.msra.mxu0 %v222
  %226 = vmatprep.subr.bf16.mxu0 0
  %227 = vmatpush1.bf16.xpose.msra.mxu0 0
  %228 = vmatprep.subr.bf16.mxu0 0
  %229 = vmatpush1.bf16.xpose.msra.mxu0 0
  %230 = vmatprep.subr.bf16.mxu0 0
  %231 = vmatpush1.bf16.xpose.msra.mxu0 0
  %232 = vmatprep.subr.bf16.mxu0 0
  %233 = vmatpush1.bf16.xpose.msra.mxu0 0
  %234 = vmatprep.subr.bf16.mxu0 0
  %235 = vmatpush1.bf16.xpose.msra.mxu0 0
  %236 = vmatprep.subr.bf16.mxu0 0
  %237 = vmatpush1.bf16.xpose.msra.mxu0 0
  %238 = vmatprep.subr.bf16.mxu0 0
  %239 = vmatpush1.bf16.xpose.msra.mxu0 0
  %240 = vmatprep.subr.bf16.mxu0 0
  %241 = vmatpush1.bf16.xpose.msra.mxu0 0
  %242 = vmatprep.subr.bf16.mxu0 0
  %243 = vmatpush1.bf16.xpose.msra.mxu0 0
  %244 = vmatprep.subr.bf16.mxu0 0
  %245 = vmatpush1.bf16.xpose.msra.mxu0 0
  %246 = vmatprep.subr.bf16.mxu0 0
  %247 = vmatpush1.bf16.xpose.msra.mxu0 0
  %248 = vmatprep.subr.bf16.mxu0 0
  %249 = vmatpush1.bf16.xpose.msra.mxu0 0
  %250 = vmatprep.subr.bf16.mxu0 0
  %251 = vmatpush1.bf16.xpose.msra.mxu0 0
  %252 = vmatprep.subr.bf16.mxu0 0
  %253 = vmatpush1.bf16.xpose.msra.mxu0 0
  %254 = vmatprep.subr.bf16.mxu0 0
  %255 = vmatpush1.bf16.xpose.msra.mxu0 0
  %256 = vmatprep.mubr.bf16.mxu0 0
  %257 = vmatmul.mubr.bf16.gmra.mrb[0].mxu0 %v219
  %v258 = vpop.f32.mrb[0].mxu0
  %v259 = vadd.f32 0.0, %v258
  %v260 = vpop.f32.mrb[0].mxu0
  %v261 = vpop.f32.mrb[0].mxu0
  %v262 = vpop.f32.mrb[0].mxu0
  %263 = vdwg.mxu0
  %265 = vrot.lane.b32.xlu0 %v159, 96
  %v266 = vpop.permute.xlu0 %265
  %v268 = vsel %vm168, %v159, 0
  %v271 = vsel %vm168, %v266, 0
  %273 = vmatprep.subr.bf16.mxu0 0
  %274 = vmatpush1.bf16.xpose.msra.mxu0 %v271
  %275 = vmatprep.subr.bf16.mxu0 0
  %276 = vmatpush1.bf16.xpose.msra.mxu0 0
  %277 = vmatprep.subr.bf16.mxu0 0
  %278 = vmatpush1.bf16.xpose.msra.mxu0 0
  %279 = vmatprep.subr.bf16.mxu0 0
  %280 = vmatpush1.bf16.xpose.msra.mxu0 0
  %281 = vmatprep.subr.bf16.mxu0 0
  %282 = vmatpush1.bf16.xpose.msra.mxu0 0
  %283 = vmatprep.subr.bf16.mxu0 0
  %284 = vmatpush1.bf16.xpose.msra.mxu0 0
  %285 = vmatprep.subr.bf16.mxu0 0
  %286 = vmatpush1.bf16.xpose.msra.mxu0 0
  %287 = vmatprep.subr.bf16.mxu0 0
  %288 = vmatpush1.bf16.xpose.msra.mxu0 0
  %289 = vmatprep.subr.bf16.mxu0 0
  %290 = vmatpush1.bf16.xpose.msra.mxu0 0
  %291 = vmatprep.subr.bf16.mxu0 0
  %292 = vmatpush1.bf16.xpose.msra.mxu0 0
  %293 = vmatprep.subr.bf16.mxu0 0
  %294 = vmatpush1.bf16.xpose.msra.mxu0 0
  %295 = vmatprep.subr.bf16.mxu0 0
  %296 = vmatpush1.bf16.xpose.msra.mxu0 0
  %297 = vmatprep.subr.bf16.mxu0 0
  %298 = vmatpush1.bf16.xpose.msra.mxu0 0
  %299 = vmatprep.subr.bf16.mxu0 0
  %300 = vmatpush1.bf16.xpose.msra.mxu0 0
  %301 = vmatprep.subr.bf16.mxu0 0
  %302 = vmatpush1.bf16.xpose.msra.mxu0 0
  %303 = vmatprep.subr.bf16.mxu0 0
  %304 = vmatpush1.bf16.xpose.msra.mxu0 0
  %305 = vmatprep.mubr.bf16.mxu0 0
  %306 = vmatmul.mubr.bf16.gmra.mrb[0].mxu0 %v268
  %v307 = vpop.f32.mrb[0].mxu0
  %v308 = vadd.f32 0.0, %v307
  %v309 = vpop.f32.mrb[0].mxu0
  %v310 = vpop.f32.mrb[0].mxu0
  %v311 = vpop.f32.mrb[0].mxu0
  %312 = vdwg.mxu0
  %314 = vrot.lane.b32.xlu0 %v160, 96
  %v315 = vpop.permute.xlu0 %314
  %v317 = vsel %vm168, %v160, 0
  %v320 = vsel %vm168, %v315, 0
  %322 = vmatprep.subr.bf16.mxu0 0
  %323 = vmatpush1.bf16.xpose.msra.mxu0 %v320
  %324 = vmatprep.subr.bf16.mxu0 0
  %325 = vmatpush1.bf16.xpose.msra.mxu0 0
  %326 = vmatprep.subr.bf16.mxu0 0
  %327 = vmatpush1.bf16.xpose.msra.mxu0 0
  %328 = vmatprep.subr.bf16.mxu0 0
  %329 = vmatpush1.bf16.xpose.msra.mxu0 0
  %330 = vmatprep.subr.bf16.mxu0 0
  %331 = vmatpush1.bf16.xpose.msra.mxu0 0
  %332 = vmatprep.subr.bf16.mxu0 0
  %333 = vmatpush1.bf16.xpose.msra.mxu0 0
  %334 = vmatprep.subr.bf16.mxu0 0
  %335 = vmatpush1.bf16.xpose.msra.mxu0 0
  %336 = vmatprep.subr.bf16.mxu0 0
  %337 = vmatpush1.bf16.xpose.msra.mxu0 0
  %338 = vmatprep.subr.bf16.mxu0 0
  %339 = vmatpush1.bf16.xpose.msra.mxu0 0
  %340 = vmatprep.subr.bf16.mxu0 0
  %341 = vmatpush1.bf16.xpose.msra.mxu0 0
  %342 = vmatprep.subr.bf16.mxu0 0
  %343 = vmatpush1.bf16.xpose.msra.mxu0 0
  %344 = vmatprep.subr.bf16.mxu0 0
  %345 = vmatpush1.bf16.xpose.msra.mxu0 0
  %346 = vmatprep.subr.bf16.mxu0 0
  %347 = vmatpush1.bf16.xpose.msra.mxu0 0
  %348 = vmatprep.subr.bf16.mxu0 0
  %349 = vmatpush1.bf16.xpose.msra.mxu0 0
  %350 = vmatprep.subr.bf16.mxu0 0
  %351 = vmatpush1.bf16.xpose.msra.mxu0 0
  %352 = vmatprep.subr.bf16.mxu0 0
  %353 = vmatpush1.bf16.xpose.msra.mxu0 0
  %354 = vmatprep.mubr.bf16.mxu0 0
  %355 = vmatmul.mubr.bf16.gmra.mrb[0].mxu0 %v317
  %v356 = vpop.f32.mrb[0].mxu0
  %v357 = vadd.f32 0.0, %v356
  %v358 = vpop.f32.mrb[0].mxu0
  %v359 = vpop.f32.mrb[0].mxu0
  %v360 = vpop.f32.mrb[0].mxu0
  %361 = vdwg.mxu0
  %363 = vrot.lane.b32.xlu0 %v161, 96
  %v364 = vpop.permute.xlu0 %363
  %v366 = vsel %vm168, %v161, 0
  %v369 = vsel %vm168, %v364, 0
  %371 = vmatprep.subr.bf16.mxu0 0
  %372 = vmatpush1.bf16.xpose.msra.mxu0 %v369
  %373 = vmatprep.subr.bf16.mxu0 0
  %374 = vmatpush1.bf16.xpose.msra.mxu0 0
  %375 = vmatprep.subr.bf16.mxu0 0
  %376 = vmatpush1.bf16.xpose.msra.mxu0 0
  %377 = vmatprep.subr.bf16.mxu0 0
  %378 = vmatpush1.bf16.xpose.msra.mxu0 0
  %379 = vmatprep.subr.bf16.mxu0 0
  %380 = vmatpush1.bf16.xpose.msra.mxu0 0
  %381 = vmatprep.subr.bf16.mxu0 0
  %382 = vmatpush1.bf16.xpose.msra.mxu0 0
  %383 = vmatprep.subr.bf16.mxu0 0
  %384 = vmatpush1.bf16.xpose.msra.mxu0 0
  %385 = vmatprep.subr.bf16.mxu0 0
  %386 = vmatpush1.bf16.xpose.msra.mxu0 0
  %387 = vmatprep.subr.bf16.mxu0 0
  %388 = vmatpush1.bf16.xpose.msra.mxu0 0
  %389 = vmatprep.subr.bf16.mxu0 0
  %390 = vmatpush1.bf16.xpose.msra.mxu0 0
  %391 = vmatprep.subr.bf16.mxu0 0
  %392 = vmatpush1.bf16.xpose.msra.mxu0 0
  %393 = vmatprep.subr.bf16.mxu0 0
  %394 = vmatpush1.bf16.xpose.msra.mxu0 0
  %395 = vmatprep.subr.bf16.mxu0 0
  %396 = vmatpush1.bf16.xpose.msra.mxu0 0
  %397 = vmatprep.subr.bf16.mxu0 0
  %398 = vmatpush1.bf16.xpose.msra.mxu0 0
  %399 = vmatprep.subr.bf16.mxu0 0
  %400 = vmatpush1.bf16.xpose.msra.mxu0 0
  %401 = vmatprep.subr.bf16.mxu0 0
  %402 = vmatpush1.bf16.xpose.msra.mxu0 0
  %403 = vmatprep.mubr.bf16.mxu0 0
  %404 = vmatmul.mubr.bf16.gmra.mrb[0].mxu0 %v366
  %v405 = vpop.f32.mrb[0].mxu0
  %v406 = vadd.f32 0.0, %v405
  %v407 = vpop.f32.mrb[0].mxu0
  %v408 = vpop.f32.mrb[0].mxu0
  %v409 = vpop.f32.mrb[0].mxu0
  %410 = vdwg.mxu0
  %412 = vrot.lane.b32.xlu0 %v162, 96
  %v413 = vpop.permute.xlu0 %412
  %v415 = vsel %vm168, %v162, 0
  %v418 = vsel %vm168, %v413, 0
  %420 = vmatprep.subr.bf16.mxu0 0
  %421 = vmatpush1.bf16.xpose.msra.mxu0 %v418
  %422 = vmatprep.subr.bf16.mxu0 0
  %423 = vmatpush1.bf16.xpose.msra.mxu0 0
  %424 = vmatprep.subr.bf16.mxu0 0
  %425 = vmatpush1.bf16.xpose.msra.mxu0 0
  %426 = vmatprep.subr.bf16.mxu0 0
  %427 = vmatpush1.bf16.xpose.msra.mxu0 0
  %428 = vmatprep.subr.bf16.mxu0 0
  %429 = vmatpush1.bf16.xpose.msra.mxu0 0
  %430 = vmatprep.subr.bf16.mxu0 0
  %431 = vmatpush1.bf16.xpose.msra.mxu0 0
  %432 = vmatprep.subr.bf16.mxu0 0
  %433 = vmatpush1.bf16.xpose.msra.mxu0 0
  %434 = vmatprep.subr.bf16.mxu0 0
  %435 = vmatpush1.bf16.xpose.msra.mxu0 0
  %436 = vmatprep.subr.bf16.mxu0 0
  %437 = vmatpush1.bf16.xpose.msra.mxu0 0
  %438 = vmatprep.subr.bf16.mxu0 0
  %439 = vmatpush1.bf16.xpose.msra.mxu0 0
  %440 = vmatprep.subr.bf16.mxu0 0
  %441 = vmatpush1.bf16.xpose.msra.mxu0 0
  %442 = vmatprep.subr.bf16.mxu0 0
  %443 = vmatpush1.bf16.xpose.msra.mxu0 0
  %444 = vmatprep.subr.bf16.mxu0 0
  %445 = vmatpush1.bf16.xpose.msra.mxu0 0
  %446 = vmatprep.subr.bf16.mxu0 0
  %447 = vmatpush1.bf16.xpose.msra.mxu0 0
  %448 = vmatprep.subr.bf16.mxu0 0
  %449 = vmatpush1.bf16.xpose.msra.mxu0 0
  %450 = vmatprep.subr.bf16.mxu0 0
  %451 = vmatpush1.bf16.xpose.msra.mxu0 0
  %452 = vmatprep.mubr.bf16.mxu0 0
  %453 = vmatmul.mubr.bf16.gmra.mrb[0].mxu0 %v415
  %v454 = vpop.f32.mrb[0].mxu0
  %v455 = vadd.f32 0.0, %v454
  %v456 = vpop.f32.mrb[0].mxu0
  %v457 = vpop.f32.mrb[0].mxu0
  %v458 = vpop.f32.mrb[0].mxu0
  %459 = vdwg.mxu0
  %461 = vrot.lane.b32.xlu0 %v163, 96
  %v462 = vpop.permute.xlu0 %461
  %v464 = vsel %vm168, %v163, 0
  %v467 = vsel %vm168, %v462, 0
  %469 = vmatprep.subr.bf16.mxu0 0
  %470 = vmatpush1.bf16.xpose.msra.mxu0 %v467
  %471 = vmatprep.subr.bf16.mxu0 0
  %472 = vmatpush1.bf16.xpose.msra.mxu0 0
  %473 = vmatprep.subr.bf16.mxu0 0
  %474 = vmatpush1.bf16.xpose.msra.mxu0 0
  %475 = vmatprep.subr.bf16.mxu0 0
  %476 = vmatpush1.bf16.xpose.msra.mxu0 0
  %477 = vmatprep.subr.bf16.mxu0 0
  %478 = vmatpush1.bf16.xpose.msra.mxu0 0
  %479 = vmatprep.subr.bf16.mxu0 0
  %480 = vmatpush1.bf16.xpose.msra.mxu0 0
  %481 = vmatprep.subr.bf16.mxu0 0
  %482 = vmatpush1.bf16.xpose.msra.mxu0 0
  %483 = vmatprep.subr.bf16.mxu0 0
  %484 = vmatpush1.bf16.xpose.msra.mxu0 0
  %485 = vmatprep.subr.bf16.mxu0 0
  %486 = vmatpush1.bf16.xpose.msra.mxu0 0
  %487 = vmatprep.subr.bf16.mxu0 0
  %488 = vmatpush1.bf16.xpose.msra.mxu0 0
  %489 = vmatprep.subr.bf16.mxu0 0
  %490 = vmatpush1.bf16.xpose.msra.mxu0 0
  %491 = vmatprep.subr.bf16.mxu0 0
  %492 = vmatpush1.bf16.xpose.msra.mxu0 0
  %493 = vmatprep.subr.bf16.mxu0 0
  %494 = vmatpush1.bf16.xpose.msra.mxu0 0
  %495 = vmatprep.subr.bf16.mxu0 0
  %496 = vmatpush1.bf16.xpose.msra.mxu0 0
  %497 = vmatprep.subr.bf16.mxu0 0
  %498 = vmatpush1.bf16.xpose.msra.mxu0 0
  %499 = vmatprep.subr.bf16.mxu0 0
  %500 = vmatpush1.bf16.xpose.msra.mxu0 0
  %501 = vmatprep.mubr.bf16.mxu0 0
  %502 = vmatmul.mubr.bf16.gmra.mrb[0].mxu0 %v464
  %v503 = vpop.f32.mrb[0].mxu0
  %v504 = vadd.f32 0.0, %v503
  %v505 = vpop.f32.mrb[0].mxu0
  %v506 = vpop.f32.mrb[0].mxu0
  %v507 = vpop.f32.mrb[0].mxu0
  %508 = vdwg.mxu0
  %510 = vrot.lane.b32.xlu0 %v164, 96
  %v511 = vpop.permute.xlu0 %510
  %v513 = vsel %vm168, %v164, 0
  %v516 = vsel %vm168, %v511, 0
  %518 = vmatprep.subr.bf16.mxu0 0
  %519 = vmatpush1.bf16.xpose.msra.mxu0 %v516
  %520 = vmatprep.subr.bf16.mxu0 0
  %521 = vmatpush1.bf16.xpose.msra.mxu0 0
  %522 = vmatprep.subr.bf16.mxu0 0
  %523 = vmatpush1.bf16.xpose.msra.mxu0 0
  %524 = vmatprep.subr.bf16.mxu0 0
  %525 = vmatpush1.bf16.xpose.msra.mxu0 0
  %526 = vmatprep.subr.bf16.mxu0 0
  %527 = vmatpush1.bf16.xpose.msra.mxu0 0
  %528 = vmatprep.subr.bf16.mxu0 0
  %529 = vmatpush1.bf16.xpose.msra.mxu0 0
  %530 = vmatprep.subr.bf16.mxu0 0
  %531 = vmatpush1.bf16.xpose.msra.mxu0 0
  %532 = vmatprep.subr.bf16.mxu0 0
  %533 = vmatpush1.bf16.xpose.msra.mxu0 0
  %534 = vmatprep.subr.bf16.mxu0 0
  %535 = vmatpush1.bf16.xpose.msra.mxu0 0
  %536 = vmatprep.subr.bf16.mxu0 0
  %537 = vmatpush1.bf16.xpose.msra.mxu0 0
  %538 = vmatprep.subr.bf16.mxu0 0
  %539 = vmatpush1.bf16.xpose.msra.mxu0 0
  %540 = vmatprep.subr.bf16.mxu0 0
  %541 = vmatpush1.bf16.xpose.msra.mxu0 0
  %542 = vmatprep.subr.bf16.mxu0 0
  %543 = vmatpush1.bf16.xpose.msra.mxu0 0
  %544 = vmatprep.subr.bf16.mxu0 0
  %545 = vmatpush1.bf16.xpose.msra.mxu0 0
  %546 = vmatprep.subr.bf16.mxu0 0
  %547 = vmatpush1.bf16.xpose.msra.mxu0 0
  %548 = vmatprep.subr.bf16.mxu0 0
  %549 = vmatpush1.bf16.xpose.msra.mxu0 0
  %550 = vmatprep.mubr.bf16.mxu0 0
  %551 = vmatmul.mubr.bf16.gmra.mrb[0].mxu0 %v513
  %v552 = vpop.f32.mrb[0].mxu0
  %v553 = vadd.f32 0.0, %v552
  %v554 = vpop.f32.mrb[0].mxu0
  %v555 = vpop.f32.mrb[0].mxu0
  %v556 = vpop.f32.mrb[0].mxu0
  %557 = vdwg.mxu0
  %v558 = vmul.f32 %v210, 0.35355338
  %v559 = vmul.f32 %v259, 0.35355338
  %v560 = vmul.f32 %v308, 0.35355338
  %v561 = vmul.f32 %v357, 0.35355338
  %v562 = vmul.f32 %v406, 0.35355338
  %v563 = vmul.f32 %v455, 0.35355338
  %v564 = vmul.f32 %v504, 0.35355338
  %v565 = vmul.f32 %v553, 0.35355338
  %v566 = vsel %vm28, 1, 0
  %vm567 = vcmp.eq.s32.totalorder %v566, 1
  %v568 = vsel %vm567, %v558, -1e+30
  %v569 = vsel %vm567, %v559, -1e+30
  %v570 = vsel %vm567, %v560, -1e+30
  %v571 = vsel %vm567, %v561, -1e+30
  %v572 = vsel %vm567, %v562, -1e+30
  %v573 = vsel %vm567, %v563, -1e+30
  %v574 = vsel %vm567, %v564, -1e+30
  %v575 = vsel %vm567, %v565, -1e+30
  %v576 = vsel %vm168, %v568, -inf
  %577 = vmax.xlane.f32.xlu0 %v576
  %v578 = vpop.xlane.xlu0 %577
  %v579 = vsel %vm168, %v569, -inf
  %580 = vmax.xlane.f32.xlu0 %v579
  %v581 = vpop.xlane.xlu0 %580
  %v582 = vsel %vm168, %v570, -inf
  %583 = vmax.xlane.f32.xlu0 %v582
  %v584 = vpop.xlane.xlu0 %583
  %v585 = vsel %vm168, %v571, -inf
  %586 = vmax.xlane.f32.xlu0 %v585
  %v587 = vpop.xlane.xlu0 %586
  %v588 = vsel %vm168, %v572, -inf
  %589 = vmax.xlane.f32.xlu0 %v588
  %v590 = vpop.xlane.xlu0 %589
  %v591 = vsel %vm168, %v573, -inf
  %592 = vmax.xlane.f32.xlu0 %v591
  %v593 = vpop.xlane.xlu0 %592
  %v594 = vsel %vm168, %v574, -inf
  %595 = vmax.xlane.f32.xlu0 %v594
  %v596 = vpop.xlane.xlu0 %595
  %v597 = vsel %vm168, %v575, -inf
  %598 = vmax.xlane.f32.xlu0 %v597
  %v599 = vpop.xlane.xlu0 %598
  %v600 = vsub.f32 %v568, %v578
  %v601 = vsub.f32 %v569, %v581
  %v602 = vsub.f32 %v570, %v584
  %v603 = vsub.f32 %v571, %v587
  %v604 = vsub.f32 %v572, %v590
  %v605 = vsub.f32 %v573, %v593
  %v606 = vsub.f32 %v574, %v596
  %v607 = vsub.f32 %v575, %v599
  %v608 = vmul.f32 %v600, 1.442695
  %v609 = vpow.pop %v608
  %v610 = vmul.f32 %v601, 1.442695
  %v611 = vpow.pop %v610
  %v612 = vmul.f32 %v602, 1.442695
  %v613 = vpow.pop %v612
  %v614 = vmul.f32 %v603, 1.442695
  %v615 = vpow.pop %v614
  %v616 = vmul.f32 %v604, 1.442695
  %v617 = vpow.pop %v616
  %v618 = vmul.f32 %v605, 1.442695
  %v619 = vpow.pop %v618
  %v620 = vmul.f32 %v606, 1.442695
  %v621 = vpow.pop %v620
  %v622 = vmul.f32 %v607, 1.442695
  %v623 = vpow.pop %v622
  %v624 = vsel %vm168, %v609, 0.0
  %625 = vadd.xlane.f32.xlu0 %v624
  %v626 = vpop.xlane.xlu0 %625
  %v627 = vsel %vm168, %v611, 0.0
  %628 = vadd.xlane.f32.xlu0 %v627
  %v629 = vpop.xlane.xlu0 %628
  %v630 = vsel %vm168, %v613, 0.0
  %631 = vadd.xlane.f32.xlu0 %v630
  %v632 = vpop.xlane.xlu0 %631
  %v633 = vsel %vm168, %v615, 0.0
  %634 = vadd.xlane.f32.xlu0 %v633
  %v635 = vpop.xlane.xlu0 %634
  %v636 = vsel %vm168, %v617, 0.0
  %637 = vadd.xlane.f32.xlu0 %v636
  %v638 = vpop.xlane.xlu0 %637
  %v639 = vsel %vm168, %v619, 0.0
  %640 = vadd.xlane.f32.xlu0 %v639
  %v641 = vpop.xlane.xlu0 %640
  %v642 = vsel %vm168, %v621, 0.0
  %643 = vadd.xlane.f32.xlu0 %v642
  %v644 = vpop.xlane.xlu0 %643
  %v645 = vsel %vm168, %v623, 0.0
  %646 = vadd.xlane.f32.xlu0 %v645
  %v647 = vpop.xlane.xlu0 %646
  %v648 = vrcp.pop %v626
  %v649 = vrcp.pop %v629
  %v650 = vrcp.pop %v632
  %v651 = vrcp.pop %v635
  %v652 = vrcp.pop %v638
  %v653 = vrcp.pop %v641
  %v654 = vrcp.pop %v644
  %v655 = vrcp.pop %v647
  %v656 = vmul.f32 %v609, %v648
  %v657 = vmul.f32 %v611, %v649
  %v658 = vmul.f32 %v613, %v650
  %v659 = vmul.f32 %v615, %v651
  %v660 = vmul.f32 %v617, %v652
  %v661 = vmul.f32 %v619, %v653
  %v662 = vmul.f32 %v621, %v654
  %v663 = vmul.f32 %v623, %v655
  %v664 = vpack.c.bf16 %v656, %v656
  %v665 = vpack.c.bf16 %v657, %v657
  %v666 = vpack.c.bf16 %v658, %v658
  %v667 = vpack.c.bf16 %v659, %v659
  %v668 = vpack.c.bf16 %v660, %v660
  %v669 = vpack.c.bf16 %v661, %v661
  %v670 = vpack.c.bf16 %v662, %v662
  %v671 = vpack.c.bf16 %v663, %v663
  %672 = vrot.lane.b32.xlu0 %v157, 64
  %v673 = vpop.permute.xlu0 %672
  %v675 = vsel %vm168, %v664, 0
  %vm677 = vcmask 1043456
  %v679 = vsel %vm677, %v673, 0
  %681 = vmatprep.subr.bf16.mxu0 0
  %682 = vmatpush1.bf16.msra.mxu0 %v679
  %683 = vmatprep.subr.bf16.mxu0 0
  %684 = vmatpush1.bf16.msra.mxu0 0
  %685 = vmatprep.subr.bf16.mxu0 0
  %686 = vmatpush1.bf16.msra.mxu0 0
  %687 = vmatprep.subr.bf16.mxu0 0
  %688 = vmatpush1.bf16.msra.mxu0 0
  %689 = vmatprep.subr.bf16.mxu0 0
  %690 = vmatpush1.bf16.msra.mxu0 0
  %691 = vmatprep.subr.bf16.mxu0 0
  %692 = vmatpush1.bf16.msra.mxu0 0
  %693 = vmatprep.subr.bf16.mxu0 0
  %694 = vmatpush1.bf16.msra.mxu0 0
  %695 = vmatprep.subr.bf16.mxu0 0
  %696 = vmatpush1.bf16.msra.mxu0 0
  %697 = vmatprep.subr.bf16.mxu0 0
  %698 = vmatpush1.bf16.msra.mxu0 0
  %699 = vmatprep.subr.bf16.mxu0 0
  %700 = vmatpush1.bf16.msra.mxu0 0
  %701 = vmatprep.subr.bf16.mxu0 0
  %702 = vmatpush1.bf16.msra.mxu0 0
  %703 = vmatprep.subr.bf16.mxu0 0
  %704 = vmatpush1.bf16.msra.mxu0 0
  %705 = vmatprep.subr.bf16.mxu0 0
  %706 = vmatpush1.bf16.msra.mxu0 0
  %707 = vmatprep.subr.bf16.mxu0 0
  %708 = vmatpush1.bf16.msra.mxu0 0
  %709 = vmatprep.subr.bf16.mxu0 0
  %710 = vmatpush1.bf16.msra.mxu0 0
  %711 = vmatprep.subr.bf16.mxu0 0
  %712 = vmatpush1.bf16.msra.mxu0 0
  %713 = vmatprep.mubr.bf16.mxu0 0
  %714 = vmatmul.mubr.bf16.gmra.mrb[0].mxu0 %v675
  %v715 = vpop.f32.mrb[0].mxu0
  %v716 = vadd.f32 0.0, %v715
  %v717 = vpop.f32.mrb[0].mxu0
  %v718 = vpop.f32.mrb[0].mxu0
  %v719 = vpop.f32.mrb[0].mxu0
  %720 = vdwg.mxu0
  %721 = vrot.lane.b32.xlu0 %v158, 64
  %v722 = vpop.permute.xlu0 %721
  %v724 = vsel %vm168, %v665, 0
  %v727 = vsel %vm677, %v722, 0
  %729 = vmatprep.subr.bf16.mxu0 0
  %730 = vmatpush1.bf16.msra.mxu0 %v727
  %731 = vmatprep.subr.bf16.mxu0 0
  %732 = vmatpush1.bf16.msra.mxu0 0
  %733 = vmatprep.subr.bf16.mxu0 0
  %734 = vmatpush1.bf16.msra.mxu0 0
  %735 = vmatprep.subr.bf16.mxu0 0
  %736 = vmatpush1.bf16.msra.mxu0 0
  %737 = vmatprep.subr.bf16.mxu0 0
  %738 = vmatpush1.bf16.msra.mxu0 0
  %739 = vmatprep.subr.bf16.mxu0 0
  %740 = vmatpush1.bf16.msra.mxu0 0
  %741 = vmatprep.subr.bf16.mxu0 0
  %742 = vmatpush1.bf16.msra.mxu0 0
  %743 = vmatprep.subr.bf16.mxu0 0
  %744 = vmatpush1.bf16.msra.mxu0 0
  %745 = vmatprep.subr.bf16.mxu0 0
  %746 = vmatpush1.bf16.msra.mxu0 0
  %747 = vmatprep.subr.bf16.mxu0 0
  %748 = vmatpush1.bf16.msra.mxu0 0
  %749 = vmatprep.subr.bf16.mxu0 0
  %750 = vmatpush1.bf16.msra.mxu0 0
  %751 = vmatprep.subr.bf16.mxu0 0
  %752 = vmatpush1.bf16.msra.mxu0 0
  %753 = vmatprep.subr.bf16.mxu0 0
  %754 = vmatpush1.bf16.msra.mxu0 0
  %755 = vmatprep.subr.bf16.mxu0 0
  %756 = vmatpush1.bf16.msra.mxu0 0
  %757 = vmatprep.subr.bf16.mxu0 0
  %758 = vmatpush1.bf16.msra.mxu0 0
  %759 = vmatprep.subr.bf16.mxu0 0
  %760 = vmatpush1.bf16.msra.mxu0 0
  %761 = vmatprep.mubr.bf16.mxu0 0
  %762 = vmatmul.mubr.bf16.gmra.mrb[0].mxu0 %v724
  %v763 = vpop.f32.mrb[0].mxu0
  %v764 = vadd.f32 0.0, %v763
  %v765 = vpop.f32.mrb[0].mxu0
  %v766 = vpop.f32.mrb[0].mxu0
  %v767 = vpop.f32.mrb[0].mxu0
  %768 = vdwg.mxu0
  %769 = vrot.lane.b32.xlu0 %v159, 64
  %v770 = vpop.permute.xlu0 %769
  %v772 = vsel %vm168, %v666, 0
  %v775 = vsel %vm677, %v770, 0
  %777 = vmatprep.subr.bf16.mxu0 0
  %778 = vmatpush1.bf16.msra.mxu0 %v775
  %779 = vmatprep.subr.bf16.mxu0 0
  %780 = vmatpush1.bf16.msra.mxu0 0
  %781 = vmatprep.subr.bf16.mxu0 0
  %782 = vmatpush1.bf16.msra.mxu0 0
  %783 = vmatprep.subr.bf16.mxu0 0
  %784 = vmatpush1.bf16.msra.mxu0 0
  %785 = vmatprep.subr.bf16.mxu0 0
  %786 = vmatpush1.bf16.msra.mxu0 0
  %787 = vmatprep.subr.bf16.mxu0 0
  %788 = vmatpush1.bf16.msra.mxu0 0
  %789 = vmatprep.subr.bf16.mxu0 0
  %790 = vmatpush1.bf16.msra.mxu0 0
  %791 = vmatprep.subr.bf16.mxu0 0
  %792 = vmatpush1.bf16.msra.mxu0 0
  %793 = vmatprep.subr.bf16.mxu0 0
  %794 = vmatpush1.bf16.msra.mxu0 0
  %795 = vmatprep.subr.bf16.mxu0 0
  %796 = vmatpush1.bf16.msra.mxu0 0
  %797 = vmatprep.subr.bf16.mxu0 0
  %798 = vmatpush1.bf16.msra.mxu0 0
  %799 = vmatprep.subr.bf16.mxu0 0
  %800 = vmatpush1.bf16.msra.mxu0 0
  %801 = vmatprep.subr.bf16.mxu0 0
  %802 = vmatpush1.bf16.msra.mxu0 0
  %803 = vmatprep.subr.bf16.mxu0 0
  %804 = vmatpush1.bf16.msra.mxu0 0
  %805 = vmatprep.subr.bf16.mxu0 0
  %806 = vmatpush1.bf16.msra.mxu0 0
  %807 = vmatprep.subr.bf16.mxu0 0
  %808 = vmatpush1.bf16.msra.mxu0 0
  %809 = vmatprep.mubr.bf16.mxu0 0
  %810 = vmatmul.mubr.bf16.gmra.mrb[0].mxu0 %v772
  %v811 = vpop.f32.mrb[0].mxu0
  %v812 = vadd.f32 0.0, %v811
  %v813 = vpop.f32.mrb[0].mxu0
  %v814 = vpop.f32.mrb[0].mxu0
  %v815 = vpop.f32.mrb[0].mxu0
  %816 = vdwg.mxu0
  %817 = vrot.lane.b32.xlu0 %v160, 64
  %v818 = vpop.permute.xlu0 %817
  %v820 = vsel %vm168, %v667, 0
  %v823 = vsel %vm677, %v818, 0
  %825 = vmatprep.subr.bf16.mxu0 0
  %826 = vmatpush1.bf16.msra.mxu0 %v823
  %827 = vmatprep.subr.bf16.mxu0 0
  %828 = vmatpush1.bf16.msra.mxu0 0
  %829 = vmatprep.subr.bf16.mxu0 0
  %830 = vmatpush1.bf16.msra.mxu0 0
  %831 = vmatprep.subr.bf16.mxu0 0
  %832 = vmatpush1.bf16.msra.mxu0 0
  %833 = vmatprep.subr.bf16.mxu0 0
  %834 = vmatpush1.bf16.msra.mxu0 0
  %835 = vmatprep.subr.bf16.mxu0 0
  %836 = vmatpush1.bf16.msra.mxu0 0
  %837 = vmatprep.subr.bf16.mxu0 0
  %838 = vmatpush1.bf16.msra.mxu0 0
  %839 = vmatprep.subr.bf16.mxu0 0
  %840 = vmatpush1.bf16.msra.mxu0 0
  %841 = vmatprep.subr.bf16.mxu0 0
  %842 = vmatpush1.bf16.msra.mxu0 0
  %843 = vmatprep.subr.bf16.mxu0 0
  %844 = vmatpush1.bf16.msra.mxu0 0
  %845 = vmatprep.subr.bf16.mxu0 0
  %846 = vmatpush1.bf16.msra.mxu0 0
  %847 = vmatprep.subr.bf16.mxu0 0
  %848 = vmatpush1.bf16.msra.mxu0 0
  %849 = vmatprep.subr.bf16.mxu0 0
  %850 = vmatpush1.bf16.msra.mxu0 0
  %851 = vmatprep.subr.bf16.mxu0 0
  %852 = vmatpush1.bf16.msra.mxu0 0
  %853 = vmatprep.subr.bf16.mxu0 0
  %854 = vmatpush1.bf16.msra.mxu0 0
  %855 = vmatprep.subr.bf16.mxu0 0
  %856 = vmatpush1.bf16.msra.mxu0 0
  %857 = vmatprep.mubr.bf16.mxu0 0
  %858 = vmatmul.mubr.bf16.gmra.mrb[0].mxu0 %v820
  %v859 = vpop.f32.mrb[0].mxu0
  %v860 = vadd.f32 0.0, %v859
  %v861 = vpop.f32.mrb[0].mxu0
  %v862 = vpop.f32.mrb[0].mxu0
  %v863 = vpop.f32.mrb[0].mxu0
  %864 = vdwg.mxu0
  %865 = vrot.lane.b32.xlu0 %v161, 64
  %v866 = vpop.permute.xlu0 %865
  %v868 = vsel %vm168, %v668, 0
  %v871 = vsel %vm677, %v866, 0
  %873 = vmatprep.subr.bf16.mxu0 0
  %874 = vmatpush1.bf16.msra.mxu0 %v871
  %875 = vmatprep.subr.bf16.mxu0 0
  %876 = vmatpush1.bf16.msra.mxu0 0
  %877 = vmatprep.subr.bf16.mxu0 0
  %878 = vmatpush1.bf16.msra.mxu0 0
  %879 = vmatprep.subr.bf16.mxu0 0
  %880 = vmatpush1.bf16.msra.mxu0 0
  %881 = vmatprep.subr.bf16.mxu0 0
  %882 = vmatpush1.bf16.msra.mxu0 0
  %883 = vmatprep.subr.bf16.mxu0 0
  %884 = vmatpush1.bf16.msra.mxu0 0
  %885 = vmatprep.subr.bf16.mxu0 0
  %886 = vmatpush1.bf16.msra.mxu0 0
  %887 = vmatprep.subr.bf16.mxu0 0
  %888 = vmatpush1.bf16.msra.mxu0 0
  %889 = vmatprep.subr.bf16.mxu0 0
  %890 = vmatpush1.bf16.msra.mxu0 0
  %891 = vmatprep.subr.bf16.mxu0 0
  %892 = vmatpush1.bf16.msra.mxu0 0
  %893 = vmatprep.subr.bf16.mxu0 0
  %894 = vmatpush1.bf16.msra.mxu0 0
  %895 = vmatprep.subr.bf16.mxu0 0
  %896 = vmatpush1.bf16.msra.mxu0 0
  %897 = vmatprep.subr.bf16.mxu0 0
  %898 = vmatpush1.bf16.msra.mxu0 0
  %899 = vmatprep.subr.bf16.mxu0 0
  %900 = vmatpush1.bf16.msra.mxu0 0
  %901 = vmatprep.subr.bf16.mxu0 0
  %902 = vmatpush1.bf16.msra.mxu0 0
  %903 = vmatprep.subr.bf16.mxu0 0
  %904 = vmatpush1.bf16.msra.mxu0 0
  %905 = vmatprep.mubr.bf16.mxu0 0
  %906 = vmatmul.mubr.bf16.gmra.mrb[0].mxu0 %v868
  %v907 = vpop.f32.mrb[0].mxu0
  %v908 = vadd.f32 0.0, %v907
  %v909 = vpop.f32.mrb[0].mxu0
  %v910 = vpop.f32.mrb[0].mxu0
  %v911 = vpop.f32.mrb[0].mxu0
  %912 = vdwg.mxu0
  %913 = vrot.lane.b32.xlu0 %v162, 64
  %v914 = vpop.permute.xlu0 %913
  %v916 = vsel %vm168, %v669, 0
  %v919 = vsel %vm677, %v914, 0
  %921 = vmatprep.subr.bf16.mxu0 0
  %922 = vmatpush1.bf16.msra.mxu0 %v919
  %923 = vmatprep.subr.bf16.mxu0 0
  %924 = vmatpush1.bf16.msra.mxu0 0
  %925 = vmatprep.subr.bf16.mxu0 0
  %926 = vmatpush1.bf16.msra.mxu0 0
  %927 = vmatprep.subr.bf16.mxu0 0
  %928 = vmatpush1.bf16.msra.mxu0 0
  %929 = vmatprep.subr.bf16.mxu0 0
  %930 = vmatpush1.bf16.msra.mxu0 0
  %931 = vmatprep.subr.bf16.mxu0 0
  %932 = vmatpush1.bf16.msra.mxu0 0
  %933 = vmatprep.subr.bf16.mxu0 0
  %934 = vmatpush1.bf16.msra.mxu0 0
  %935 = vmatprep.subr.bf16.mxu0 0
  %936 = vmatpush1.bf16.msra.mxu0 0
  %937 = vmatprep.subr.bf16.mxu0 0
  %938 = vmatpush1.bf16.msra.mxu0 0
  %939 = vmatprep.subr.bf16.mxu0 0
  %940 = vmatpush1.bf16.msra.mxu0 0
  %941 = vmatprep.subr.bf16.mxu0 0
  %942 = vmatpush1.bf16.msra.mxu0 0
  %943 = vmatprep.subr.bf16.mxu0 0
  %944 = vmatpush1.bf16.msra.mxu0 0
  %945 = vmatprep.subr.bf16.mxu0 0
  %946 = vmatpush1.bf16.msra.mxu0 0
  %947 = vmatprep.subr.bf16.mxu0 0
  %948 = vmatpush1.bf16.msra.mxu0 0
  %949 = vmatprep.subr.bf16.mxu0 0
  %950 = vmatpush1.bf16.msra.mxu0 0
  %951 = vmatprep.subr.bf16.mxu0 0
  %952 = vmatpush1.bf16.msra.mxu0 0
  %953 = vmatprep.mubr.bf16.mxu0 0
  %954 = vmatmul.mubr.bf16.gmra.mrb[0].mxu0 %v916
  %v955 = vpop.f32.mrb[0].mxu0
  %v956 = vadd.f32 0.0, %v955
  %v957 = vpop.f32.mrb[0].mxu0
  %v958 = vpop.f32.mrb[0].mxu0
  %v959 = vpop.f32.mrb[0].mxu0
  %960 = vdwg.mxu0
  %961 = vrot.lane.b32.xlu0 %v163, 64
  %v962 = vpop.permute.xlu0 %961
  %v964 = vsel %vm168, %v670, 0
  %v967 = vsel %vm677, %v962, 0
  %969 = vmatprep.subr.bf16.mxu0 0
  %970 = vmatpush1.bf16.msra.mxu0 %v967
  %971 = vmatprep.subr.bf16.mxu0 0
  %972 = vmatpush1.bf16.msra.mxu0 0
  %973 = vmatprep.subr.bf16.mxu0 0
  %974 = vmatpush1.bf16.msra.mxu0 0
  %975 = vmatprep.subr.bf16.mxu0 0
  %976 = vmatpush1.bf16.msra.mxu0 0
  %977 = vmatprep.subr.bf16.mxu0 0
  %978 = vmatpush1.bf16.msra.mxu0 0
  %979 = vmatprep.subr.bf16.mxu0 0
  %980 = vmatpush1.bf16.msra.mxu0 0
  %981 = vmatprep.subr.bf16.mxu0 0
  %982 = vmatpush1.bf16.msra.mxu0 0
  %983 = vmatprep.subr.bf16.mxu0 0
  %984 = vmatpush1.bf16.msra.mxu0 0
  %985 = vmatprep.subr.bf16.mxu0 0
  %986 = vmatpush1.bf16.msra.mxu0 0
  %987 = vmatprep.subr.bf16.mxu0 0
  %988 = vmatpush1.bf16.msra.mxu0 0
  %989 = vmatprep.subr.bf16.mxu0 0
  %990 = vmatpush1.bf16.msra.mxu0 0
  %991 = vmatprep.subr.bf16.mxu0 0
  %992 = vmatpush1.bf16.msra.mxu0 0
  %993 = vmatprep.subr.bf16.mxu0 0
  %994 = vmatpush1.bf16.msra.mxu0 0
  %995 = vmatprep.subr.bf16.mxu0 0
  %996 = vmatpush1.bf16.msra.mxu0 0
  %997 = vmatprep.subr.bf16.mxu0 0
  %998 = vmatpush1.bf16.msra.mxu0 0
  %999 = vmatprep.subr.bf16.mxu0 0
  %1000 = vmatpush1.bf16.msra.mxu0 0
  %1001 = vmatprep.mubr.bf16.mxu0 0
  %1002 = vmatmul.mubr.bf16.gmra.mrb[0].mxu0 %v964
  %v1003 = vpop.f32.mrb[0].mxu0
  %v1004 = vadd.f32 0.0, %v1003
  %v1005 = vpop.f32.mrb[0].mxu0
  %v1006 = vpop.f32.mrb[0].mxu0
  %v1007 = vpop.f32.mrb[0].mxu0
  %1008 = vdwg.mxu0
  %1009 = vrot.lane.b32.xlu0 %v164, 64
  %v1010 = vpop.permute.xlu0 %1009
  %v1012 = vsel %vm168, %v671, 0
  %v1015 = vsel %vm677, %v1010, 0
  %1017 = vmatprep.subr.bf16.mxu0 0
  %1018 = vmatpush1.bf16.msra.mxu0 %v1015
  %1019 = vmatprep.subr.bf16.mxu0 0
  %1020 = vmatpush1.bf16.msra.mxu0 0
  %1021 = vmatprep.subr.bf16.mxu0 0
  %1022 = vmatpush1.bf16.msra.mxu0 0
  %1023 = vmatprep.subr.bf16.mxu0 0
  %1024 = vmatpush1.bf16.msra.mxu0 0
  %1025 = vmatprep.subr.bf16.mxu0 0
  %1026 = vmatpush1.bf16.msra.mxu0 0
  %1027 = vmatprep.subr.bf16.mxu0 0
  %1028 = vmatpush1.bf16.msra.mxu0 0
  %1029 = vmatprep.subr.bf16.mxu0 0
  %1030 = vmatpush1.bf16.msra.mxu0 0
  %1031 = vmatprep.subr.bf16.mxu0 0
  %1032 = vmatpush1.bf16.msra.mxu0 0
  %1033 = vmatprep.subr.bf16.mxu0 0
  %1034 = vmatpush1.bf16.msra.mxu0 0
  %1035 = vmatprep.subr.bf16.mxu0 0
  %1036 = vmatpush1.bf16.msra.mxu0 0
  %1037 = vmatprep.subr.bf16.mxu0 0
  %1038 = vmatpush1.bf16.msra.mxu0 0
  %1039 = vmatprep.subr.bf16.mxu0 0
  %1040 = vmatpush1.bf16.msra.mxu0 0
  %1041 = vmatprep.subr.bf16.mxu0 0
  %1042 = vmatpush1.bf16.msra.mxu0 0
  %1043 = vmatprep.subr.bf16.mxu0 0
  %1044 = vmatpush1.bf16.msra.mxu0 0
  %1045 = vmatprep.subr.bf16.mxu0 0
  %1046 = vmatpush1.bf16.msra.mxu0 0
  %1047 = vmatprep.subr.bf16.mxu0 0
  %1048 = vmatpush1.bf16.msra.mxu0 0
  %1049 = vmatprep.mubr.bf16.mxu0 0
  %1050 = vmatmul.mubr.bf16.gmra.mrb[0].mxu0 %v1012
  %v1051 = vpop.f32.mrb[0].mxu0
  %v1052 = vadd.f32 0.0, %v1051
  %v1053 = vpop.f32.mrb[0].mxu0
  %v1054 = vpop.f32.mrb[0].mxu0
  %v1055 = vpop.f32.mrb[0].mxu0
  %1056 = vdwg.mxu0
  %v1057 = vpack.c.bf16 %v716, %v716
  %v1058 = vpack.c.bf16 %v764, %v764
  %v1059 = vpack.c.bf16 %v812, %v812
  %v1060 = vpack.c.bf16 %v860, %v860
  %v1061 = vpack.c.bf16 %v908, %v908
  %v1062 = vpack.c.bf16 %v956, %v956
  %v1063 = vpack.c.bf16 %v1004, %v1004
  %v1064 = vpack.c.bf16 %v1052, %v1052
  %v1065 = vld [vmem:[%s2] sm:$0xf]
  %v1066 = vld [vmem:[%s2 + $0x4] sm:$0xf]
  %v1067 = vld [vmem:[%s2 + $0x8] sm:$0xf]
  %v1068 = vld [vmem:[%s2 + $0xc] sm:$0xf]
  %v1071 = vunpack.c.l.b16 %v1059
  %v1072 = vunpack.c.l.b16 %v1060
  %v1073 = vpack.c.b16 %v1072, %v1071
  %v1075 = vsel %vm168, %v1073, 0
  %v1078 = vsel %vm677, %v1066, 0
  %1080 = vmatprep.subr.bf16.mxu0 0
  %1081 = vmatpush1.bf16.msra.mxu0 %v1078
  %1082 = vmatprep.subr.bf16.mxu0 0
  %1083 = vmatpush1.bf16.msra.mxu0 0
  %1084 = vmatprep.subr.bf16.mxu0 0
  %1085 = vmatpush1.bf16.msra.mxu0 0
  %1086 = vmatprep.subr.bf16.mxu0 0
  %1087 = vmatpush1.bf16.msra.mxu0 0
  %1088 = vmatprep.subr.bf16.mxu0 0
  %1089 = vmatpush1.bf16.msra.mxu0 0
  %1090 = vmatprep.subr.bf16.mxu0 0
  %1091 = vmatpush1.bf16.msra.mxu0 0
  %1092 = vmatprep.subr.bf16.mxu0 0
  %1093 = vmatpush1.bf16.msra.mxu0 0
  %1094 = vmatprep.subr.bf16.mxu0 0
  %1095 = vmatpush1.bf16.msra.mxu0 0
  %1096 = vmatprep.subr.bf16.mxu0 0
  %1097 = vmatpush1.bf16.msra.mxu0 0
  %1098 = vmatprep.subr.bf16.mxu0 0
  %1099 = vmatpush1.bf16.msra.mxu0 0
  %1100 = vmatprep.subr.bf16.mxu0 0
  %1101 = vmatpush1.bf16.msra.mxu0 0
  %1102 = vmatprep.subr.bf16.mxu0 0
  %1103 = vmatpush1.bf16.msra.mxu0 0
  %1104 = vmatprep.subr.bf16.mxu0 0
  %1105 = vmatpush1.bf16.msra.mxu0 0
  %1106 = vmatprep.subr.bf16.mxu0 0
  %1107 = vmatpush1.bf16.msra.mxu0 0
  %1108 = vmatprep.subr.bf16.mxu0 0
  %1109 = vmatpush1.bf16.msra.mxu0 0
  %1110 = vmatprep.subr.bf16.mxu0 0
  %1111 = vmatpush1.bf16.msra.mxu0 0
  %1112 = vmatprep.mubr.bf16.mxu0 0
  %1113 = vmatmul.mubr.bf16.gmra.mrb[0].mxu0 %v1075
  %v1114 = vpop.f32.mrb[0].mxu0
  %v1115 = vadd.f32 0.0, %v1114
  %v1116 = vpop.f32.mrb[0].mxu0
  %v1117 = vpop.f32.mrb[0].mxu0
  %v1118 = vadd.f32 0.0, %v1117
  %v1119 = vpop.f32.mrb[0].mxu0
  %1120 = vdwg.mxu0
  %v1123 = vunpack.c.l.b16 %v1057
  %v1124 = vunpack.c.l.b16 %v1058
  %v1125 = vpack.c.b16 %v1124, %v1123
  %v1127 = vsel %vm168, %v1125, 0
  %v1130 = vsel %vm677, %v1065, 0
  %1132 = vmatprep.subr.bf16.mxu0 0
  %1133 = vmatpush1.bf16.msra.mxu0 %v1130
  %1134 = vmatprep.subr.bf16.mxu0 0
  %1135 = vmatpush1.bf16.msra.mxu0 0
  %1136 = vmatprep.subr.bf16.mxu0 0
  %1137 = vmatpush1.bf16.msra.mxu0 0
  %1138 = vmatprep.subr.bf16.mxu0 0
  %1139 = vmatpush1.bf16.msra.mxu0 0
  %1140 = vmatprep.subr.bf16.mxu0 0
  %1141 = vmatpush1.bf16.msra.mxu0 0
  %1142 = vmatprep.subr.bf16.mxu0 0
  %1143 = vmatpush1.bf16.msra.mxu0 0
  %1144 = vmatprep.subr.bf16.mxu0 0
  %1145 = vmatpush1.bf16.msra.mxu0 0
  %1146 = vmatprep.subr.bf16.mxu0 0
  %1147 = vmatpush1.bf16.msra.mxu0 0
  %1148 = vmatprep.subr.bf16.mxu0 0
  %1149 = vmatpush1.bf16.msra.mxu0 0
  %1150 = vmatprep.subr.bf16.mxu0 0
  %1151 = vmatpush1.bf16.msra.mxu0 0
  %1152 = vmatprep.subr.bf16.mxu0 0
  %1153 = vmatpush1.bf16.msra.mxu0 0
  %1154 = vmatprep.subr.bf16.mxu0 0
  %1155 = vmatpush1.bf16.msra.mxu0 0
  %1156 = vmatprep.subr.bf16.mxu0 0
  %1157 = vmatpush1.bf16.msra.mxu0 0
  %1158 = vmatprep.subr.bf16.mxu0 0
  %1159 = vmatpush1.bf16.msra.mxu0 0
  %1160 = vmatprep.subr.bf16.mxu0 0
  %1161 = vmatpush1.bf16.msra.mxu0 0
  %1162 = vmatprep.subr.bf16.mxu0 0
  %1163 = vmatpush1.bf16.msra.mxu0 0
  %1164 = vmatprep.mubr.bf16.mxu0 0
  %1165 = vmatmul.mubr.bf16.gmra.mrb[0].mxu0 %v1127
  %v1166 = vpop.f32.mrb[0].mxu0
  %v1167 = vadd.f32 %v1115, %v1166
  %v1168 = vpop.f32.mrb[0].mxu0
  %v1169 = vpop.f32.mrb[0].mxu0
  %v1170 = vadd.f32 %v1118, %v1169
  %v1171 = vpop.f32.mrb[0].mxu0
  %1172 = vdwg.mxu0
  %v1175 = vunpack.c.l.b16 %v1061
  %v1176 = vunpack.c.l.b16 %v1062
  %v1177 = vpack.c.b16 %v1176, %v1175
  %v1179 = vsel %vm168, %v1177, 0
  %v1182 = vsel %vm677, %v1067, 0
  %1184 = vmatprep.subr.bf16.mxu0 0
  %1185 = vmatpush1.bf16.msra.mxu0 %v1182
  %1186 = vmatprep.subr.bf16.mxu0 0
  %1187 = vmatpush1.bf16.msra.mxu0 0
  %1188 = vmatprep.subr.bf16.mxu0 0
  %1189 = vmatpush1.bf16.msra.mxu0 0
  %1190 = vmatprep.subr.bf16.mxu0 0
  %1191 = vmatpush1.bf16.msra.mxu0 0
  %1192 = vmatprep.subr.bf16.mxu0 0
  %1193 = vmatpush1.bf16.msra.mxu0 0
  %1194 = vmatprep.subr.bf16.mxu0 0
  %1195 = vmatpush1.bf16.msra.mxu0 0
  %1196 = vmatprep.subr.bf16.mxu0 0
  %1197 = vmatpush1.bf16.msra.mxu0 0
  %1198 = vmatprep.subr.bf16.mxu0 0
  %1199 = vmatpush1.bf16.msra.mxu0 0
  %1200 = vmatprep.subr.bf16.mxu0 0
  %1201 = vmatpush1.bf16.msra.mxu0 0
  %1202 = vmatprep.subr.bf16.mxu0 0
  %1203 = vmatpush1.bf16.msra.mxu0 0
  %1204 = vmatprep.subr.bf16.mxu0 0
  %1205 = vmatpush1.bf16.msra.mxu0 0
  %1206 = vmatprep.subr.bf16.mxu0 0
  %1207 = vmatpush1.bf16.msra.mxu0 0
  %1208 = vmatprep.subr.bf16.mxu0 0
  %1209 = vmatpush1.bf16.msra.mxu0 0
  %1210 = vmatprep.subr.bf16.mxu0 0
  %1211 = vmatpush1.bf16.msra.mxu0 0
  %1212 = vmatprep.subr.bf16.mxu0 0
  %1213 = vmatpush1.bf16.msra.mxu0 0
  %1214 = vmatprep.subr.bf16.mxu0 0
  %1215 = vmatpush1.bf16.msra.mxu0 0
  %1216 = vmatprep.mubr.bf16.mxu0 0
  %1217 = vmatmul.mubr.bf16.gmra.mrb[0].mxu0 %v1179
  %v1218 = vpop.f32.mrb[0].mxu0
  %v1219 = vadd.f32 0.0, %v1218
  %v1220 = vpop.f32.mrb[0].mxu0
  %v1221 = vpop.f32.mrb[0].mxu0
  %v1222 = vadd.f32 0.0, %v1221
  %v1223 = vpop.f32.mrb[0].mxu0
  %1224 = vdwg.mxu0
  %v1225 = vadd.f32 %v1167, %v1219
  %v1226 = vadd.f32 %v1170, %v1222
  %v1229 = vunpack.c.l.b16 %v1063
  %v1230 = vunpack.c.l.b16 %v1064
  %v1231 = vpack.c.b16 %v1230, %v1229
  %v1233 = vsel %vm168, %v1231, 0
  %v1236 = vsel %vm677, %v1068, 0
  %1238 = vmatprep.subr.bf16.mxu0 0
  %1239 = vmatpush1.bf16.msra.mxu0 %v1236
  %1240 = vmatprep.subr.bf16.mxu0 0
  %1241 = vmatpush1.bf16.msra.mxu0 0
  %1242 = vmatprep.subr.bf16.mxu0 0
  %1243 = vmatpush1.bf16.msra.mxu0 0
  %1244 = vmatprep.subr.bf16.mxu0 0
  %1245 = vmatpush1.bf16.msra.mxu0 0
  %1246 = vmatprep.subr.bf16.mxu0 0
  %1247 = vmatpush1.bf16.msra.mxu0 0
  %1248 = vmatprep.subr.bf16.mxu0 0
  %1249 = vmatpush1.bf16.msra.mxu0 0
  %1250 = vmatprep.subr.bf16.mxu0 0
  %1251 = vmatpush1.bf16.msra.mxu0 0
  %1252 = vmatprep.subr.bf16.mxu0 0
  %1253 = vmatpush1.bf16.msra.mxu0 0
  %1254 = vmatprep.subr.bf16.mxu0 0
  %1255 = vmatpush1.bf16.msra.mxu0 0
  %1256 = vmatprep.subr.bf16.mxu0 0
  %1257 = vmatpush1.bf16.msra.mxu0 0
  %1258 = vmatprep.subr.bf16.mxu0 0
  %1259 = vmatpush1.bf16.msra.mxu0 0
  %1260 = vmatprep.subr.bf16.mxu0 0
  %1261 = vmatpush1.bf16.msra.mxu0 0
  %1262 = vmatprep.subr.bf16.mxu0 0
  %1263 = vmatpush1.bf16.msra.mxu0 0
  %1264 = vmatprep.subr.bf16.mxu0 0
  %1265 = vmatpush1.bf16.msra.mxu0 0
  %1266 = vmatprep.subr.bf16.mxu0 0
  %1267 = vmatpush1.bf16.msra.mxu0 0
  %1268 = vmatprep.subr.bf16.mxu0 0
  %1269 = vmatpush1.bf16.msra.mxu0 0
  %1270 = vmatprep.mubr.bf16.mxu0 0
  %1271 = vmatmul.mubr.bf16.gmra.mrb[0].mxu0 %v1233
  %v1272 = vpop.f32.mrb[0].mxu0
  %v1273 = vadd.f32 0.0, %v1272
  %v1274 = vpop.f32.mrb[0].mxu0
  %v1275 = vpop.f32.mrb[0].mxu0
  %v1276 = vadd.f32 0.0, %v1275
  %v1277 = vpop.f32.mrb[0].mxu0
  %1278 = vdwg.mxu0
  %v1279 = vadd.f32 %v1225, %v1273
  %v1280 = vadd.f32 %v1226, %v1276
  %v1281 = vadd.f32 %v29, %v1279
  %v1282 = vadd.f32 %v30, %v1280
  %v1283 = vlaneseq
  %v1284 = vshrl.u32 %v1283, 7
  %v1285 = vsub.s32 3, %v1284
  %v1286 = vrot.slane %v31, %v1285
  %v1287 = vadd.f32 %v1281, %v1286
  %v1288 = vadd.f32 %v1282, %v1286
  %v1289 = vsel %vm32, %v1287, 0.0
  %1290 = vadd.xlane.f32.xlu0 %v1289
  %v1291 = vpop.xlane.xlu0 %1290
  %v1292 = vsel %vm32, %v1288, 0.0
  %1293 = vadd.xlane.f32.xlu0 %v1292
  %v1294 = vpop.xlane.xlu0 %1293
  %v1295 = vmul.f32 %v1291, %v39
  %v1296 = vmul.f32 %v1294, %v39
  %v1297 = vsub.f32 %v1287, %v1295
  %v1298 = vsub.f32 %v1288, %v1296
  %v1299 = vmul.f32 %v1297, %v1297
  %v1300 = vmul.f32 %v1298, %v1298
  %v1301 = vsel %vm32, %v1299, 0.0
  %1302 = vadd.xlane.f32.xlu0 %v1301
  %v1303 = vpop.xlane.xlu0 %1302
  %v1304 = vsel %vm32, %v1300, 0.0
  %1305 = vadd.xlane.f32.xlu0 %v1304
  %v1306 = vpop.xlane.xlu0 %1305
  %v1307 = vmul.f32 %v1303, %v39
  %v1308 = vmul.f32 %v1306, %v39
  %v1309 = vadd.f32 %v1307, 1e-05
  %v1310 = vadd.f32 %v1308, 1e-05
  %v1311 = vrsqrt.pop %v1309
  %v1312 = vrsqrt.pop %v1310
  %v1313 = vmul.f32 %v1297, %v1311
  %v1314 = vmul.f32 %v1298, %v1312
  %v1315 = vlaneseq
  %v1316 = vshrl.u32 %v1315, 7
  %v1317 = vsub.s32 4, %v1316
  %v1318 = vrot.slane %v31, %v1317
  %v1319 = vmul.f32 %v1313, %v1318
  %v1320 = vmul.f32 %v1314, %v1318
  %v1321 = vlaneseq
  %v1322 = vshrl.u32 %v1321, 7
  %v1323 = vsub.s32 5, %v1322
  %v1324 = vrot.slane %v31, %v1323
  %v1325 = vadd.f32 %v1319, %v1324
  %v1326 = vadd.f32 %v1320, %v1324
  %v1327 = vpack.c.bf16 %v1326, %v1325
  %v1328 = vld [vmem:[%s3] sm:$0xf]
  %v1329 = vld [vmem:[%s3 + $0x4] sm:$0xf]
  %v1330 = vld [vmem:[%s3 + $0x8] sm:$0xf]
  %v1331 = vld [vmem:[%s3 + $0xc] sm:$0xf]
  %v1332 = vlaneseq
  %v1333 = vshrl.u32 %v1332, 7
  %v1334 = vsub.s32 6, %v1333
  %v1335 = vrot.slane %v31, %v1334
  %v1340 = vunpack.c.l.b16 %v1328
  %v1341 = vunpack.c.l.b16 %v1329
  %v1342 = vunpack.c.l.b16 %v1330
  %v1343 = vunpack.c.l.b16 %v1331
  %v1344 = vpack.c.b16 %v1341, %v1340
  %v1345 = vpack.c.b16 %v1343, %v1342
  %v1349 = vsel %vm32, %v1327, 0
  %1351 = vmatprep.subr.bf16.mxu0 0
  %1352 = vmatpush1.bf16.msra.mxu0 %v1344
  %1353 = vmatprep.subr.bf16.mxu0 0
  %1354 = vmatpush1.bf16.msra.mxu0 %v1345
  %1355 = vmatprep.subr.bf16.mxu0 0
  %1356 = vmatpush1.bf16.msra.mxu0 0
  %1357 = vmatprep.subr.bf16.mxu0 0
  %1358 = vmatpush1.bf16.msra.mxu0 0
  %1359 = vmatprep.subr.bf16.mxu0 0
  %1360 = vmatpush1.bf16.msra.mxu0 0
  %1361 = vmatprep.subr.bf16.mxu0 0
  %1362 = vmatpush1.bf16.msra.mxu0 0
  %1363 = vmatprep.subr.bf16.mxu0 0
  %1364 = vmatpush1.bf16.msra.mxu0 0
  %1365 = vmatprep.subr.bf16.mxu0 0
  %1366 = vmatpush1.bf16.msra.mxu0 0
  %1367 = vmatprep.subr.bf16.mxu0 0
  %1368 = vmatpush1.bf16.msra.mxu0 0
  %1369 = vmatprep.subr.bf16.mxu0 0
  %1370 = vmatpush1.bf16.msra.mxu0 0
  %1371 = vmatprep.subr.bf16.mxu0 0
  %1372 = vmatpush1.bf16.msra.mxu0 0
  %1373 = vmatprep.subr.bf16.mxu0 0
  %1374 = vmatpush1.bf16.msra.mxu0 0
  %1375 = vmatprep.subr.bf16.mxu0 0
  %1376 = vmatpush1.bf16.msra.mxu0 0
  %1377 = vmatprep.subr.bf16.mxu0 0
  %1378 = vmatpush1.bf16.msra.mxu0 0
  %1379 = vmatprep.subr.bf16.mxu0 0
  %1380 = vmatpush1.bf16.msra.mxu0 0
  %1381 = vmatprep.subr.bf16.mxu0 0
  %1382 = vmatpush1.bf16.msra.mxu0 0
  %1383 = vmatprep.mubr.bf16.mxu0 0
  %1384 = vmatmul.mubr.bf16.gmra.mrb[0].mxu0 %v1349
  %v1385 = vpop.f32.mrb[0].mxu0
  %v1386 = vadd.f32 %v1335, %v1385
  %v1387 = vpop.f32.mrb[0].mxu0
  %v1388 = vpop.f32.mrb[0].mxu0
  %v1389 = vadd.f32 %v1335, %v1388
  %v1390 = vpop.f32.mrb[0].mxu0
  %1391 = vdwg.mxu0
  %v1392 = vmul.f32 %v1386, 0.5
  %v1393 = vmul.f32 %v1389, 0.5
  %v1394 = vmul.f32 %v1386, 0.044715
  %v1395 = vmul.f32 %v1389, 0.044715
  %v1396 = vmul.f32 %v1394, %v1386
  %v1397 = vmul.f32 %v1395, %v1389
  %v1398 = vmul.f32 %v1396, %v1386
  %v1399 = vmul.f32 %v1397, %v1389
  %v1400 = vadd.f32 %v1386, %v1398
  %v1401 = vadd.f32 %v1389, %v1399
  %v1402 = vmul.f32 %v1400, 0.7978846
  %v1403 = vmul.f32 %v1401, 0.7978846
  %v1404 = vtanh.pop %v1402
  %v1405 = vtanh.pop %v1403
  %v1406 = vadd.f32 %v1404, 1.0
  %v1407 = vadd.f32 %v1405, 1.0
  %v1408 = vmul.f32 %v1392, %v1406
  %v1409 = vmul.f32 %v1393, %v1407
  %v1410 = vpack.c.bf16 %v1409, %v1408
  %v1411 = vld [vmem:[%s4] sm:$0xf]
  %v1412 = vld [vmem:[%s4 + $0x4] sm:$0xf]
  %v1413 = vld [vmem:[%s4 + $0x8] sm:$0xf]
  %v1414 = vld [vmem:[%s4 + $0xc] sm:$0xf]
  %v1415 = vld [vmem:[%s4 + $0x10] sm:$0xf]
  %v1416 = vld [vmem:[%s4 + $0x14] sm:$0xf]
  %v1417 = vld [vmem:[%s4 + $0x18] sm:$0xf]
  %v1418 = vld [vmem:[%s4 + $0x1c] sm:$0xf]
  %v1419 = vld [vmem:[%s4 + $0x20] sm:$0xf]
  %v1420 = vld [vmem:[%s4 + $0x24] sm:$0xf]
  %v1421 = vld [vmem:[%s4 + $0x28] sm:$0xf]
  %v1422 = vld [vmem:[%s4 + $0x2c] sm:$0xf]
  %v1423 = vld [vmem:[%s4 + $0x30] sm:$0xf]
  %v1424 = vld [vmem:[%s4 + $0x34] sm:$0xf]
  %v1425 = vld [vmem:[%s4 + $0x38] sm:$0xf]
  %v1426 = vld [vmem:[%s4 + $0x3c] sm:$0xf]
  %v1427 = vlaneseq
  %v1428 = vshrl.u32 %v1427, 7
  %v1429 = vsub.s32 7, %v1428
  %v1430 = vrot.slane %v31, %v1429
  %v1447 = vunpack.c.l.b16 %v1411
  %v1448 = vunpack.c.l.b16 %v1412
  %v1449 = vunpack.c.l.b16 %v1413
  %v1450 = vunpack.c.l.b16 %v1414
  %v1451 = vunpack.c.l.b16 %v1415
  %v1452 = vunpack.c.l.b16 %v1416
  %v1453 = vunpack.c.l.b16 %v1417
  %v1454 = vunpack.c.l.b16 %v1418
  %v1455 = vunpack.c.l.b16 %v1419
  %v1456 = vunpack.c.l.b16 %v1420
  %v1457 = vunpack.c.l.b16 %v1421
  %v1458 = vunpack.c.l.b16 %v1422
  %v1459 = vunpack.c.l.b16 %v1423
  %v1460 = vunpack.c.l.b16 %v1424
  %v1461 = vunpack.c.l.b16 %v1425
  %v1462 = vunpack.c.l.b16 %v1426
  %v1463 = vpack.c.b16 %v1448, %v1447
  %v1464 = vpack.c.b16 %v1450, %v1449
  %v1465 = vpack.c.b16 %v1452, %v1451
  %v1466 = vpack.c.b16 %v1454, %v1453
  %v1467 = vpack.c.b16 %v1456, %v1455
  %v1468 = vpack.c.b16 %v1458, %v1457
  %v1469 = vpack.c.b16 %v1460, %v1459
  %v1470 = vpack.c.b16 %v1462, %v1461
  %1479 = vmatprep.subr.bf16.mxu0 0
  %1480 = vmatpush1.bf16.msra.mxu0 %v1463
  %1481 = vmatprep.subr.bf16.mxu0 0
  %1482 = vmatpush1.bf16.msra.mxu0 %v1464
  %1483 = vmatprep.subr.bf16.mxu0 0
  %1484 = vmatpush1.bf16.msra.mxu0 %v1465
  %1485 = vmatprep.subr.bf16.mxu0 0
  %1486 = vmatpush1.bf16.msra.mxu0 %v1466
  %1487 = vmatprep.subr.bf16.mxu0 0
  %1488 = vmatpush1.bf16.msra.mxu0 %v1467
  %1489 = vmatprep.subr.bf16.mxu0 0
  %1490 = vmatpush1.bf16.msra.mxu0 %v1468
  %1491 = vmatprep.subr.bf16.mxu0 0
  %1492 = vmatpush1.bf16.msra.mxu0 %v1469
  %1493 = vmatprep.subr.bf16.mxu0 0
  %1494 = vmatpush1.bf16.msra.mxu0 %v1470
  %1495 = vmatprep.subr.bf16.mxu0 0
  %1496 = vmatpush1.bf16.msra.mxu0 0
  %1497 = vmatprep.subr.bf16.mxu0 0
  %1498 = vmatpush1.bf16.msra.mxu0 0
  %1499 = vmatprep.subr.bf16.mxu0 0
  %1500 = vmatpush1.bf16.msra.mxu0 0
  %1501 = vmatprep.subr.bf16.mxu0 0
  %1502 = vmatpush1.bf16.msra.mxu0 0
  %1503 = vmatprep.subr.bf16.mxu0 0
  %1504 = vmatpush1.bf16.msra.mxu0 0
  %1505 = vmatprep.subr.bf16.mxu0 0
  %1506 = vmatpush1.bf16.msra.mxu0 0
  %1507 = vmatprep.subr.bf16.mxu0 0
  %1508 = vmatpush1.bf16.msra.mxu0 0
  %1509 = vmatprep.subr.bf16.mxu0 0
  %1510 = vmatpush1.bf16.msra.mxu0 0
  %1511 = vmatprep.mubr.bf16.mxu0 0
  %1512 = vmatmul.mubr.bf16.gmra.mrb[0].mxu0 %v1410
  %v1513 = vpop.f32.mrb[0].mxu0
  %v1514 = vadd.f32 %v1430, %v1513
  %v1515 = vpop.f32.mrb[0].mxu0
  %v1516 = vpop.f32.mrb[0].mxu0
  %v1517 = vadd.f32 %v1430, %v1516
  %v1518 = vpop.f32.mrb[0].mxu0
  %1519 = vdwg.mxu0
  %v1520 = vadd.f32 %v1287, %v1514
  %v1521 = vadd.f32 %v1288, %v1517
  %s1522 = scalar_lea.vmem %s5, 8
  %v1523 = vld [vmem:[%s1522] sm:$0xff]
  %v1524 = vsel %vm32, %v1520, 0.0
  %1525 = vadd.xlane.f32.xlu0 %v1524
  %v1526 = vpop.xlane.xlu0 %1525
  %v1527 = vsel %vm32, %v1521, 0.0
  %1528 = vadd.xlane.f32.xlu0 %v1527
  %v1529 = vpop.xlane.xlu0 %1528
  %v1530 = vmul.f32 %v1526, %v39
  %v1531 = vmul.f32 %v1529, %v39
  %v1532 = vsub.f32 %v1520, %v1530
  %v1533 = vsub.f32 %v1521, %v1531
  %v1534 = vmul.f32 %v1532, %v1532
  %v1535 = vmul.f32 %v1533, %v1533
  %v1536 = vsel %vm32, %v1534, 0.0
  %1537 = vadd.xlane.f32.xlu0 %v1536
  %v1538 = vpop.xlane.xlu0 %1537
  %v1539 = vsel %vm32, %v1535, 0.0
  %1540 = vadd.xlane.f32.xlu0 %v1539
  %v1541 = vpop.xlane.xlu0 %1540
  %v1542 = vmul.f32 %v1538, %v39
  %v1543 = vmul.f32 %v1541, %v39
  %v1544 = vadd.f32 %v1542, 1e-05
  %v1545 = vadd.f32 %v1543, 1e-05
  %v1546 = vrsqrt.pop %v1544
  %v1547 = vrsqrt.pop %v1545
  %v1548 = vmul.f32 %v1532, %v1546
  %v1549 = vmul.f32 %v1533, %v1547
  %v1550 = vlaneseq
  %v1551 = vshrl.u32 %v1550, 7
  %v1552 = vsub.s32 0, %v1551
  %v1553 = vrot.slane %v1523, %v1552
  %v1554 = vmul.f32 %v1548, %v1553
  %v1555 = vmul.f32 %v1549, %v1553
  %v1556 = vlaneseq
  %v1557 = vshrl.u32 %v1556, 7
  %v1558 = vsub.s32 1, %v1557
  %v1559 = vrot.slane %v1523, %v1558
  %v1560 = vadd.f32 %v1554, %v1559
  %v1561 = vadd.f32 %v1555, %v1559
  %v1562 = vpack.c.bf16 %v1561, %v1560
  %s1563 = scalar_lea.vmem %s1, 16
  %v1564 = vld [vmem:[%s1563] sm:$0xf]
  %v1565 = vld [vmem:[%s1563 + $0x4] sm:$0xf]
  %v1566 = vld [vmem:[%s1563 + $0x8] sm:$0xf]
  %v1567 = vld [vmem:[%s1563 + $0xc] sm:$0xf]
  %v1568 = vlaneseq
  %v1569 = vshrl.u32 %v1568, 7
  %v1570 = vsub.s32 2, %v1569
  %v1571 = vrot.slane %v1523, %v1570
  %v1576 = vunpack.c.l.b16 %v1564
  %v1577 = vunpack.c.l.b16 %v1565
  %v1578 = vunpack.c.l.b16 %v1566
  %v1579 = vunpack.c.l.b16 %v1567
  %v1580 = vpack.c.b16 %v1577, %v1576
  %v1581 = vpack.c.b16 %v1579, %v1578
  %v1585 = vsel %vm32, %v1562, 0
  %1587 = vmatprep.subr.bf16.mxu0 0
  %1588 = vmatpush1.bf16.msra.mxu0 %v1580
  %1589 = vmatprep.subr.bf16.mxu0 0
  %1590 = vmatpush1.bf16.msra.mxu0 %v1581
  %1591 = vmatprep.subr.bf16.mxu0 0
  %1592 = vmatpush1.bf16.msra.mxu0 0
  %1593 = vmatprep.subr.bf16.mxu0 0
  %1594 = vmatpush1.bf16.msra.mxu0 0
  %1595 = vmatprep.subr.bf16.mxu0 0
  %1596 = vmatpush1.bf16.msra.mxu0 0
  %1597 = vmatprep.subr.bf16.mxu0 0
  %1598 = vmatpush1.bf16.msra.mxu0 0
  %1599 = vmatprep.subr.bf16.mxu0 0
  %1600 = vmatpush1.bf16.msra.mxu0 0
  %1601 = vmatprep.subr.bf16.mxu0 0
  %1602 = vmatpush1.bf16.msra.mxu0 0
  %1603 = vmatprep.subr.bf16.mxu0 0
  %1604 = vmatpush1.bf16.msra.mxu0 0
  %1605 = vmatprep.subr.bf16.mxu0 0
  %1606 = vmatpush1.bf16.msra.mxu0 0
  %1607 = vmatprep.subr.bf16.mxu0 0
  %1608 = vmatpush1.bf16.msra.mxu0 0
  %1609 = vmatprep.subr.bf16.mxu0 0
  %1610 = vmatpush1.bf16.msra.mxu0 0
  %1611 = vmatprep.subr.bf16.mxu0 0
  %1612 = vmatpush1.bf16.msra.mxu0 0
  %1613 = vmatprep.subr.bf16.mxu0 0
  %1614 = vmatpush1.bf16.msra.mxu0 0
  %1615 = vmatprep.subr.bf16.mxu0 0
  %1616 = vmatpush1.bf16.msra.mxu0 0
  %1617 = vmatprep.subr.bf16.mxu0 0
  %1618 = vmatpush1.bf16.msra.mxu0 0
  %1619 = vmatprep.mubr.bf16.mxu0 0
  %1620 = vmatmul.mubr.bf16.gmra.mrb[0].mxu0 %v1585
  %v1621 = vpop.f32.mrb[0].mxu0
  %v1622 = vadd.f32 %v1571, %v1621
  %v1623 = vpop.f32.mrb[0].mxu0
  %v1624 = vpop.f32.mrb[0].mxu0
  %v1625 = vadd.f32 %v1571, %v1624
  %v1626 = vpop.f32.mrb[0].mxu0
  %1627 = vdwg.mxu0
  %1630 = vrot.lane.b32.xlu0 %v1622, 120
  %v1631 = vpop.permute.xlu0 %1630
  %1632 = vrot.lane.b32.xlu0 %v1625, 120
  %v1633 = vpop.permute.xlu0 %1632
  %1636 = vrot.lane.b32.xlu0 %v1622, 112
  %v1637 = vpop.permute.xlu0 %1636
  %1638 = vrot.lane.b32.xlu0 %v1625, 112
  %v1639 = vpop.permute.xlu0 %1638
  %1642 = vrot.lane.b32.xlu0 %v1622, 104
  %v1643 = vpop.permute.xlu0 %1642
  %1644 = vrot.lane.b32.xlu0 %v1625, 104
  %v1645 = vpop.permute.xlu0 %1644
  %v1648 = vpack.c.bf16 %v1622, %v1622
  %v1649 = vpack.c.bf16 %v1625, %v1625
  %v1650 = vpack.c.bf16 %v1631, %v1631
  %v1651 = vpack.c.bf16 %v1633, %v1633
  %v1652 = vpack.c.bf16 %v1637, %v1637
  %v1653 = vpack.c.bf16 %v1639, %v1639
  %v1654 = vpack.c.bf16 %v1643, %v1643
  %v1655 = vpack.c.bf16 %v1645, %v1645
  %1657 = vrot.lane.b32.xlu0 %v1648, 96
  %v1658 = vpop.permute.xlu0 %1657
  %v1660 = vsel %vm168, %v1648, 0
  %v1663 = vsel %vm168, %v1658, 0
  %1665 = vmatprep.subr.bf16.mxu0 0
  %1666 = vmatpush1.bf16.xpose.msra.mxu0 %v1663
  %1667 = vmatprep.subr.bf16.mxu0 0
  %1668 = vmatpush1.bf16.xpose.msra.mxu0 0
  %1669 = vmatprep.subr.bf16.mxu0 0
  %1670 = vmatpush1.bf16.xpose.msra.mxu0 0
  %1671 = vmatprep.subr.bf16.mxu0 0
  %1672 = vmatpush1.bf16.xpose.msra.mxu0 0
  %1673 = vmatprep.subr.bf16.mxu0 0
  %1674 = vmatpush1.bf16.xpose.msra.mxu0 0
  %1675 = vmatprep.subr.bf16.mxu0 0
  %1676 = vmatpush1.bf16.xpose.msra.mxu0 0
  %1677 = vmatprep.subr.bf16.mxu0 0
  %1678 = vmatpush1.bf16.xpose.msra.mxu0 0
  %1679 = vmatprep.subr.bf16.mxu0 0
  %1680 = vmatpush1.bf16.xpose.msra.mxu0 0
  %1681 = vmatprep.subr.bf16.mxu0 0
  %1682 = vmatpush1.bf16.xpose.msra.mxu0 0
  %1683 = vmatprep.subr.bf16.mxu0 0
  %1684 = vmatpush1.bf16.xpose.msra.mxu0 0
  %1685 = vmatprep.subr.bf16.mxu0 0
  %1686 = vmatpush1.bf16.xpose.msra.mxu0 0
  %1687 = vmatprep.subr.bf16.mxu0 0
  %1688 = vmatpush1.bf16.xpose.msra.mxu0 0
  %1689 = vmatprep.subr.bf16.mxu0 0
  %1690 = vmatpush1.bf16.xpose.msra.mxu0 0
  %1691 = vmatprep.subr.bf16.mxu0 0
  %1692 = vmatpush1.bf16.xpose.msra.mxu0 0
  %1693 = vmatprep.subr.bf16.mxu0 0
  %1694 = vmatpush1.bf16.xpose.msra.mxu0 0
  %1695 = vmatprep.subr.bf16.mxu0 0
  %1696 = vmatpush1.bf16.xpose.msra.mxu0 0
  %1697 = vmatprep.mubr.bf16.mxu0 0
  %1698 = vmatmul.mubr.bf16.gmra.mrb[0].mxu0 %v1660
  %v1699 = vpop.f32.mrb[0].mxu0
  %v1700 = vadd.f32 0.0, %v1699
  %v1701 = vpop.f32.mrb[0].mxu0
  %v1702 = vpop.f32.mrb[0].mxu0
  %v1703 = vpop.f32.mrb[0].mxu0
  %1704 = vdwg.mxu0
  %1706 = vrot.lane.b32.xlu0 %v1649, 96
  %v1707 = vpop.permute.xlu0 %1706
  %v1709 = vsel %vm168, %v1649, 0
  %v1712 = vsel %vm168, %v1707, 0
  %1714 = vmatprep.subr.bf16.mxu0 0
  %1715 = vmatpush1.bf16.xpose.msra.mxu0 %v1712
  %1716 = vmatprep.subr.bf16.mxu0 0
  %1717 = vmatpush1.bf16.xpose.msra.mxu0 0
  %1718 = vmatprep.subr.bf16.mxu0 0
  %1719 = vmatpush1.bf16.xpose.msra.mxu0 0
  %1720 = vmatprep.subr.bf16.mxu0 0
  %1721 = vmatpush1.bf16.xpose.msra.mxu0 0
  %1722 = vmatprep.subr.bf16.mxu0 0
  %1723 = vmatpush1.bf16.xpose.msra.mxu0 0
  %1724 = vmatprep.subr.bf16.mxu0 0
  %1725 = vmatpush1.bf16.xpose.msra.mxu0 0
  %1726 = vmatprep.subr.bf16.mxu0 0
  %1727 = vmatpush1.bf16.xpose.msra.mxu0 0
  %1728 = vmatprep.subr.bf16.mxu0 0
  %1729 = vmatpush1.bf16.xpose.msra.mxu0 0
  %1730 = vmatprep.subr.bf16.mxu0 0
  %1731 = vmatpush1.bf16.xpose.msra.mxu0 0
  %1732 = vmatprep.subr.bf16.mxu0 0
  %1733 = vmatpush1.bf16.xpose.msra.mxu0 0
  %1734 = vmatprep.subr.bf16.mxu0 0
  %1735 = vmatpush1.bf16.xpose.msra.mxu0 0
  %1736 = vmatprep.subr.bf16.mxu0 0
  %1737 = vmatpush1.bf16.xpose.msra.mxu0 0
  %1738 = vmatprep.subr.bf16.mxu0 0
  %1739 = vmatpush1.bf16.xpose.msra.mxu0 0
  %1740 = vmatprep.subr.bf16.mxu0 0
  %1741 = vmatpush1.bf16.xpose.msra.mxu0 0
  %1742 = vmatprep.subr.bf16.mxu0 0
  %1743 = vmatpush1.bf16.xpose.msra.mxu0 0
  %1744 = vmatprep.subr.bf16.mxu0 0
  %1745 = vmatpush1.bf16.xpose.msra.mxu0 0
  %1746 = vmatprep.mubr.bf16.mxu0 0
  %1747 = vmatmul.mubr.bf16.gmra.mrb[0].mxu0 %v1709
  %v1748 = vpop.f32.mrb[0].mxu0
  %v1749 = vadd.f32 0.0, %v1748
  %v1750 = vpop.f32.mrb[0].mxu0
  %v1751 = vpop.f32.mrb[0].mxu0
  %v1752 = vpop.f32.mrb[0].mxu0
  %1753 = vdwg.mxu0
  %1755 = vrot.lane.b32.xlu0 %v1650, 96
  %v1756 = vpop.permute.xlu0 %1755
  %v1758 = vsel %vm168, %v1650, 0
  %v1761 = vsel %vm168, %v1756, 0
  %1763 = vmatprep.subr.bf16.mxu0 0
  %1764 = vmatpush1.bf16.xpose.msra.mxu0 %v1761
  %1765 = vmatprep.subr.bf16.mxu0 0
  %1766 = vmatpush1.bf16.xpose.msra.mxu0 0
  %1767 = vmatprep.subr.bf16.mxu0 0
  %1768 = vmatpush1.bf16.xpose.msra.mxu0 0
  %1769 = vmatprep.subr.bf16.mxu0 0
  %1770 = vmatpush1.bf16.xpose.msra.mxu0 0
  %1771 = vmatprep.subr.bf16.mxu0 0
  %1772 = vmatpush1.bf16.xpose.msra.mxu0 0
  %1773 = vmatprep.subr.bf16.mxu0 0
  %1774 = vmatpush1.bf16.xpose.msra.mxu0 0
  %1775 = vmatprep.subr.bf16.mxu0 0
  %1776 = vmatpush1.bf16.xpose.msra.mxu0 0
  %1777 = vmatprep.subr.bf16.mxu0 0
  %1778 = vmatpush1.bf16.xpose.msra.mxu0 0
  %1779 = vmatprep.subr.bf16.mxu0 0
  %1780 = vmatpush1.bf16.xpose.msra.mxu0 0
  %1781 = vmatprep.subr.bf16.mxu0 0
  %1782 = vmatpush1.bf16.xpose.msra.mxu0 0
  %1783 = vmatprep.subr.bf16.mxu0 0
  %1784 = vmatpush1.bf16.xpose.msra.mxu0 0
  %1785 = vmatprep.subr.bf16.mxu0 0
  %1786 = vmatpush1.bf16.xpose.msra.mxu0 0
  %1787 = vmatprep.subr.bf16.mxu0 0
  %1788 = vmatpush1.bf16.xpose.msra.mxu0 0
  %1789 = vmatprep.subr.bf16.mxu0 0
  %1790 = vmatpush1.bf16.xpose.msra.mxu0 0
  %1791 = vmatprep.subr.bf16.mxu0 0
  %1792 = vmatpush1.bf16.xpose.msra.mxu0 0
  %1793 = vmatprep.subr.bf16.mxu0 0
  %1794 = vmatpush1.bf16.xpose.msra.mxu0 0
  %1795 = vmatprep.mubr.bf16.mxu0 0
  %1796 = vmatmul.mubr.bf16.gmra.mrb[0].mxu0 %v1758
  %v1797 = vpop.f32.mrb[0].mxu0
  %v1798 = vadd.f32 0.0, %v1797
  %v1799 = vpop.f32.mrb[0].mxu0
  %v1800 = vpop.f32.mrb[0].mxu0
  %v1801 = vpop.f32.mrb[0].mxu0
  %1802 = vdwg.mxu0
  %1804 = vrot.lane.b32.xlu0 %v1651, 96
  %v1805 = vpop.permute.xlu0 %1804
  %v1807 = vsel %vm168, %v1651, 0
  %v1810 = vsel %vm168, %v1805, 0
  %1812 = vmatprep.subr.bf16.mxu0 0
  %1813 = vmatpush1.bf16.xpose.msra.mxu0 %v1810
  %1814 = vmatprep.subr.bf16.mxu0 0
  %1815 = vmatpush1.bf16.xpose.msra.mxu0 0
  %1816 = vmatprep.subr.bf16.mxu0 0
  %1817 = vmatpush1.bf16.xpose.msra.mxu0 0
  %1818 = vmatprep.subr.bf16.mxu0 0
  %1819 = vmatpush1.bf16.xpose.msra.mxu0 0
  %1820 = vmatprep.subr.bf16.mxu0 0
  %1821 = vmatpush1.bf16.xpose.msra.mxu0 0
  %1822 = vmatprep.subr.bf16.mxu0 0
  %1823 = vmatpush1.bf16.xpose.msra.mxu0 0
  %1824 = vmatprep.subr.bf16.mxu0 0
  %1825 = vmatpush1.bf16.xpose.msra.mxu0 0
  %1826 = vmatprep.subr.bf16.mxu0 0
  %1827 = vmatpush1.bf16.xpose.msra.mxu0 0
  %1828 = vmatprep.subr.bf16.mxu0 0
  %1829 = vmatpush1.bf16.xpose.msra.mxu0 0
  %1830 = vmatprep.subr.bf16.mxu0 0
  %1831 = vmatpush1.bf16.xpose.msra.mxu0 0
  %1832 = vmatprep.subr.bf16.mxu0 0
  %1833 = vmatpush1.bf16.xpose.msra.mxu0 0
  %1834 = vmatprep.subr.bf16.mxu0 0
  %1835 = vmatpush1.bf16.xpose.msra.mxu0 0
  %1836 = vmatprep.subr.bf16.mxu0 0
  %1837 = vmatpush1.bf16.xpose.msra.mxu0 0
  %1838 = vmatprep.subr.bf16.mxu0 0
  %1839 = vmatpush1.bf16.xpose.msra.mxu0 0
  %1840 = vmatprep.subr.bf16.mxu0 0
  %1841 = vmatpush1.bf16.xpose.msra.mxu0 0
  %1842 = vmatprep.subr.bf16.mxu0 0
  %1843 = vmatpush1.bf16.xpose.msra.mxu0 0
  %1844 = vmatprep.mubr.bf16.mxu0 0
  %1845 = vmatmul.mubr.bf16.gmra.mrb[0].mxu0 %v1807
  %v1846 = vpop.f32.mrb[0].mxu0
  %v1847 = vadd.f32 0.0, %v1846
  %v1848 = vpop.f32.mrb[0].mxu0
  %v1849 = vpop.f32.mrb[0].mxu0
  %v1850 = vpop.f32.mrb[0].mxu0
  %1851 = vdwg.mxu0
  %1853 = vrot.lane.b32.xlu0 %v1652, 96
  %v1854 = vpop.permute.xlu0 %1853
  %v1856 = vsel %vm168, %v1652, 0
  %v1859 = vsel %vm168, %v1854, 0
  %1861 = vmatprep.subr.bf16.mxu0 0
  %1862 = vmatpush1.bf16.xpose.msra.mxu0 %v1859
  %1863 = vmatprep.subr.bf16.mxu0 0
  %1864 = vmatpush1.bf16.xpose.msra.mxu0 0
  %1865 = vmatprep.subr.bf16.mxu0 0
  %1866 = vmatpush1.bf16.xpose.msra.mxu0 0
  %1867 = vmatprep.subr.bf16.mxu0 0
  %1868 = vmatpush1.bf16.xpose.msra.mxu0 0
  %1869 = vmatprep.subr.bf16.mxu0 0
  %1870 = vmatpush1.bf16.xpose.msra.mxu0 0
  %1871 = vmatprep.subr.bf16.mxu0 0
  %1872 = vmatpush1.bf16.xpose.msra.mxu0 0
  %1873 = vmatprep.subr.bf16.mxu0 0
  %1874 = vmatpush1.bf16.xpose.msra.mxu0 0
  %1875 = vmatprep.subr.bf16.mxu0 0
  %1876 = vmatpush1.bf16.xpose.msra.mxu0 0
  %1877 = vmatprep.subr.bf16.mxu0 0
  %1878 = vmatpush1.bf16.xpose.msra.mxu0 0
  %1879 = vmatprep.subr.bf16.mxu0 0
  %1880 = vmatpush1.bf16.xpose.msra.mxu0 0
  %1881 = vmatprep.subr.bf16.mxu0 0
  %1882 = vmatpush1.bf16.xpose.msra.mxu0 0
  %1883 = vmatprep.subr.bf16.mxu0 0
  %1884 = vmatpush1.bf16.xpose.msra.mxu0 0
  %1885 = vmatprep.subr.bf16.mxu0 0
  %1886 = vmatpush1.bf16.xpose.msra.mxu0 0
  %1887 = vmatprep.subr.bf16.mxu0 0
  %1888 = vmatpush1.bf16.xpose.msra.mxu0 0
  %1889 = vmatprep.subr.bf16.mxu0 0
  %1890 = vmatpush1.bf16.xpose.msra.mxu0 0
  %1891 = vmatprep.subr.bf16.mxu0 0
  %1892 = vmatpush1.bf16.xpose.msra.mxu0 0
  %1893 = vmatprep.mubr.bf16.mxu0 0
  %1894 = vmatmul.mubr.bf16.gmra.mrb[0].mxu0 %v1856
  %v1895 = vpop.f32.mrb[0].mxu0
  %v1896 = vadd.f32 0.0, %v1895
  %v1897 = vpop.f32.mrb[0].mxu0
  %v1898 = vpop.f32.mrb[0].mxu0
  %v1899 = vpop.f32.mrb[0].mxu0
  %1900 = vdwg.mxu0
  %1902 = vrot.lane.b32.xlu0 %v1653, 96
  %v1903 = vpop.permute.xlu0 %1902
  %v1905 = vsel %vm168, %v1653, 0
  %v1908 = vsel %vm168, %v1903, 0
  %1910 = vmatprep.subr.bf16.mxu0 0
  %1911 = vmatpush1.bf16.xpose.msra.mxu0 %v1908
  %1912 = vmatprep.subr.bf16.mxu0 0
  %1913 = vmatpush1.bf16.xpose.msra.mxu0 0
  %1914 = vmatprep.subr.bf16.mxu0 0
  %1915 = vmatpush1.bf16.xpose.msra.mxu0 0
  %1916 = vmatprep.subr.bf16.mxu0 0
  %1917 = vmatpush1.bf16.xpose.msra.mxu0 0
  %1918 = vmatprep.subr.bf16.mxu0 0
  %1919 = vmatpush1.bf16.xpose.msra.mxu0 0
  %1920 = vmatprep.subr.bf16.mxu0 0
  %1921 = vmatpush1.bf16.xpose.msra.mxu0 0
  %1922 = vmatprep.subr.bf16.mxu0 0
  %1923 = vmatpush1.bf16.xpose.msra.mxu0 0
  %1924 = vmatprep.subr.bf16.mxu0 0
  %1925 = vmatpush1.bf16.xpose.msra.mxu0 0
  %1926 = vmatprep.subr.bf16.mxu0 0
  %1927 = vmatpush1.bf16.xpose.msra.mxu0 0
  %1928 = vmatprep.subr.bf16.mxu0 0
  %1929 = vmatpush1.bf16.xpose.msra.mxu0 0
  %1930 = vmatprep.subr.bf16.mxu0 0
  %1931 = vmatpush1.bf16.xpose.msra.mxu0 0
  %1932 = vmatprep.subr.bf16.mxu0 0
  %1933 = vmatpush1.bf16.xpose.msra.mxu0 0
  %1934 = vmatprep.subr.bf16.mxu0 0
  %1935 = vmatpush1.bf16.xpose.msra.mxu0 0
  %1936 = vmatprep.subr.bf16.mxu0 0
  %1937 = vmatpush1.bf16.xpose.msra.mxu0 0
  %1938 = vmatprep.subr.bf16.mxu0 0
  %1939 = vmatpush1.bf16.xpose.msra.mxu0 0
  %1940 = vmatprep.subr.bf16.mxu0 0
  %1941 = vmatpush1.bf16.xpose.msra.mxu0 0
  %1942 = vmatprep.mubr.bf16.mxu0 0
  %1943 = vmatmul.mubr.bf16.gmra.mrb[0].mxu0 %v1905
  %v1944 = vpop.f32.mrb[0].mxu0
  %v1945 = vadd.f32 0.0, %v1944
  %v1946 = vpop.f32.mrb[0].mxu0
  %v1947 = vpop.f32.mrb[0].mxu0
  %v1948 = vpop.f32.mrb[0].mxu0
  %1949 = vdwg.mxu0
  %1951 = vrot.lane.b32.xlu0 %v1654, 96
  %v1952 = vpop.permute.xlu0 %1951
  %v1954 = vsel %vm168, %v1654, 0
  %v1957 = vsel %vm168, %v1952, 0
  %1959 = vmatprep.subr.bf16.mxu0 0
  %1960 = vmatpush1.bf16.xpose.msra.mxu0 %v1957
  %1961 = vmatprep.subr.bf16.mxu0 0
  %1962 = vmatpush1.bf16.xpose.msra.mxu0 0
  %1963 = vmatprep.subr.bf16.mxu0 0
  %1964 = vmatpush1.bf16.xpose.msra.mxu0 0
  %1965 = vmatprep.subr.bf16.mxu0 0
  %1966 = vmatpush1.bf16.xpose.msra.mxu0 0
  %1967 = vmatprep.subr.bf16.mxu0 0
  %1968 = vmatpush1.bf16.xpose.msra.mxu0 0
  %1969 = vmatprep.subr.bf16.mxu0 0
  %1970 = vmatpush1.bf16.xpose.msra.mxu0 0
  %1971 = vmatprep.subr.bf16.mxu0 0
  %1972 = vmatpush1.bf16.xpose.msra.mxu0 0
  %1973 = vmatprep.subr.bf16.mxu0 0
  %1974 = vmatpush1.bf16.xpose.msra.mxu0 0
  %1975 = vmatprep.subr.bf16.mxu0 0
  %1976 = vmatpush1.bf16.xpose.msra.mxu0 0
  %1977 = vmatprep.subr.bf16.mxu0 0
  %1978 = vmatpush1.bf16.xpose.msra.mxu0 0
  %1979 = vmatprep.subr.bf16.mxu0 0
  %1980 = vmatpush1.bf16.xpose.msra.mxu0 0
  %1981 = vmatprep.subr.bf16.mxu0 0
  %1982 = vmatpush1.bf16.xpose.msra.mxu0 0
  %1983 = vmatprep.subr.bf16.mxu0 0
  %1984 = vmatpush1.bf16.xpose.msra.mxu0 0
  %1985 = vmatprep.subr.bf16.mxu0 0
  %1986 = vmatpush1.bf16.xpose.msra.mxu0 0
  %1987 = vmatprep.subr.bf16.mxu0 0
  %1988 = vmatpush1.bf16.xpose.msra.mxu0 0
  %1989 = vmatprep.subr.bf16.mxu0 0
  %1990 = vmatpush1.bf16.xpose.msra.mxu0 0
  %1991 = vmatprep.mubr.bf16.mxu0 0
  %1992 = vmatmul.mubr.bf16.gmra.mrb[0].mxu0 %v1954
  %v1993 = vpop.f32.mrb[0].mxu0
  %v1994 = vadd.f32 0.0, %v1993
  %v1995 = vpop.f32.mrb[0].mxu0
  %v1996 = vpop.f32.mrb[0].mxu0
  %v1997 = vpop.f32.mrb[0].mxu0
  %1998 = vdwg.mxu0
  %2000 = vrot.lane.b32.xlu0 %v1655, 96
  %v2001 = vpop.permute.xlu0 %2000
  %v2003 = vsel %vm168, %v1655, 0
  %v2006 = vsel %vm168, %v2001, 0
  %2008 = vmatprep.subr.bf16.mxu0 0
  %2009 = vmatpush1.bf16.xpose.msra.mxu0 %v2006
  %2010 = vmatprep.subr.bf16.mxu0 0
  %2011 = vmatpush1.bf16.xpose.msra.mxu0 0
  %2012 = vmatprep.subr.bf16.mxu0 0
  %2013 = vmatpush1.bf16.xpose.msra.mxu0 0
  %2014 = vmatprep.subr.bf16.mxu0 0
  %2015 = vmatpush1.bf16.xpose.msra.mxu0 0
  %2016 = vmatprep.subr.bf16.mxu0 0
  %2017 = vmatpush1.bf16.xpose.msra.mxu0 0
  %2018 = vmatprep.subr.bf16.mxu0 0
  %2019 = vmatpush1.bf16.xpose.msra.mxu0 0
  %2020 = vmatprep.subr.bf16.mxu0 0
  %2021 = vmatpush1.bf16.xpose.msra.mxu0 0
  %2022 = vmatprep.subr.bf16.mxu0 0
  %2023 = vmatpush1.bf16.xpose.msra.mxu0 0
  %2024 = vmatprep.subr.bf16.mxu0 0
  %2025 = vmatpush1.bf16.xpose.msra.mxu0 0
  %2026 = vmatprep.subr.bf16.mxu0 0
  %2027 = vmatpush1.bf16.xpose.msra.mxu0 0
  %2028 = vmatprep.subr.bf16.mxu0 0
  %2029 = vmatpush1.bf16.xpose.msra.mxu0 0
  %2030 = vmatprep.subr.bf16.mxu0 0
  %2031 = vmatpush1.bf16.xpose.msra.mxu0 0
  %2032 = vmatprep.subr.bf16.mxu0 0
  %2033 = vmatpush1.bf16.xpose.msra.mxu0 0
  %2034 = vmatprep.subr.bf16.mxu0 0
  %2035 = vmatpush1.bf16.xpose.msra.mxu0 0
  %2036 = vmatprep.subr.bf16.mxu0 0
  %2037 = vmatpush1.bf16.xpose.msra.mxu0 0
  %2038 = vmatprep.subr.bf16.mxu0 0
  %2039 = vmatpush1.bf16.xpose.msra.mxu0 0
  %2040 = vmatprep.mubr.bf16.mxu0 0
  %2041 = vmatmul.mubr.bf16.gmra.mrb[0].mxu0 %v2003
  %v2042 = vpop.f32.mrb[0].mxu0
  %v2043 = vadd.f32 0.0, %v2042
  %v2044 = vpop.f32.mrb[0].mxu0
  %v2045 = vpop.f32.mrb[0].mxu0
  %v2046 = vpop.f32.mrb[0].mxu0
  %2047 = vdwg.mxu0
  %v2048 = vmul.f32 %v1700, 0.35355338
  %v2049 = vmul.f32 %v1749, 0.35355338
  %v2050 = vmul.f32 %v1798, 0.35355338
  %v2051 = vmul.f32 %v1847, 0.35355338
  %v2052 = vmul.f32 %v1896, 0.35355338
  %v2053 = vmul.f32 %v1945, 0.35355338
  %v2054 = vmul.f32 %v1994, 0.35355338
  %v2055 = vmul.f32 %v2043, 0.35355338
  %v2056 = vsel %vm567, %v2048, -1e+30
  %v2057 = vsel %vm567, %v2049, -1e+30
  %v2058 = vsel %vm567, %v2050, -1e+30
  %v2059 = vsel %vm567, %v2051, -1e+30
  %v2060 = vsel %vm567, %v2052, -1e+30
  %v2061 = vsel %vm567, %v2053, -1e+30
  %v2062 = vsel %vm567, %v2054, -1e+30
  %v2063 = vsel %vm567, %v2055, -1e+30
  %v2064 = vsel %vm168, %v2056, -inf
  %2065 = vmax.xlane.f32.xlu0 %v2064
  %v2066 = vpop.xlane.xlu0 %2065
  %v2067 = vsel %vm168, %v2057, -inf
  %2068 = vmax.xlane.f32.xlu0 %v2067
  %v2069 = vpop.xlane.xlu0 %2068
  %v2070 = vsel %vm168, %v2058, -inf
  %2071 = vmax.xlane.f32.xlu0 %v2070
  %v2072 = vpop.xlane.xlu0 %2071
  %v2073 = vsel %vm168, %v2059, -inf
  %2074 = vmax.xlane.f32.xlu0 %v2073
  %v2075 = vpop.xlane.xlu0 %2074
  %v2076 = vsel %vm168, %v2060, -inf
  %2077 = vmax.xlane.f32.xlu0 %v2076
  %v2078 = vpop.xlane.xlu0 %2077
  %v2079 = vsel %vm168, %v2061, -inf
  %2080 = vmax.xlane.f32.xlu0 %v2079
  %v2081 = vpop.xlane.xlu0 %2080
  %v2082 = vsel %vm168, %v2062, -inf
  %2083 = vmax.xlane.f32.xlu0 %v2082
  %v2084 = vpop.xlane.xlu0 %2083
  %v2085 = vsel %vm168, %v2063, -inf
  %2086 = vmax.xlane.f32.xlu0 %v2085
  %v2087 = vpop.xlane.xlu0 %2086
  %v2088 = vsub.f32 %v2056, %v2066
  %v2089 = vsub.f32 %v2057, %v2069
  %v2090 = vsub.f32 %v2058, %v2072
  %v2091 = vsub.f32 %v2059, %v2075
  %v2092 = vsub.f32 %v2060, %v2078
  %v2093 = vsub.f32 %v2061, %v2081
  %v2094 = vsub.f32 %v2062, %v2084
  %v2095 = vsub.f32 %v2063, %v2087
  %v2096 = vmul.f32 %v2088, 1.442695
  %v2097 = vpow.pop %v2096
  %v2098 = vmul.f32 %v2089, 1.442695
  %v2099 = vpow.pop %v2098
  %v2100 = vmul.f32 %v2090, 1.442695
  %v2101 = vpow.pop %v2100
  %v2102 = vmul.f32 %v2091, 1.442695
  %v2103 = vpow.pop %v2102
  %v2104 = vmul.f32 %v2092, 1.442695
  %v2105 = vpow.pop %v2104
  %v2106 = vmul.f32 %v2093, 1.442695
  %v2107 = vpow.pop %v2106
  %v2108 = vmul.f32 %v2094, 1.442695
  %v2109 = vpow.pop %v2108
  %v2110 = vmul.f32 %v2095, 1.442695
  %v2111 = vpow.pop %v2110
  %v2112 = vsel %vm168, %v2097, 0.0
  %2113 = vadd.xlane.f32.xlu0 %v2112
  %v2114 = vpop.xlane.xlu0 %2113
  %v2115 = vsel %vm168, %v2099, 0.0
  %2116 = vadd.xlane.f32.xlu0 %v2115
  %v2117 = vpop.xlane.xlu0 %2116
  %v2118 = vsel %vm168, %v2101, 0.0
  %2119 = vadd.xlane.f32.xlu0 %v2118
  %v2120 = vpop.xlane.xlu0 %2119
  %v2121 = vsel %vm168, %v2103, 0.0
  %2122 = vadd.xlane.f32.xlu0 %v2121
  %v2123 = vpop.xlane.xlu0 %2122
  %v2124 = vsel %vm168, %v2105, 0.0
  %2125 = vadd.xlane.f32.xlu0 %v2124
  %v2126 = vpop.xlane.xlu0 %2125
  %v2127 = vsel %vm168, %v2107, 0.0
  %2128 = vadd.xlane.f32.xlu0 %v2127
  %v2129 = vpop.xlane.xlu0 %2128
  %v2130 = vsel %vm168, %v2109, 0.0
  %2131 = vadd.xlane.f32.xlu0 %v2130
  %v2132 = vpop.xlane.xlu0 %2131
  %v2133 = vsel %vm168, %v2111, 0.0
  %2134 = vadd.xlane.f32.xlu0 %v2133
  %v2135 = vpop.xlane.xlu0 %2134
  %v2136 = vrcp.pop %v2114
  %v2137 = vrcp.pop %v2117
  %v2138 = vrcp.pop %v2120
  %v2139 = vrcp.pop %v2123
  %v2140 = vrcp.pop %v2126
  %v2141 = vrcp.pop %v2129
  %v2142 = vrcp.pop %v2132
  %v2143 = vrcp.pop %v2135
  %v2144 = vmul.f32 %v2097, %v2136
  %v2145 = vmul.f32 %v2099, %v2137
  %v2146 = vmul.f32 %v2101, %v2138
  %v2147 = vmul.f32 %v2103, %v2139
  %v2148 = vmul.f32 %v2105, %v2140
  %v2149 = vmul.f32 %v2107, %v2141
  %v2150 = vmul.f32 %v2109, %v2142
  %v2151 = vmul.f32 %v2111, %v2143
  %v2152 = vpack.c.bf16 %v2144, %v2144
  %v2153 = vpack.c.bf16 %v2145, %v2145
  %v2154 = vpack.c.bf16 %v2146, %v2146
  %v2155 = vpack.c.bf16 %v2147, %v2147
  %v2156 = vpack.c.bf16 %v2148, %v2148
  %v2157 = vpack.c.bf16 %v2149, %v2149
  %v2158 = vpack.c.bf16 %v2150, %v2150
  %v2159 = vpack.c.bf16 %v2151, %v2151
  %2160 = vrot.lane.b32.xlu0 %v1648, 64
  %v2161 = vpop.permute.xlu0 %2160
  %v2163 = vsel %vm168, %v2152, 0
  %v2166 = vsel %vm677, %v2161, 0
  %2168 = vmatprep.subr.bf16.mxu0 0
  %2169 = vmatpush1.bf16.msra.mxu0 %v2166
  %2170 = vmatprep.subr.bf16.mxu0 0
  %2171 = vmatpush1.bf16.msra.mxu0 0
  %2172 = vmatprep.subr.bf16.mxu0 0
  %2173 = vmatpush1.bf16.msra.mxu0 0
  %2174 = vmatprep.subr.bf16.mxu0 0
  %2175 = vmatpush1.bf16.msra.mxu0 0
  %2176 = vmatprep.subr.bf16.mxu0 0
  %2177 = vmatpush1.bf16.msra.mxu0 0
  %2178 = vmatprep.subr.bf16.mxu0 0
  %2179 = vmatpush1.bf16.msra.mxu0 0
  %2180 = vmatprep.subr.bf16.mxu0 0
  %2181 = vmatpush1.bf16.msra.mxu0 0
  %2182 = vmatprep.subr.bf16.mxu0 0
  %2183 = vmatpush1.bf16.msra.mxu0 0
  %2184 = vmatprep.subr.bf16.mxu0 0
  %2185 = vmatpush1.bf16.msra.mxu0 0
  %2186 = vmatprep.subr.bf16.mxu0 0
  %2187 = vmatpush1.bf16.msra.mxu0 0
  %2188 = vmatprep.subr.bf16.mxu0 0
  %2189 = vmatpush1.bf16.msra.mxu0 0
  %2190 = vmatprep.subr.bf16.mxu0 0
  %2191 = vmatpush1.bf16.msra.mxu0 0
  %2192 = vmatprep.subr.bf16.mxu0 0
  %2193 = vmatpush1.bf16.msra.mxu0 0
  %2194 = vmatprep.subr.bf16.mxu0 0
  %2195 = vmatpush1.bf16.msra.mxu0 0
  %2196 = vmatprep.subr.bf16.mxu0 0
  %2197 = vmatpush1.bf16.msra.mxu0 0
  %2198 = vmatprep.subr.bf16.mxu0 0
  %2199 = vmatpush1.bf16.msra.mxu0 0
  %2200 = vmatprep.mubr.bf16.mxu0 0
  %2201 = vmatmul.mubr.bf16.gmra.mrb[0].mxu0 %v2163
  %v2202 = vpop.f32.mrb[0].mxu0
  %v2203 = vadd.f32 0.0, %v2202
  %v2204 = vpop.f32.mrb[0].mxu0
  %v2205 = vpop.f32.mrb[0].mxu0
  %v2206 = vpop.f32.mrb[0].mxu0
  %2207 = vdwg.mxu0
  %2208 = vrot.lane.b32.xlu0 %v1649, 64
  %v2209 = vpop.permute.xlu0 %2208
  %v2211 = vsel %vm168, %v2153, 0
  %v2214 = vsel %vm677, %v2209, 0
  %2216 = vmatprep.subr.bf16.mxu0 0
  %2217 = vmatpush1.bf16.msra.mxu0 %v2214
  %2218 = vmatprep.subr.bf16.mxu0 0
  %2219 = vmatpush1.bf16.msra.mxu0 0
  %2220 = vmatprep.subr.bf16.mxu0 0
  %2221 = vmatpush1.bf16.msra.mxu0 0
  %2222 = vmatprep.subr.bf16.mxu0 0
  %2223 = vmatpush1.bf16.msra.mxu0 0
  %2224 = vmatprep.subr.bf16.mxu0 0
  %2225 = vmatpush1.bf16.msra.mxu0 0
  %2226 = vmatprep.subr.bf16.mxu0 0
  %2227 = vmatpush1.bf16.msra.mxu0 0
  %2228 = vmatprep.subr.bf16.mxu0 0
  %2229 = vmatpush1.bf16.msra.mxu0 0
  %2230 = vmatprep.subr.bf16.mxu0 0
  %2231 = vmatpush1.bf16.msra.mxu0 0
  %2232 = vmatprep.subr.bf16.mxu0 0
  %2233 = vmatpush1.bf16.msra.mxu0 0
  %2234 = vmatprep.subr.bf16.mxu0 0
  %2235 = vmatpush1.bf16.msra.mxu0 0
  %2236 = vmatprep.subr.bf16.mxu0 0
  %2237 = vmatpush1.bf16.msra.mxu0 0
  %2238 = vmatprep.subr.bf16.mxu0 0
  %2239 = vmatpush1.bf16.msra.mxu0 0
  %2240 = vmatprep.subr.bf16.mxu0 0
  %2241 = vmatpush1.bf16.msra.mxu0 0
  %2242 = vmatprep.subr.bf16.mxu0 0
  %2243 = vmatpush1.bf16.msra.mxu0 0
  %2244 = vmatprep.subr.bf16.mxu0 0
  %2245 = vmatpush1.bf16.msra.mxu0 0
  %2246 = vmatprep.subr.bf16.mxu0 0
  %2247 = vmatpush1.bf16.msra.mxu0 0
  %2248 = vmatprep.mubr.bf16.mxu0 0
  %2249 = vmatmul.mubr.bf16.gmra.mrb[0].mxu0 %v2211
  %v2250 = vpop.f32.mrb[0].mxu0
  %v2251 = vadd.f32 0.0, %v2250
  %v2252 = vpop.f32.mrb[0].mxu0
  %v2253 = vpop.f32.mrb[0].mxu0
  %v2254 = vpop.f32.mrb[0].mxu0
  %2255 = vdwg.mxu0
  %2256 = vrot.lane.b32.xlu0 %v1650, 64
  %v2257 = vpop.permute.xlu0 %2256
  %v2259 = vsel %vm168, %v2154, 0
  %v2262 = vsel %vm677, %v2257, 0
  %2264 = vmatprep.subr.bf16.mxu0 0
  %2265 = vmatpush1.bf16.msra.mxu0 %v2262
  %2266 = vmatprep.subr.bf16.mxu0 0
  %2267 = vmatpush1.bf16.msra.mxu0 0
  %2268 = vmatprep.subr.bf16.mxu0 0
  %2269 = vmatpush1.bf16.msra.mxu0 0
  %2270 = vmatprep.subr.bf16.mxu0 0
  %2271 = vmatpush1.bf16.msra.mxu0 0
  %2272 = vmatprep.subr.bf16.mxu0 0
  %2273 = vmatpush1.bf16.msra.mxu0 0
  %2274 = vmatprep.subr.bf16.mxu0 0
  %2275 = vmatpush1.bf16.msra.mxu0 0
  %2276 = vmatprep.subr.bf16.mxu0 0
  %2277 = vmatpush1.bf16.msra.mxu0 0
  %2278 = vmatprep.subr.bf16.mxu0 0
  %2279 = vmatpush1.bf16.msra.mxu0 0
  %2280 = vmatprep.subr.bf16.mxu0 0
  %2281 = vmatpush1.bf16.msra.mxu0 0
  %2282 = vmatprep.subr.bf16.mxu0 0
  %2283 = vmatpush1.bf16.msra.mxu0 0
  %2284 = vmatprep.subr.bf16.mxu0 0
  %2285 = vmatpush1.bf16.msra.mxu0 0
  %2286 = vmatprep.subr.bf16.mxu0 0
  %2287 = vmatpush1.bf16.msra.mxu0 0
  %2288 = vmatprep.subr.bf16.mxu0 0
  %2289 = vmatpush1.bf16.msra.mxu0 0
  %2290 = vmatprep.subr.bf16.mxu0 0
  %2291 = vmatpush1.bf16.msra.mxu0 0
  %2292 = vmatprep.subr.bf16.mxu0 0
  %2293 = vmatpush1.bf16.msra.mxu0 0
  %2294 = vmatprep.subr.bf16.mxu0 0
  %2295 = vmatpush1.bf16.msra.mxu0 0
  %2296 = vmatprep.mubr.bf16.mxu0 0
  %2297 = vmatmul.mubr.bf16.gmra.mrb[0].mxu0 %v2259
  %v2298 = vpop.f32.mrb[0].mxu0
  %v2299 = vadd.f32 0.0, %v2298
  %v2300 = vpop.f32.mrb[0].mxu0
  %v2301 = vpop.f32.mrb[0].mxu0
  %v2302 = vpop.f32.mrb[0].mxu0
  %2303 = vdwg.mxu0
  %2304 = vrot.lane.b32.xlu0 %v1651, 64
  %v2305 = vpop.permute.xlu0 %2304
  %v2307 = vsel %vm168, %v2155, 0
  %v2310 = vsel %vm677, %v2305, 0
  %2312 = vmatprep.subr.bf16.mxu0 0
  %2313 = vmatpush1.bf16.msra.mxu0 %v2310
  %2314 = vmatprep.subr.bf16.mxu0 0
  %2315 = vmatpush1.bf16.msra.mxu0 0
  %2316 = vmatprep.subr.bf16.mxu0 0
  %2317 = vmatpush1.bf16.msra.mxu0 0
  %2318 = vmatprep.subr.bf16.mxu0 0
  %2319 = vmatpush1.bf16.msra.mxu0 0
  %2320 = vmatprep.subr.bf16.mxu0 0
  %2321 = vmatpush1.bf16.msra.mxu0 0
  %2322 = vmatprep.subr.bf16.mxu0 0
  %2323 = vmatpush1.bf16.msra.mxu0 0
  %2324 = vmatprep.subr.bf16.mxu0 0
  %2325 = vmatpush1.bf16.msra.mxu0 0
  %2326 = vmatprep.subr.bf16.mxu0 0
  %2327 = vmatpush1.bf16.msra.mxu0 0
  %2328 = vmatprep.subr.bf16.mxu0 0
  %2329 = vmatpush1.bf16.msra.mxu0 0
  %2330 = vmatprep.subr.bf16.mxu0 0
  %2331 = vmatpush1.bf16.msra.mxu0 0
  %2332 = vmatprep.subr.bf16.mxu0 0
  %2333 = vmatpush1.bf16.msra.mxu0 0
  %2334 = vmatprep.subr.bf16.mxu0 0
  %2335 = vmatpush1.bf16.msra.mxu0 0
  %2336 = vmatprep.subr.bf16.mxu0 0
  %2337 = vmatpush1.bf16.msra.mxu0 0
  %2338 = vmatprep.subr.bf16.mxu0 0
  %2339 = vmatpush1.bf16.msra.mxu0 0
  %2340 = vmatprep.subr.bf16.mxu0 0
  %2341 = vmatpush1.bf16.msra.mxu0 0
  %2342 = vmatprep.subr.bf16.mxu0 0
  %2343 = vmatpush1.bf16.msra.mxu0 0
  %2344 = vmatprep.mubr.bf16.mxu0 0
  %2345 = vmatmul.mubr.bf16.gmra.mrb[0].mxu0 %v2307
  %v2346 = vpop.f32.mrb[0].mxu0
  %v2347 = vadd.f32 0.0, %v2346
  %v2348 = vpop.f32.mrb[0].mxu0
  %v2349 = vpop.f32.mrb[0].mxu0
  %v2350 = vpop.f32.mrb[0].mxu0
  %2351 = vdwg.mxu0
  %2352 = vrot.lane.b32.xlu0 %v1652, 64
  %v2353 = vpop.permute.xlu0 %2352
  %v2355 = vsel %vm168, %v2156, 0
  %v2358 = vsel %vm677, %v2353, 0
  %2360 = vmatprep.subr.bf16.mxu0 0
  %2361 = vmatpush1.bf16.msra.mxu0 %v2358
  %2362 = vmatprep.subr.bf16.mxu0 0
  %2363 = vmatpush1.bf16.msra.mxu0 0
  %2364 = vmatprep.subr.bf16.mxu0 0
  %2365 = vmatpush1.bf16.msra.mxu0 0
  %2366 = vmatprep.subr.bf16.mxu0 0
  %2367 = vmatpush1.bf16.msra.mxu0 0
  %2368 = vmatprep.subr.bf16.mxu0 0
  %2369 = vmatpush1.bf16.msra.mxu0 0
  %2370 = vmatprep.subr.bf16.mxu0 0
  %2371 = vmatpush1.bf16.msra.mxu0 0
  %2372 = vmatprep.subr.bf16.mxu0 0
  %2373 = vmatpush1.bf16.msra.mxu0 0
  %2374 = vmatprep.subr.bf16.mxu0 0
  %2375 = vmatpush1.bf16.msra.mxu0 0
  %2376 = vmatprep.subr.bf16.mxu0 0
  %2377 = vmatpush1.bf16.msra.mxu0 0
  %2378 = vmatprep.subr.bf16.mxu0 0
  %2379 = vmatpush1.bf16.msra.mxu0 0
  %2380 = vmatprep.subr.bf16.mxu0 0
  %2381 = vmatpush1.bf16.msra.mxu0 0
  %2382 = vmatprep.subr.bf16.mxu0 0
  %2383 = vmatpush1.bf16.msra.mxu0 0
  %2384 = vmatprep.subr.bf16.mxu0 0
  %2385 = vmatpush1.bf16.msra.mxu0 0
  %2386 = vmatprep.subr.bf16.mxu0 0
  %2387 = vmatpush1.bf16.msra.mxu0 0
  %2388 = vmatprep.subr.bf16.mxu0 0
  %2389 = vmatpush1.bf16.msra.mxu0 0
  %2390 = vmatprep.subr.bf16.mxu0 0
  %2391 = vmatpush1.bf16.msra.mxu0 0
  %2392 = vmatprep.mubr.bf16.mxu0 0
  %2393 = vmatmul.mubr.bf16.gmra.mrb[0].mxu0 %v2355
  %v2394 = vpop.f32.mrb[0].mxu0
  %v2395 = vadd.f32 0.0, %v2394
  %v2396 = vpop.f32.mrb[0].mxu0
  %v2397 = vpop.f32.mrb[0].mxu0
  %v2398 = vpop.f32.mrb[0].mxu0
  %2399 = vdwg.mxu0
  %2400 = vrot.lane.b32.xlu0 %v1653, 64
  %v2401 = vpop.permute.xlu0 %2400
  %v2403 = vsel %vm168, %v2157, 0
  %v2406 = vsel %vm677, %v2401, 0
  %2408 = vmatprep.subr.bf16.mxu0 0
  %2409 = vmatpush1.bf16.msra.mxu0 %v2406
  %2410 = vmatprep.subr.bf16.mxu0 0
  %2411 = vmatpush1.bf16.msra.mxu0 0
  %2412 = vmatprep.subr.bf16.mxu0 0
  %2413 = vmatpush1.bf16.msra.mxu0 0
  %2414 = vmatprep.subr.bf16.mxu0 0
  %2415 = vmatpush1.bf16.msra.mxu0 0
  %2416 = vmatprep.subr.bf16.mxu0 0
  %2417 = vmatpush1.bf16.msra.mxu0 0
  %2418 = vmatprep.subr.bf16.mxu0 0
  %2419 = vmatpush1.bf16.msra.mxu0 0
  %2420 = vmatprep.subr.bf16.mxu0 0
  %2421 = vmatpush1.bf16.msra.mxu0 0
  %2422 = vmatprep.subr.bf16.mxu0 0
  %2423 = vmatpush1.bf16.msra.mxu0 0
  %2424 = vmatprep.subr.bf16.mxu0 0
  %2425 = vmatpush1.bf16.msra.mxu0 0
  %2426 = vmatprep.subr.bf16.mxu0 0
  %2427 = vmatpush1.bf16.msra.mxu0 0
  %2428 = vmatprep.subr.bf16.mxu0 0
  %2429 = vmatpush1.bf16.msra.mxu0 0
  %2430 = vmatprep.subr.bf16.mxu0 0
  %2431 = vmatpush1.bf16.msra.mxu0 0
  %2432 = vmatprep.subr.bf16.mxu0 0
  %2433 = vmatpush1.bf16.msra.mxu0 0
  %2434 = vmatprep.subr.bf16.mxu0 0
  %2435 = vmatpush1.bf16.msra.mxu0 0
  %2436 = vmatprep.subr.bf16.mxu0 0
  %2437 = vmatpush1.bf16.msra.mxu0 0
  %2438 = vmatprep.subr.bf16.mxu0 0
  %2439 = vmatpush1.bf16.msra.mxu0 0
  %2440 = vmatprep.mubr.bf16.mxu0 0
  %2441 = vmatmul.mubr.bf16.gmra.mrb[0].mxu0 %v2403
  %v2442 = vpop.f32.mrb[0].mxu0
  %v2443 = vadd.f32 0.0, %v2442
  %v2444 = vpop.f32.mrb[0].mxu0
  %v2445 = vpop.f32.mrb[0].mxu0
  %v2446 = vpop.f32.mrb[0].mxu0
  %2447 = vdwg.mxu0
  %2448 = vrot.lane.b32.xlu0 %v1654, 64
  %v2449 = vpop.permute.xlu0 %2448
  %v2451 = vsel %vm168, %v2158, 0
  %v2454 = vsel %vm677, %v2449, 0
  %2456 = vmatprep.subr.bf16.mxu0 0
  %2457 = vmatpush1.bf16.msra.mxu0 %v2454
  %2458 = vmatprep.subr.bf16.mxu0 0
  %2459 = vmatpush1.bf16.msra.mxu0 0
  %2460 = vmatprep.subr.bf16.mxu0 0
  %2461 = vmatpush1.bf16.msra.mxu0 0
  %2462 = vmatprep.subr.bf16.mxu0 0
  %2463 = vmatpush1.bf16.msra.mxu0 0
  %2464 = vmatprep.subr.bf16.mxu0 0
  %2465 = vmatpush1.bf16.msra.mxu0 0
  %2466 = vmatprep.subr.bf16.mxu0 0
  %2467 = vmatpush1.bf16.msra.mxu0 0
  %2468 = vmatprep.subr.bf16.mxu0 0
  %2469 = vmatpush1.bf16.msra.mxu0 0
  %2470 = vmatprep.subr.bf16.mxu0 0
  %2471 = vmatpush1.bf16.msra.mxu0 0
  %2472 = vmatprep.subr.bf16.mxu0 0
  %2473 = vmatpush1.bf16.msra.mxu0 0
  %2474 = vmatprep.subr.bf16.mxu0 0
  %2475 = vmatpush1.bf16.msra.mxu0 0
  %2476 = vmatprep.subr.bf16.mxu0 0
  %2477 = vmatpush1.bf16.msra.mxu0 0
  %2478 = vmatprep.subr.bf16.mxu0 0
  %2479 = vmatpush1.bf16.msra.mxu0 0
  %2480 = vmatprep.subr.bf16.mxu0 0
  %2481 = vmatpush1.bf16.msra.mxu0 0
  %2482 = vmatprep.subr.bf16.mxu0 0
  %2483 = vmatpush1.bf16.msra.mxu0 0
  %2484 = vmatprep.subr.bf16.mxu0 0
  %2485 = vmatpush1.bf16.msra.mxu0 0
  %2486 = vmatprep.subr.bf16.mxu0 0
  %2487 = vmatpush1.bf16.msra.mxu0 0
  %2488 = vmatprep.mubr.bf16.mxu0 0
  %2489 = vmatmul.mubr.bf16.gmra.mrb[0].mxu0 %v2451
  %v2490 = vpop.f32.mrb[0].mxu0
  %v2491 = vadd.f32 0.0, %v2490
  %v2492 = vpop.f32.mrb[0].mxu0
  %v2493 = vpop.f32.mrb[0].mxu0
  %v2494 = vpop.f32.mrb[0].mxu0
  %2495 = vdwg.mxu0
  %2496 = vrot.lane.b32.xlu0 %v1655, 64
  %v2497 = vpop.permute.xlu0 %2496
  %v2499 = vsel %vm168, %v2159, 0
  %v2502 = vsel %vm677, %v2497, 0
  %2504 = vmatprep.subr.bf16.mxu0 0
  %2505 = vmatpush1.bf16.msra.mxu0 %v2502
  %2506 = vmatprep.subr.bf16.mxu0 0
  %2507 = vmatpush1.bf16.msra.mxu0 0
  %2508 = vmatprep.subr.bf16.mxu0 0
  %2509 = vmatpush1.bf16.msra.mxu0 0
  %2510 = vmatprep.subr.bf16.mxu0 0
  %2511 = vmatpush1.bf16.msra.mxu0 0
  %2512 = vmatprep.subr.bf16.mxu0 0
  %2513 = vmatpush1.bf16.msra.mxu0 0
  %2514 = vmatprep.subr.bf16.mxu0 0
  %2515 = vmatpush1.bf16.msra.mxu0 0
  %2516 = vmatprep.subr.bf16.mxu0 0
  %2517 = vmatpush1.bf16.msra.mxu0 0
  %2518 = vmatprep.subr.bf16.mxu0 0
  %2519 = vmatpush1.bf16.msra.mxu0 0
  %2520 = vmatprep.subr.bf16.mxu0 0
  %2521 = vmatpush1.bf16.msra.mxu0 0
  %2522 = vmatprep.subr.bf16.mxu0 0
  %2523 = vmatpush1.bf16.msra.mxu0 0
  %2524 = vmatprep.subr.bf16.mxu0 0
  %2525 = vmatpush1.bf16.msra.mxu0 0
  %2526 = vmatprep.subr.bf16.mxu0 0
  %2527 = vmatpush1.bf16.msra.mxu0 0
  %2528 = vmatprep.subr.bf16.mxu0 0
  %2529 = vmatpush1.bf16.msra.mxu0 0
  %2530 = vmatprep.subr.bf16.mxu0 0
  %2531 = vmatpush1.bf16.msra.mxu0 0
  %2532 = vmatprep.subr.bf16.mxu0 0
  %2533 = vmatpush1.bf16.msra.mxu0 0
  %2534 = vmatprep.subr.bf16.mxu0 0
  %2535 = vmatpush1.bf16.msra.mxu0 0
  %2536 = vmatprep.mubr.bf16.mxu0 0
  %2537 = vmatmul.mubr.bf16.gmra.mrb[0].mxu0 %v2499
  %v2538 = vpop.f32.mrb[0].mxu0
  %v2539 = vadd.f32 0.0, %v2538
  %v2540 = vpop.f32.mrb[0].mxu0
  %v2541 = vpop.f32.mrb[0].mxu0
  %v2542 = vpop.f32.mrb[0].mxu0
  %2543 = vdwg.mxu0
  %v2544 = vpack.c.bf16 %v2203, %v2203
  %v2545 = vpack.c.bf16 %v2251, %v2251
  %v2546 = vpack.c.bf16 %v2299, %v2299
  %v2547 = vpack.c.bf16 %v2347, %v2347
  %v2548 = vpack.c.bf16 %v2395, %v2395
  %v2549 = vpack.c.bf16 %v2443, %v2443
  %v2550 = vpack.c.bf16 %v2491, %v2491
  %v2551 = vpack.c.bf16 %v2539, %v2539
  %s2552 = scalar_lea.vmem %s2, 16
  %v2553 = vld [vmem:[%s2552] sm:$0xf]
  %v2554 = vld [vmem:[%s2552 + $0x4] sm:$0xf]
  %v2555 = vld [vmem:[%s2552 + $0x8] sm:$0xf]
  %v2556 = vld [vmem:[%s2552 + $0xc] sm:$0xf]
  %v2559 = vunpack.c.l.b16 %v2546
  %v2560 = vunpack.c.l.b16 %v2547
  %v2561 = vpack.c.b16 %v2560, %v2559
  %v2563 = vsel %vm168, %v2561, 0
  %v2566 = vsel %vm677, %v2554, 0
  %2568 = vmatprep.subr.bf16.mxu0 0
  %2569 = vmatpush1.bf16.msra.mxu0 %v2566
  %2570 = vmatprep.subr.bf16.mxu0 0
  %2571 = vmatpush1.bf16.msra.mxu0 0
  %2572 = vmatprep.subr.bf16.mxu0 0
  %2573 = vmatpush1.bf16.msra.mxu0 0
  %2574 = vmatprep.subr.bf16.mxu0 0
  %2575 = vmatpush1.bf16.msra.mxu0 0
  %2576 = vmatprep.subr.bf16.mxu0 0
  %2577 = vmatpush1.bf16.msra.mxu0 0
  %2578 = vmatprep.subr.bf16.mxu0 0
  %2579 = vmatpush1.bf16.msra.mxu0 0
  %2580 = vmatprep.subr.bf16.mxu0 0
  %2581 = vmatpush1.bf16.msra.mxu0 0
  %2582 = vmatprep.subr.bf16.mxu0 0
  %2583 = vmatpush1.bf16.msra.mxu0 0
  %2584 = vmatprep.subr.bf16.mxu0 0
  %2585 = vmatpush1.bf16.msra.mxu0 0
  %2586 = vmatprep.subr.bf16.mxu0 0
  %2587 = vmatpush1.bf16.msra.mxu0 0
  %2588 = vmatprep.subr.bf16.mxu0 0
  %2589 = vmatpush1.bf16.msra.mxu0 0
  %2590 = vmatprep.subr.bf16.mxu0 0
  %2591 = vmatpush1.bf16.msra.mxu0 0
  %2592 = vmatprep.subr.bf16.mxu0 0
  %2593 = vmatpush1.bf16.msra.mxu0 0
  %2594 = vmatprep.subr.bf16.mxu0 0
  %2595 = vmatpush1.bf16.msra.mxu0 0
  %2596 = vmatprep.subr.bf16.mxu0 0
  %2597 = vmatpush1.bf16.msra.mxu0 0
  %2598 = vmatprep.subr.bf16.mxu0 0
  %2599 = vmatpush1.bf16.msra.mxu0 0
  %2600 = vmatprep.mubr.bf16.mxu0 0
  %2601 = vmatmul.mubr.bf16.gmra.mrb[0].mxu0 %v2563
  %v2602 = vpop.f32.mrb[0].mxu0
  %v2603 = vadd.f32 0.0, %v2602
  %v2604 = vpop.f32.mrb[0].mxu0
  %v2605 = vpop.f32.mrb[0].mxu0
  %v2606 = vadd.f32 0.0, %v2605
  %v2607 = vpop.f32.mrb[0].mxu0
  %2608 = vdwg.mxu0
  %v2611 = vunpack.c.l.b16 %v2544
  %v2612 = vunpack.c.l.b16 %v2545
  %v2613 = vpack.c.b16 %v2612, %v2611
  %v2615 = vsel %vm168, %v2613, 0
  %v2618 = vsel %vm677, %v2553, 0
  %2620 = vmatprep.subr.bf16.mxu0 0
  %2621 = vmatpush1.bf16.msra.mxu0 %v2618
  %2622 = vmatprep.subr.bf16.mxu0 0
  %2623 = vmatpush1.bf16.msra.mxu0 0
  %2624 = vmatprep.subr.bf16.mxu0 0
  %2625 = vmatpush1.bf16.msra.mxu0 0
  %2626 = vmatprep.subr.bf16.mxu0 0
  %2627 = vmatpush1.bf16.msra.mxu0 0
  %2628 = vmatprep.subr.bf16.mxu0 0
  %2629 = vmatpush1.bf16.msra.mxu0 0
  %2630 = vmatprep.subr.bf16.mxu0 0
  %2631 = vmatpush1.bf16.msra.mxu0 0
  %2632 = vmatprep.subr.bf16.mxu0 0
  %2633 = vmatpush1.bf16.msra.mxu0 0
  %2634 = vmatprep.subr.bf16.mxu0 0
  %2635 = vmatpush1.bf16.msra.mxu0 0
  %2636 = vmatprep.subr.bf16.mxu0 0
  %2637 = vmatpush1.bf16.msra.mxu0 0
  %2638 = vmatprep.subr.bf16.mxu0 0
  %2639 = vmatpush1.bf16.msra.mxu0 0
  %2640 = vmatprep.subr.bf16.mxu0 0
  %2641 = vmatpush1.bf16.msra.mxu0 0
  %2642 = vmatprep.subr.bf16.mxu0 0
  %2643 = vmatpush1.bf16.msra.mxu0 0
  %2644 = vmatprep.subr.bf16.mxu0 0
  %2645 = vmatpush1.bf16.msra.mxu0 0
  %2646 = vmatprep.subr.bf16.mxu0 0
  %2647 = vmatpush1.bf16.msra.mxu0 0
  %2648 = vmatprep.subr.bf16.mxu0 0
  %2649 = vmatpush1.bf16.msra.mxu0 0
  %2650 = vmatprep.subr.bf16.mxu0 0
  %2651 = vmatpush1.bf16.msra.mxu0 0
  %2652 = vmatprep.mubr.bf16.mxu0 0
  %2653 = vmatmul.mubr.bf16.gmra.mrb[0].mxu0 %v2615
  %v2654 = vpop.f32.mrb[0].mxu0
  %v2655 = vadd.f32 %v2603, %v2654
  %v2656 = vpop.f32.mrb[0].mxu0
  %v2657 = vpop.f32.mrb[0].mxu0
  %v2658 = vadd.f32 %v2606, %v2657
  %v2659 = vpop.f32.mrb[0].mxu0
  %2660 = vdwg.mxu0
  %v2663 = vunpack.c.l.b16 %v2548
  %v2664 = vunpack.c.l.b16 %v2549
  %v2665 = vpack.c.b16 %v2664, %v2663
  %v2667 = vsel %vm168, %v2665, 0
  %v2670 = vsel %vm677, %v2555, 0
  %2672 = vmatprep.subr.bf16.mxu0 0
  %2673 = vmatpush1.bf16.msra.mxu0 %v2670
  %2674 = vmatprep.subr.bf16.mxu0 0
  %2675 = vmatpush1.bf16.msra.mxu0 0
  %2676 = vmatprep.subr.bf16.mxu0 0
  %2677 = vmatpush1.bf16.msra.mxu0 0
  %2678 = vmatprep.subr.bf16.mxu0 0
  %2679 = vmatpush1.bf16.msra.mxu0 0
  %2680 = vmatprep.subr.bf16.mxu0 0
  %2681 = vmatpush1.bf16.msra.mxu0 0
  %2682 = vmatprep.subr.bf16.mxu0 0
  %2683 = vmatpush1.bf16.msra.mxu0 0
  %2684 = vmatprep.subr.bf16.mxu0 0
  %2685 = vmatpush1.bf16.msra.mxu0 0
  %2686 = vmatprep.subr.bf16.mxu0 0
  %2687 = vmatpush1.bf16.msra.mxu0 0
  %2688 = vmatprep.subr.bf16.mxu0 0
  %2689 = vmatpush1.bf16.msra.mxu0 0
  %2690 = vmatprep.subr.bf16.mxu0 0
  %2691 = vmatpush1.bf16.msra.mxu0 0
  %2692 = vmatprep.subr.bf16.mxu0 0
  %2693 = vmatpush1.bf16.msra.mxu0 0
  %2694 = vmatprep.subr.bf16.mxu0 0
  %2695 = vmatpush1.bf16.msra.mxu0 0
  %2696 = vmatprep.subr.bf16.mxu0 0
  %2697 = vmatpush1.bf16.msra.mxu0 0
  %2698 = vmatprep.subr.bf16.mxu0 0
  %2699 = vmatpush1.bf16.msra.mxu0 0
  %2700 = vmatprep.subr.bf16.mxu0 0
  %2701 = vmatpush1.bf16.msra.mxu0 0
  %2702 = vmatprep.subr.bf16.mxu0 0
  %2703 = vmatpush1.bf16.msra.mxu0 0
  %2704 = vmatprep.mubr.bf16.mxu0 0
  %2705 = vmatmul.mubr.bf16.gmra.mrb[0].mxu0 %v2667
  %v2706 = vpop.f32.mrb[0].mxu0
  %v2707 = vadd.f32 0.0, %v2706
  %v2708 = vpop.f32.mrb[0].mxu0
  %v2709 = vpop.f32.mrb[0].mxu0
  %v2710 = vadd.f32 0.0, %v2709
  %v2711 = vpop.f32.mrb[0].mxu0
  %2712 = vdwg.mxu0
  %v2713 = vadd.f32 %v2655, %v2707
  %v2714 = vadd.f32 %v2658, %v2710
  %v2717 = vunpack.c.l.b16 %v2550
  %v2718 = vunpack.c.l.b16 %v2551
  %v2719 = vpack.c.b16 %v2718, %v2717
  %v2721 = vsel %vm168, %v2719, 0
  %v2724 = vsel %vm677, %v2556, 0
  %2726 = vmatprep.subr.bf16.mxu0 0
  %2727 = vmatpush1.bf16.msra.mxu0 %v2724
  %2728 = vmatprep.subr.bf16.mxu0 0
  %2729 = vmatpush1.bf16.msra.mxu0 0
  %2730 = vmatprep.subr.bf16.mxu0 0
  %2731 = vmatpush1.bf16.msra.mxu0 0
  %2732 = vmatprep.subr.bf16.mxu0 0
  %2733 = vmatpush1.bf16.msra.mxu0 0
  %2734 = vmatprep.subr.bf16.mxu0 0
  %2735 = vmatpush1.bf16.msra.mxu0 0
  %2736 = vmatprep.subr.bf16.mxu0 0
  %2737 = vmatpush1.bf16.msra.mxu0 0
  %2738 = vmatprep.subr.bf16.mxu0 0
  %2739 = vmatpush1.bf16.msra.mxu0 0
  %2740 = vmatprep.subr.bf16.mxu0 0
  %2741 = vmatpush1.bf16.msra.mxu0 0
  %2742 = vmatprep.subr.bf16.mxu0 0
  %2743 = vmatpush1.bf16.msra.mxu0 0
  %2744 = vmatprep.subr.bf16.mxu0 0
  %2745 = vmatpush1.bf16.msra.mxu0 0
  %2746 = vmatprep.subr.bf16.mxu0 0
  %2747 = vmatpush1.bf16.msra.mxu0 0
  %2748 = vmatprep.subr.bf16.mxu0 0
  %2749 = vmatpush1.bf16.msra.mxu0 0
  %2750 = vmatprep.subr.bf16.mxu0 0
  %2751 = vmatpush1.bf16.msra.mxu0 0
  %2752 = vmatprep.subr.bf16.mxu0 0
  %2753 = vmatpush1.bf16.msra.mxu0 0
  %2754 = vmatprep.subr.bf16.mxu0 0
  %2755 = vmatpush1.bf16.msra.mxu0 0
  %2756 = vmatprep.subr.bf16.mxu0 0
  %2757 = vmatpush1.bf16.msra.mxu0 0
  %2758 = vmatprep.mubr.bf16.mxu0 0
  %2759 = vmatmul.mubr.bf16.gmra.mrb[0].mxu0 %v2721
  %v2760 = vpop.f32.mrb[0].mxu0
  %v2761 = vadd.f32 0.0, %v2760
  %v2762 = vpop.f32.mrb[0].mxu0
  %v2763 = vpop.f32.mrb[0].mxu0
  %v2764 = vadd.f32 0.0, %v2763
  %v2765 = vpop.f32.mrb[0].mxu0
  %2766 = vdwg.mxu0
  %v2767 = vadd.f32 %v2713, %v2761
  %v2768 = vadd.f32 %v2714, %v2764
  %v2769 = vadd.f32 %v1520, %v2767
  %v2770 = vadd.f32 %v1521, %v2768
  %v2771 = vlaneseq
  %v2772 = vshrl.u32 %v2771, 7
  %v2773 = vsub.s32 3, %v2772
  %v2774 = vrot.slane %v1523, %v2773
  %v2775 = vadd.f32 %v2769, %v2774
  %v2776 = vadd.f32 %v2770, %v2774
  %v2777 = vsel %vm32, %v2775, 0.0
  %2778 = vadd.xlane.f32.xlu0 %v2777
  %v2779 = vpop.xlane.xlu0 %2778
  %v2780 = vsel %vm32, %v2776, 0.0
  %2781 = vadd.xlane.f32.xlu0 %v2780
  %v2782 = vpop.xlane.xlu0 %2781
  %v2783 = vmul.f32 %v2779, %v39
  %v2784 = vmul.f32 %v2782, %v39
  %v2785 = vsub.f32 %v2775, %v2783
  %v2786 = vsub.f32 %v2776, %v2784
  %v2787 = vmul.f32 %v2785, %v2785
  %v2788 = vmul.f32 %v2786, %v2786
  %v2789 = vsel %vm32, %v2787, 0.0
  %2790 = vadd.xlane.f32.xlu0 %v2789
  %v2791 = vpop.xlane.xlu0 %2790
  %v2792 = vsel %vm32, %v2788, 0.0
  %2793 = vadd.xlane.f32.xlu0 %v2792
  %v2794 = vpop.xlane.xlu0 %2793
  %v2795 = vmul.f32 %v2791, %v39
  %v2796 = vmul.f32 %v2794, %v39
  %v2797 = vadd.f32 %v2795, 1e-05
  %v2798 = vadd.f32 %v2796, 1e-05
  %v2799 = vrsqrt.pop %v2797
  %v2800 = vrsqrt.pop %v2798
  %v2801 = vmul.f32 %v2785, %v2799
  %v2802 = vmul.f32 %v2786, %v2800
  %v2803 = vlaneseq
  %v2804 = vshrl.u32 %v2803, 7
  %v2805 = vsub.s32 4, %v2804
  %v2806 = vrot.slane %v1523, %v2805
  %v2807 = vmul.f32 %v2801, %v2806
  %v2808 = vmul.f32 %v2802, %v2806
  %v2809 = vlaneseq
  %v2810 = vshrl.u32 %v2809, 7
  %v2811 = vsub.s32 5, %v2810
  %v2812 = vrot.slane %v1523, %v2811
  %v2813 = vadd.f32 %v2807, %v2812
  %v2814 = vadd.f32 %v2808, %v2812
  %v2815 = vpack.c.bf16 %v2814, %v2813
  %s2816 = scalar_lea.vmem %s3, 16
  %v2817 = vld [vmem:[%s2816] sm:$0xf]
  %v2818 = vld [vmem:[%s2816 + $0x4] sm:$0xf]
  %v2819 = vld [vmem:[%s2816 + $0x8] sm:$0xf]
  %v2820 = vld [vmem:[%s2816 + $0xc] sm:$0xf]
  %v2821 = vlaneseq
  %v2822 = vshrl.u32 %v2821, 7
  %v2823 = vsub.s32 6, %v2822
  %v2824 = vrot.slane %v1523, %v2823
  %v2829 = vunpack.c.l.b16 %v2817
  %v2830 = vunpack.c.l.b16 %v2818
  %v2831 = vunpack.c.l.b16 %v2819
  %v2832 = vunpack.c.l.b16 %v2820
  %v2833 = vpack.c.b16 %v2830, %v2829
  %v2834 = vpack.c.b16 %v2832, %v2831
  %v2838 = vsel %vm32, %v2815, 0
  %2840 = vmatprep.subr.bf16.mxu0 0
  %2841 = vmatpush1.bf16.msra.mxu0 %v2833
  %2842 = vmatprep.subr.bf16.mxu0 0
  %2843 = vmatpush1.bf16.msra.mxu0 %v2834
  %2844 = vmatprep.subr.bf16.mxu0 0
  %2845 = vmatpush1.bf16.msra.mxu0 0
  %2846 = vmatprep.subr.bf16.mxu0 0
  %2847 = vmatpush1.bf16.msra.mxu0 0
  %2848 = vmatprep.subr.bf16.mxu0 0
  %2849 = vmatpush1.bf16.msra.mxu0 0
  %2850 = vmatprep.subr.bf16.mxu0 0
  %2851 = vmatpush1.bf16.msra.mxu0 0
  %2852 = vmatprep.subr.bf16.mxu0 0
  %2853 = vmatpush1.bf16.msra.mxu0 0
  %2854 = vmatprep.subr.bf16.mxu0 0
  %2855 = vmatpush1.bf16.msra.mxu0 0
  %2856 = vmatprep.subr.bf16.mxu0 0
  %2857 = vmatpush1.bf16.msra.mxu0 0
  %2858 = vmatprep.subr.bf16.mxu0 0
  %2859 = vmatpush1.bf16.msra.mxu0 0
  %2860 = vmatprep.subr.bf16.mxu0 0
  %2861 = vmatpush1.bf16.msra.mxu0 0
  %2862 = vmatprep.subr.bf16.mxu0 0
  %2863 = vmatpush1.bf16.msra.mxu0 0
  %2864 = vmatprep.subr.bf16.mxu0 0
  %2865 = vmatpush1.bf16.msra.mxu0 0
  %2866 = vmatprep.subr.bf16.mxu0 0
  %2867 = vmatpush1.bf16.msra.mxu0 0
  %2868 = vmatprep.subr.bf16.mxu0 0
  %2869 = vmatpush1.bf16.msra.mxu0 0
  %2870 = vmatprep.subr.bf16.mxu0 0
  %2871 = vmatpush1.bf16.msra.mxu0 0
  %2872 = vmatprep.mubr.bf16.mxu0 0
  %2873 = vmatmul.mubr.bf16.gmra.mrb[0].mxu0 %v2838
  %v2874 = vpop.f32.mrb[0].mxu0
  %v2875 = vadd.f32 %v2824, %v2874
  %v2876 = vpop.f32.mrb[0].mxu0
  %v2877 = vpop.f32.mrb[0].mxu0
  %v2878 = vadd.f32 %v2824, %v2877
  %v2879 = vpop.f32.mrb[0].mxu0
  %2880 = vdwg.mxu0
  %v2881 = vmul.f32 %v2875, 0.5
  %v2882 = vmul.f32 %v2878, 0.5
  %v2883 = vmul.f32 %v2875, 0.044715
  %v2884 = vmul.f32 %v2878, 0.044715
  %v2885 = vmul.f32 %v2883, %v2875
  %v2886 = vmul.f32 %v2884, %v2878
  %v2887 = vmul.f32 %v2885, %v2875
  %v2888 = vmul.f32 %v2886, %v2878
  %v2889 = vadd.f32 %v2875, %v2887
  %v2890 = vadd.f32 %v2878, %v2888
  %v2891 = vmul.f32 %v2889, 0.7978846
  %v2892 = vmul.f32 %v2890, 0.7978846
  %v2893 = vtanh.pop %v2891
  %v2894 = vtanh.pop %v2892
  %v2895 = vadd.f32 %v2893, 1.0
  %v2896 = vadd.f32 %v2894, 1.0
  %v2897 = vmul.f32 %v2881, %v2895
  %v2898 = vmul.f32 %v2882, %v2896
  %v2899 = vpack.c.bf16 %v2898, %v2897
  %s2900 = scalar_lea.vmem %s4, 64
  %v2901 = vld [vmem:[%s2900] sm:$0xf]
  %v2902 = vld [vmem:[%s2900 + $0x4] sm:$0xf]
  %v2903 = vld [vmem:[%s2900 + $0x8] sm:$0xf]
  %v2904 = vld [vmem:[%s2900 + $0xc] sm:$0xf]
  %v2905 = vld [vmem:[%s2900 + $0x10] sm:$0xf]
  %v2906 = vld [vmem:[%s2900 + $0x14] sm:$0xf]
  %v2907 = vld [vmem:[%s2900 + $0x18] sm:$0xf]
  %v2908 = vld [vmem:[%s2900 + $0x1c] sm:$0xf]
  %v2909 = vld [vmem:[%s2900 + $0x20] sm:$0xf]
  %v2910 = vld [vmem:[%s2900 + $0x24] sm:$0xf]
  %v2911 = vld [vmem:[%s2900 + $0x28] sm:$0xf]
  %v2912 = vld [vmem:[%s2900 + $0x2c] sm:$0xf]
  %v2913 = vld [vmem:[%s2900 + $0x30] sm:$0xf]
  %v2914 = vld [vmem:[%s2900 + $0x34] sm:$0xf]
  %v2915 = vld [vmem:[%s2900 + $0x38] sm:$0xf]
  %v2916 = vld [vmem:[%s2900 + $0x3c] sm:$0xf]
  %v2917 = vlaneseq
  %v2918 = vshrl.u32 %v2917, 7
  %v2919 = vsub.s32 7, %v2918
  %v2920 = vrot.slane %v1523, %v2919
  %v2937 = vunpack.c.l.b16 %v2901
  %v2938 = vunpack.c.l.b16 %v2902
  %v2939 = vunpack.c.l.b16 %v2903
  %v2940 = vunpack.c.l.b16 %v2904
  %v2941 = vunpack.c.l.b16 %v2905
  %v2942 = vunpack.c.l.b16 %v2906
  %v2943 = vunpack.c.l.b16 %v2907
  %v2944 = vunpack.c.l.b16 %v2908
  %v2945 = vunpack.c.l.b16 %v2909
  %v2946 = vunpack.c.l.b16 %v2910
  %v2947 = vunpack.c.l.b16 %v2911
  %v2948 = vunpack.c.l.b16 %v2912
  %v2949 = vunpack.c.l.b16 %v2913
  %v2950 = vunpack.c.l.b16 %v2914
  %v2951 = vunpack.c.l.b16 %v2915
  %v2952 = vunpack.c.l.b16 %v2916
  %v2953 = vpack.c.b16 %v2938, %v2937
  %v2954 = vpack.c.b16 %v2940, %v2939
  %v2955 = vpack.c.b16 %v2942, %v2941
  %v2956 = vpack.c.b16 %v2944, %v2943
  %v2957 = vpack.c.b16 %v2946, %v2945
  %v2958 = vpack.c.b16 %v2948, %v2947
  %v2959 = vpack.c.b16 %v2950, %v2949
  %v2960 = vpack.c.b16 %v2952, %v2951
  %2969 = vmatprep.subr.bf16.mxu0 0
  %2970 = vmatpush1.bf16.msra.mxu0 %v2953
  %2971 = vmatprep.subr.bf16.mxu0 0
  %2972 = vmatpush1.bf16.msra.mxu0 %v2954
  %2973 = vmatprep.subr.bf16.mxu0 0
  %2974 = vmatpush1.bf16.msra.mxu0 %v2955
  %2975 = vmatprep.subr.bf16.mxu0 0
  %2976 = vmatpush1.bf16.msra.mxu0 %v2956
  %2977 = vmatprep.subr.bf16.mxu0 0
  %2978 = vmatpush1.bf16.msra.mxu0 %v2957
  %2979 = vmatprep.subr.bf16.mxu0 0
  %2980 = vmatpush1.bf16.msra.mxu0 %v2958
  %2981 = vmatprep.subr.bf16.mxu0 0
  %2982 = vmatpush1.bf16.msra.mxu0 %v2959
  %2983 = vmatprep.subr.bf16.mxu0 0
  %2984 = vmatpush1.bf16.msra.mxu0 %v2960
  %2985 = vmatprep.subr.bf16.mxu0 0
  %2986 = vmatpush1.bf16.msra.mxu0 0
  %2987 = vmatprep.subr.bf16.mxu0 0
  %2988 = vmatpush1.bf16.msra.mxu0 0
  %2989 = vmatprep.subr.bf16.mxu0 0
  %2990 = vmatpush1.bf16.msra.mxu0 0
  %2991 = vmatprep.subr.bf16.mxu0 0
  %2992 = vmatpush1.bf16.msra.mxu0 0
  %2993 = vmatprep.subr.bf16.mxu0 0
  %2994 = vmatpush1.bf16.msra.mxu0 0
  %2995 = vmatprep.subr.bf16.mxu0 0
  %2996 = vmatpush1.bf16.msra.mxu0 0
  %2997 = vmatprep.subr.bf16.mxu0 0
  %2998 = vmatpush1.bf16.msra.mxu0 0
  %2999 = vmatprep.subr.bf16.mxu0 0
  %3000 = vmatpush1.bf16.msra.mxu0 0
  %3001 = vmatprep.mubr.bf16.mxu0 0
  %3002 = vmatmul.mubr.bf16.gmra.mrb[0].mxu0 %v2899
  %v3003 = vpop.f32.mrb[0].mxu0
  %v3004 = vadd.f32 %v2920, %v3003
  %v3005 = vpop.f32.mrb[0].mxu0
  %v3006 = vpop.f32.mrb[0].mxu0
  %v3007 = vadd.f32 %v2920, %v3006
  %v3008 = vpop.f32.mrb[0].mxu0
  %3009 = vdwg.mxu0
  %v3010 = vadd.f32 %v2775, %v3004
  %v3011 = vadd.f32 %v2776, %v3007
  %s3012 = scalar_lea.vmem %s5, 16
  %v3013 = vld [vmem:[%s3012] sm:$0xff]
  %v3014 = vsel %vm32, %v3010, 0.0
  %3015 = vadd.xlane.f32.xlu0 %v3014
  %v3016 = vpop.xlane.xlu0 %3015
  %v3017 = vsel %vm32, %v3011, 0.0
  %3018 = vadd.xlane.f32.xlu0 %v3017
  %v3019 = vpop.xlane.xlu0 %3018
  %v3020 = vmul.f32 %v3016, %v39
  %v3021 = vmul.f32 %v3019, %v39
  %v3022 = vsub.f32 %v3010, %v3020
  %v3023 = vsub.f32 %v3011, %v3021
  %v3024 = vmul.f32 %v3022, %v3022
  %v3025 = vmul.f32 %v3023, %v3023
  %v3026 = vsel %vm32, %v3024, 0.0
  %3027 = vadd.xlane.f32.xlu0 %v3026
  %v3028 = vpop.xlane.xlu0 %3027
  %v3029 = vsel %vm32, %v3025, 0.0
  %3030 = vadd.xlane.f32.xlu0 %v3029
  %v3031 = vpop.xlane.xlu0 %3030
  %v3032 = vmul.f32 %v3028, %v39
  %v3033 = vmul.f32 %v3031, %v39
  %v3034 = vadd.f32 %v3032, 1e-05
  %v3035 = vadd.f32 %v3033, 1e-05
  %v3036 = vrsqrt.pop %v3034
  %v3037 = vrsqrt.pop %v3035
  %v3038 = vmul.f32 %v3022, %v3036
  %v3039 = vmul.f32 %v3023, %v3037
  %v3040 = vlaneseq
  %v3041 = vshrl.u32 %v3040, 7
  %v3042 = vsub.s32 0, %v3041
  %v3043 = vrot.slane %v3013, %v3042
  %v3044 = vmul.f32 %v3038, %v3043
  %v3045 = vmul.f32 %v3039, %v3043
  %v3046 = vlaneseq
  %v3047 = vshrl.u32 %v3046, 7
  %v3048 = vsub.s32 1, %v3047
  %v3049 = vrot.slane %v3013, %v3048
  %v3050 = vadd.f32 %v3044, %v3049
  %v3051 = vadd.f32 %v3045, %v3049
  %v3052 = vsel %vm32, %v3050, 0.0
  %v3053 = vsel %vm32, %v3051, 0.0
  %3054 = vst [vmem:[%s6] sm:$0xff] %v3052
  %3055 = vst [vmem:[%s6 + $0x8] sm:$0xff] %v3053
  // Predicated region
  $region26: #{transformer_forward.1} parent=0 // pred_check
    _
  $region27: #{transformer_forward.1} parent=0 // pred_check_branch
    %3057 = sbr.rel (0) target = $region29
  $region28: #{transformer_forward.1} parent=0 // pred_region
    _
  $region29: #{transformer_forward.1} parent=0 // pred_fallthru
    _
  // Predicated region
  $region30: #{transformer_forward.1} parent=0 // pred_check
    _
  $region31: #{transformer_forward.1} parent=0 // pred_check_branch
    %3059 = sbr.rel (0) target = $region33
  $region32: #{transformer_forward.1} parent=0 // pred_region
    _
  $region33: #{transformer_forward.1} parent=0 // pred_fallthru
    _

</llo_original>
